<compile_context>
chip_gen: v7x
topology: tpu7x:2x2x1
jax: 0.10.0
libtpu: 0.0.40
codegen_flags: <defaults>
</compile_context>

<pallas_src>
from collections import namedtuple

import jax
import jax.numpy as jnp
from jax import lax
from jax.experimental import pallas as pl
from jax.experimental.pallas import tpu as pltpu

Node = namedtuple("Node", ["id", "type", "inputs"])

_BN_EPS = 1e-5


# ------------------------------ in-kernel helpers -----------------------------

def _shift(x, axis, delta):
    """y[..., i, ...] = x[..., i + delta, ...] along `axis`, zero-filled outside.

    `axis` is always a leading (non-tiled) dim of the (H, W, N, C) layout, so the
    slice + concat is a pure block operation (no sublane/lane relayout)."""
    if delta == 0:
        return x
    n = x.shape[axis]
    zshape = list(x.shape)
    zshape[axis] = 1
    zero = jnp.zeros(zshape, x.dtype)
    if delta > 0:
        return jnp.concatenate([lax.slice_in_dim(x, 1, n, axis=axis), zero], axis=axis)
    return jnp.concatenate([zero, lax.slice_in_dim(x, 0, n - 1, axis=axis)], axis=axis)


def _pointwise_bn(acc, dwb_ref, pww_ref, pwb_ref, g_ref, b_ref, o_ref):
    """Shared fused tail: depthwise bias + 1x1 pointwise conv (VPU FMA over the tiny
    Cin, keeping the MXU out of a <1% utilisation matmul) + BatchNorm2d using batch
    statistics (biased variance, eps=1e-5), then store."""
    y = acc + dwb_ref[...]                            # (H, W, N, Cin) + (1, Cin)
    pww = pww_ref[...]                                # (Cin, 1, Cout)
    cin = pww.shape[0]
    cout = pww.shape[2]
    h, w, n, _ = y.shape
    z = jnp.zeros((h, w, n, cout), jnp.float32)
    for ci in range(cin):                             # tiny Cin -> VPU broadcast-FMA
        z = z + y[:, :, :, ci:ci + 1] * pww[ci]       # (H,W,N,1) * (1,Cout)
    z = z + pwb_ref[...]                              # (1, Cout)
    mean = jnp.mean(z, axis=(0, 1, 2), keepdims=True)
    var = jnp.mean((z - mean) ** 2, axis=(0, 1, 2), keepdims=True)
    zhat = (z - mean) * lax.rsqrt(var + _BN_EPS)
    o_ref[...] = zhat * g_ref[...] + b_ref[...]       # (1, Cout) affine


# ------------------------------- fused node kernels ----------------------------

def _input_node_kernel(p00_ref, p01_ref, p10_ref, p11_ref,
                       dww_ref, dwb_ref, pww_ref, pwb_ref, g_ref, b_ref, o_ref):
    """Fused Triplet_unit for an input node (stride 2):
    ReLU + 3x3 depthwise conv computed directly on the 4 space-to-depth phases
    (phases[r][s][a,b,n,c] == x[2a+r, 2b+s, n, c]) so only Ho x Wo outputs are
    ever produced, then pointwise + BatchNorm."""
    phases = [[jnp.maximum(p00_ref[...], 0.0), jnp.maximum(p01_ref[...], 0.0)],
              [jnp.maximum(p10_ref[...], 0.0), jnp.maximum(p11_ref[...], 0.0)]]
    wdw = dww_ref[...]                                # (3, 3, 1, Cin)
    acc = jnp.zeros_like(phases[0][0])
    for di in range(3):
        r = 0 if di == 1 else 1                       # parity of row offset (di - 1)
        dh = -1 if di == 0 else 0                     # in-phase row shift
        for dj in range(3):
            s = 0 if dj == 1 else 1
            dv = -1 if dj == 0 else 0
            tap = _shift(_shift(phases[r][s], 0, dh), 1, dv)
            acc = acc + tap * wdw[di, dj]             # (1, Cin) broadcast
    _pointwise_bn(acc, dwb_ref, pww_ref, pwb_ref, g_ref, b_ref, o_ref)


def _make_internal_node_kernel(num_inputs):
    """Fused Node_OP for an internal node (stride 1): sigmoid(mean_weight)-weighted
    merge of the K inputs + ReLU + 3x3 depthwise (zero pad in-kernel) + pointwise
    + BatchNorm, all in one kernel (no stacked (K,...) intermediate in HBM)."""
    has_merge = num_inputs > 1

    def kernel(*refs):
        pos = 1 if has_merge else 0
        x_refs = refs[pos:pos + num_inputs]
        dww_ref, dwb_ref, pww_ref, pwb_ref, g_ref, b_ref, o_ref = refs[pos + num_inputs:]

        if has_merge:
            mw_ref = refs[0]
            sig = 1.0 / (1.0 + jnp.exp(-mw_ref[...]))      # sigmoid(mean_weight), (1,K)
            x = sig[0:1, 0:1] * x_refs[0][...]
            for k in range(1, num_inputs):
                x = x + sig[0:1, k:k + 1] * x_refs[k][...]
        else:
            x = x_refs[0][...]
        x = jnp.maximum(x, 0.0)

        wdw = dww_ref[...]                                 # (3, 3, 1, C)
        xh = [_shift(x, 0, d) for d in (-1, 0, 1)]         # 3 row-shifted views
        acc = jnp.zeros_like(x)
        for di in range(3):
            for dj in range(3):
                tap = _shift(xh[di], 1, dj - 1)
                acc = acc + tap * wdw[di, dj]
        _pointwise_bn(acc, dwb_ref, pww_ref, pwb_ref, g_ref, b_ref, o_ref)

    return kernel


def _make_mean_kernel(num_outputs):
    inv = 1.0 / float(num_outputs)

    def kernel(*refs):
        o_ref = refs[num_outputs]
        acc = refs[0][...]
        for k in range(1, num_outputs):
            acc = acc + refs[k][...]
        o_ref[...] = acc * inv

    return kernel


# ---------------------------------- wrappers ------------------------------------

def input_node_forward(params, phases):
    ho, wo, n, _ = phases[0].shape
    cout = params["pw_w"].shape[2]
    args = list(phases) + [params["dw_w"], params["dw_b"], params["pw_w"],
                           params["pw_b"], params["gamma"], params["beta"]]
    return pl.pallas_call(
        _input_node_kernel,
        out_shape=jax.ShapeDtypeStruct((ho, wo, n, cout), jnp.float32),
    )(*args)


def internal_node_forward(params, inputs):
    h, w, n, _ = inputs[0].shape
    cout = params["pw_w"].shape[2]
    args = ([params["mean_weight"]] if len(inputs) > 1 else []) + list(inputs) + [
        params["dw_w"], params["dw_b"], params["pw_w"], params["pw_b"],
        params["gamma"], params["beta"]]
    return pl.pallas_call(
        _make_internal_node_kernel(len(inputs)),
        out_shape=jax.ShapeDtypeStruct((h, w, n, cout), jnp.float32),
    )(*args)


def mean_outputs(outs):
    k = len(outs)
    h, w, n, c = outs[0].shape
    spec = pl.BlockSpec((1, w, n, c), lambda i: (i, 0, 0, 0))
    return pl.pallas_call(
        _make_mean_kernel(k),
        out_shape=jax.ShapeDtypeStruct((h, w, n, c), jnp.float32),
        grid=(h,),
        in_specs=[spec] * k,
        out_specs=spec,
        compiler_params=pltpu.CompilerParams(dimension_semantics=("parallel",)),
    )(*outs)


def stage_block(x_nchw, nodes, input_nodes, output_nodes, node_params):
    # Layout plumbing only: NCHW -> (H, W, N, C) so in-kernel conv shifts are pure
    # leading-dim block ops, plus a ONE-TIME space-to-depth split of the block input
    # shared by every stride-2 input node (exact stride-2, no wasted compute).
    x = jnp.transpose(x_nchw, (2, 3, 0, 1))                  # (H, W, N, Cin)
    phases = tuple(x[r::2, s::2] for r in (0, 1) for s in (0, 1))

    results = {}
    for nid in input_nodes:
        results[nid] = input_node_forward(node_params[nid], phases)
    for nid, node in enumerate(nodes):
        if nid in input_nodes:
            continue
        results[nid] = internal_node_forward(node_params[nid],
                                             [results[i] for i in node.inputs])
    out = mean_outputs([results[i] for i in output_nodes])   # (Ho, Wo, N, Cout)
    return jnp.transpose(out, (2, 3, 0, 1))                  # back to NCHW


# -------------------------- deterministic parameter init ------------------------

def init_node_params(key, node, inplanes, outplanes):
    is_input = node.type == 0
    cin = inplanes if is_input else outplanes
    cout = outplanes
    k = jax.random.split(key, 4)
    p = {
        "dw_w": jax.random.normal(k[0], (3, 3, 1, cin), jnp.float32) * 0.2,
        "dw_b": jax.random.normal(k[1], (1, cin), jnp.float32) * 0.1,
        "pw_w": jax.random.normal(k[2], (cin, 1, cout), jnp.float32) * 0.2,
        "pw_b": jax.random.normal(k[3], (1, cout), jnp.float32) * 0.1,
        "gamma": jnp.ones((1, cout), jnp.float32),            # BatchNorm2d defaults
        "beta": jnp.zeros((1, cout), jnp.float32),
    }
    if len(node.inputs) > 1:
        p["mean_weight"] = jnp.ones((1, len(node.inputs)), jnp.float32)  # torch.ones
    return p


# ------------------------------- pure-JAX reference ------------------------------

def _ref_triplet_nhwc(x, p, stride):
    y = jax.nn.relu(x)
    cin = x.shape[-1]
    y = lax.conv_general_dilated(
        y, p["dw_w"], (stride, stride), ((1, 1), (1, 1)),
        dimension_numbers=("NHWC", "HWIO", "NHWC"),
        feature_group_count=cin) + p["dw_b"]
    z = jnp.einsum("nhwc,cd->nhwd", y, p["pw_w"][:, 0, :]) + p["pw_b"]
    mean = jnp.mean(z, axis=(0, 1, 2), keepdims=True)
    var = jnp.mean((z - mean) ** 2, axis=(0, 1, 2), keepdims=True)
    return (z - mean) * lax.rsqrt(var + _BN_EPS) * p["gamma"] + p["beta"]


def _ref_stage_block(x_nchw, nodes, input_nodes, output_nodes, node_params):
    x = jnp.transpose(x_nchw, (0, 2, 3, 1))                  # NHWC
    results = {}
    for nid in input_nodes:
        results[nid] = _ref_triplet_nhwc(x, node_params[nid], 2)
    for nid, node in enumerate(nodes):
        if nid in input_nodes:
            continue
        if len(node.inputs) > 1:
            w = jax.nn.sigmoid(node_params[nid]["mean_weight"][0])
            merged = sum(w[i] * results[node.inputs[i]] for i in range(len(node.inputs)))
        else:
            merged = results[node.inputs[0]]
        results[nid] = _ref_triplet_nhwc(merged, node_params[nid], 1)
    out = results[output_nodes[0]]
    for i in range(1, len(output_nodes)):
        out = out + results[output_nodes[i]]
    out = out / len(output_nodes)
    return jnp.transpose(out, (0, 3, 1, 2))                  # NCHW


# ------------------------------------- main --------------------------------------

if __name__ == "__main__":
    inplanes, outplanes = 4, 8
    N, H, W = 2, 16, 16

    # small deterministic DAG (same Node interface as get_graph_info output)
    nodes = [
        Node(0, 0, []),          # input node (stride 2)
        Node(1, 0, []),          # input node (stride 2)
        Node(2, 1, [0, 1]),      # 2-way weighted merge
        Node(3, 1, [2]),         # single-input internal node (no merge weights)
        Node(4, 1, [1, 2, 3]),   # 3-way weighted merge
    ]
    input_nodes = [0, 1]
    output_nodes = [3, 4]

    key = jax.random.PRNGKey(0)
    kx, kp = jax.random.split(key)
    x_nchw = jax.random.normal(kx, (N, inplanes, H, W), jnp.float32)  # PyTorch NCHW

    pkeys = jax.random.split(kp, len(nodes))
    node_params = [init_node_params(pkeys[i], nodes[i], inplanes, outplanes)
                   for i in range(len(nodes))]

    out = stage_block(x_nchw, nodes, input_nodes, output_nodes, node_params)
    out = jax.block_until_ready(out)
    assert out.shape == (N, outplanes, H // 2, W // 2), out.shape

    ref = _ref_stage_block(x_nchw, nodes, input_nodes, output_nodes, node_params)
    max_err = float(jnp.max(jnp.abs(out - ref)))
    assert jnp.allclose(out, ref, atol=1e-3, rtol=1e-3), f"max abs err {max_err}"

    print("KERNEL_OK")
</pallas_src>

<mosaic_0001>
module attributes {stable_mosaic.version = 11 : i64} {
  func.func @_input_node_kernel(%arg0: memref<8x8x2x4xf32, #tpu.memory_space<vmem>>, %arg1: memref<8x8x2x4xf32, #tpu.memory_space<vmem>>, %arg2: memref<8x8x2x4xf32, #tpu.memory_space<vmem>>, %arg3: memref<8x8x2x4xf32, #tpu.memory_space<vmem>>, %arg4: memref<3x3x1x4xf32, #tpu.memory_space<vmem>>, %arg5: memref<1x4xf32, #tpu.memory_space<vmem>>, %arg6: memref<4x1x8xf32, #tpu.memory_space<vmem>>, %arg7: memref<1x8xf32, #tpu.memory_space<vmem>>, %arg8: memref<1x8xf32, #tpu.memory_space<vmem>>, %arg9: memref<1x8xf32, #tpu.memory_space<vmem>>, %arg10: memref<8x8x2x8xf32, #tpu.memory_space<vmem>>) attributes {dimension_semantics = [], scalar_prefetch = 0 : i64, scratch_operands = 0 : i64, tpu.core_type = #tpu.core_type<tc>} {
    %c0 = arith.constant 0 : index
    %c0_0 = arith.constant 0 : index
    %c0_1 = arith.constant 0 : index
    %c0_2 = arith.constant 0 : index
    %0 = vector.load %arg0[%c0, %c0_0, %c0_1, %c0_2] : memref<8x8x2x4xf32, #tpu.memory_space<vmem>>, vector<8x8x2x4xf32>
    %cst = arith.constant 0.000000e+00 : f32
    %1 = vector.broadcast %cst : f32 to vector<8x8x2x4xf32>
    %2 = arith.maximumf %0, %1 : vector<8x8x2x4xf32>
    %c0_3 = arith.constant 0 : index
    %c0_4 = arith.constant 0 : index
    %c0_5 = arith.constant 0 : index
    %c0_6 = arith.constant 0 : index
    %3 = vector.load %arg1[%c0_3, %c0_4, %c0_5, %c0_6] : memref<8x8x2x4xf32, #tpu.memory_space<vmem>>, vector<8x8x2x4xf32>
    %cst_7 = arith.constant 0.000000e+00 : f32
    %4 = vector.broadcast %cst_7 : f32 to vector<8x8x2x4xf32>
    %5 = arith.maximumf %3, %4 : vector<8x8x2x4xf32>
    %c0_8 = arith.constant 0 : index
    %c0_9 = arith.constant 0 : index
    %c0_10 = arith.constant 0 : index
    %c0_11 = arith.constant 0 : index
    %6 = vector.load %arg2[%c0_8, %c0_9, %c0_10, %c0_11] : memref<8x8x2x4xf32, #tpu.memory_space<vmem>>, vector<8x8x2x4xf32>
    %cst_12 = arith.constant 0.000000e+00 : f32
    %7 = vector.broadcast %cst_12 : f32 to vector<8x8x2x4xf32>
    %8 = arith.maximumf %6, %7 : vector<8x8x2x4xf32>
    %c0_13 = arith.constant 0 : index
    %c0_14 = arith.constant 0 : index
    %c0_15 = arith.constant 0 : index
    %c0_16 = arith.constant 0 : index
    %9 = vector.load %arg3[%c0_13, %c0_14, %c0_15, %c0_16] : memref<8x8x2x4xf32, #tpu.memory_space<vmem>>, vector<8x8x2x4xf32>
    %cst_17 = arith.constant 0.000000e+00 : f32
    %10 = vector.broadcast %cst_17 : f32 to vector<8x8x2x4xf32>
    %11 = arith.maximumf %9, %10 : vector<8x8x2x4xf32>
    %c0_18 = arith.constant 0 : index
    %c0_19 = arith.constant 0 : index
    %c0_20 = arith.constant 0 : index
    %c0_21 = arith.constant 0 : index
    %12 = vector.load %arg4[%c0_18, %c0_19, %c0_20, %c0_21] : memref<3x3x1x4xf32, #tpu.memory_space<vmem>>, vector<3x3x1x4xf32>
    %cst_22 = arith.constant 0.000000e+00 : f32
    %13 = vector.broadcast %cst_22 : f32 to vector<8x8x2x4xf32>
    %cst_23 = arith.constant 0.000000e+00 : f32
    %14 = vector.broadcast %cst_23 : f32 to vector<1x8x2x4xf32>
    %15 = vector.extract_strided_slice %11 {offsets = [0, 0, 0, 0], sizes = [7, 8, 2, 4], strides = [1, 1, 1, 1]} : vector<8x8x2x4xf32> to vector<7x8x2x4xf32>
    %16 = tpu.concatenate %14, %15 in 0 : vector<1x8x2x4xf32>, vector<7x8x2x4xf32> -> vector<8x8x2x4xf32>
    %cst_24 = arith.constant 0.000000e+00 : f32
    %17 = vector.broadcast %cst_24 : f32 to vector<8x1x2x4xf32>
    %18 = vector.extract_strided_slice %16 {offsets = [0, 0, 0, 0], sizes = [8, 7, 2, 4], strides = [1, 1, 1, 1]} : vector<8x8x2x4xf32> to vector<8x7x2x4xf32>
    %19 = tpu.concatenate %17, %18 in 1 : vector<8x1x2x4xf32>, vector<8x7x2x4xf32> -> vector<8x8x2x4xf32>
    %20 = vector.extract_strided_slice %12 {offsets = [0, 0, 0, 0], sizes = [1, 1, 1, 4], strides = [1, 1, 1, 1]} : vector<3x3x1x4xf32> to vector<1x1x1x4xf32>
    %21 = vector.shape_cast %20 : vector<1x1x1x4xf32> to vector<1x4xf32>
    %22 = vector.shape_cast %21 : vector<1x4xf32> to vector<1x1x1x4xf32>
    %23 = vector.broadcast %22 : vector<1x1x1x4xf32> to vector<8x8x2x4xf32>
    %24 = arith.mulf %19, %23 : vector<8x8x2x4xf32>
    %25 = arith.addf %13, %24 : vector<8x8x2x4xf32>
    %cst_25 = arith.constant 0.000000e+00 : f32
    %26 = vector.broadcast %cst_25 : f32 to vector<1x8x2x4xf32>
    %27 = vector.extract_strided_slice %8 {offsets = [0, 0, 0, 0], sizes = [7, 8, 2, 4], strides = [1, 1, 1, 1]} : vector<8x8x2x4xf32> to vector<7x8x2x4xf32>
    %28 = tpu.concatenate %26, %27 in 0 : vector<1x8x2x4xf32>, vector<7x8x2x4xf32> -> vector<8x8x2x4xf32>
    %29 = vector.extract_strided_slice %12 {offsets = [0, 1, 0, 0], sizes = [1, 1, 1, 4], strides = [1, 1, 1, 1]} : vector<3x3x1x4xf32> to vector<1x1x1x4xf32>
    %30 = vector.shape_cast %29 : vector<1x1x1x4xf32> to vector<1x4xf32>
    %31 = vector.shape_cast %30 : vector<1x4xf32> to vector<1x1x1x4xf32>
    %32 = vector.broadcast %31 : vector<1x1x1x4xf32> to vector<8x8x2x4xf32>
    %33 = arith.mulf %28, %32 : vector<8x8x2x4xf32>
    %34 = arith.addf %25, %33 : vector<8x8x2x4xf32>
    %cst_26 = arith.constant 0.000000e+00 : f32
    %35 = vector.broadcast %cst_26 : f32 to vector<1x8x2x4xf32>
    %36 = vector.extract_strided_slice %11 {offsets = [0, 0, 0, 0], sizes = [7, 8, 2, 4], strides = [1, 1, 1, 1]} : vector<8x8x2x4xf32> to vector<7x8x2x4xf32>
    %37 = tpu.concatenate %35, %36 in 0 : vector<1x8x2x4xf32>, vector<7x8x2x4xf32> -> vector<8x8x2x4xf32>
    %38 = vector.extract_strided_slice %12 {offsets = [0, 2, 0, 0], sizes = [1, 1, 1, 4], strides = [1, 1, 1, 1]} : vector<3x3x1x4xf32> to vector<1x1x1x4xf32>
    %39 = vector.shape_cast %38 : vector<1x1x1x4xf32> to vector<1x4xf32>
    %40 = vector.shape_cast %39 : vector<1x4xf32> to vector<1x1x1x4xf32>
    %41 = vector.broadcast %40 : vector<1x1x1x4xf32> to vector<8x8x2x4xf32>
    %42 = arith.mulf %37, %41 : vector<8x8x2x4xf32>
    %43 = arith.addf %34, %42 : vector<8x8x2x4xf32>
    %cst_27 = arith.constant 0.000000e+00 : f32
    %44 = vector.broadcast %cst_27 : f32 to vector<8x1x2x4xf32>
    %45 = vector.extract_strided_slice %5 {offsets = [0, 0, 0, 0], sizes = [8, 7, 2, 4], strides = [1, 1, 1, 1]} : vector<8x8x2x4xf32> to vector<8x7x2x4xf32>
    %46 = tpu.concatenate %44, %45 in 1 : vector<8x1x2x4xf32>, vector<8x7x2x4xf32> -> vector<8x8x2x4xf32>
    %47 = vector.extract_strided_slice %12 {offsets = [1, 0, 0, 0], sizes = [1, 1, 1, 4], strides = [1, 1, 1, 1]} : vector<3x3x1x4xf32> to vector<1x1x1x4xf32>
    %48 = vector.shape_cast %47 : vector<1x1x1x4xf32> to vector<1x4xf32>
    %49 = vector.shape_cast %48 : vector<1x4xf32> to vector<1x1x1x4xf32>
    %50 = vector.broadcast %49 : vector<1x1x1x4xf32> to vector<8x8x2x4xf32>
    %51 = arith.mulf %46, %50 : vector<8x8x2x4xf32>
    %52 = arith.addf %43, %51 : vector<8x8x2x4xf32>
    %53 = vector.extract_strided_slice %12 {offsets = [1, 1, 0, 0], sizes = [1, 1, 1, 4], strides = [1, 1, 1, 1]} : vector<3x3x1x4xf32> to vector<1x1x1x4xf32>
    %54 = vector.shape_cast %53 : vector<1x1x1x4xf32> to vector<1x4xf32>
    %55 = vector.shape_cast %54 : vector<1x4xf32> to vector<1x1x1x4xf32>
    %56 = vector.broadcast %55 : vector<1x1x1x4xf32> to vector<8x8x2x4xf32>
    %57 = arith.mulf %2, %56 : vector<8x8x2x4xf32>
    %58 = arith.addf %52, %57 : vector<8x8x2x4xf32>
    %59 = vector.extract_strided_slice %12 {offsets = [1, 2, 0, 0], sizes = [1, 1, 1, 4], strides = [1, 1, 1, 1]} : vector<3x3x1x4xf32> to vector<1x1x1x4xf32>
    %60 = vector.shape_cast %59 : vector<1x1x1x4xf32> to vector<1x4xf32>
    %61 = vector.shape_cast %60 : vector<1x4xf32> to vector<1x1x1x4xf32>
    %62 = vector.broadcast %61 : vector<1x1x1x4xf32> to vector<8x8x2x4xf32>
    %63 = arith.mulf %5, %62 : vector<8x8x2x4xf32>
    %64 = arith.addf %58, %63 : vector<8x8x2x4xf32>
    %cst_28 = arith.constant 0.000000e+00 : f32
    %65 = vector.broadcast %cst_28 : f32 to vector<8x1x2x4xf32>
    %66 = vector.extract_strided_slice %11 {offsets = [0, 0, 0, 0], sizes = [8, 7, 2, 4], strides = [1, 1, 1, 1]} : vector<8x8x2x4xf32> to vector<8x7x2x4xf32>
    %67 = tpu.concatenate %65, %66 in 1 : vector<8x1x2x4xf32>, vector<8x7x2x4xf32> -> vector<8x8x2x4xf32>
    %68 = vector.extract_strided_slice %12 {offsets = [2, 0, 0, 0], sizes = [1, 1, 1, 4], strides = [1, 1, 1, 1]} : vector<3x3x1x4xf32> to vector<1x1x1x4xf32>
    %69 = vector.shape_cast %68 : vector<1x1x1x4xf32> to vector<1x4xf32>
    %70 = vector.shape_cast %69 : vector<1x4xf32> to vector<1x1x1x4xf32>
    %71 = vector.broadcast %70 : vector<1x1x1x4xf32> to vector<8x8x2x4xf32>
    %72 = arith.mulf %67, %71 : vector<8x8x2x4xf32>
    %73 = arith.addf %64, %72 : vector<8x8x2x4xf32>
    %74 = vector.extract_strided_slice %12 {offsets = [2, 1, 0, 0], sizes = [1, 1, 1, 4], strides = [1, 1, 1, 1]} : vector<3x3x1x4xf32> to vector<1x1x1x4xf32>
    %75 = vector.shape_cast %74 : vector<1x1x1x4xf32> to vector<1x4xf32>
    %76 = vector.shape_cast %75 : vector<1x4xf32> to vector<1x1x1x4xf32>
    %77 = vector.broadcast %76 : vector<1x1x1x4xf32> to vector<8x8x2x4xf32>
    %78 = arith.mulf %8, %77 : vector<8x8x2x4xf32>
    %79 = arith.addf %73, %78 : vector<8x8x2x4xf32>
    %80 = vector.extract_strided_slice %12 {offsets = [2, 2, 0, 0], sizes = [1, 1, 1, 4], strides = [1, 1, 1, 1]} : vector<3x3x1x4xf32> to vector<1x1x1x4xf32>
    %81 = vector.shape_cast %80 : vector<1x1x1x4xf32> to vector<1x4xf32>
    %82 = vector.shape_cast %81 : vector<1x4xf32> to vector<1x1x1x4xf32>
    %83 = vector.broadcast %82 : vector<1x1x1x4xf32> to vector<8x8x2x4xf32>
    %84 = arith.mulf %11, %83 : vector<8x8x2x4xf32>
    %85 = arith.addf %79, %84 : vector<8x8x2x4xf32>
    %c0_29 = arith.constant 0 : index
    %c0_30 = arith.constant 0 : index
    %86 = vector.load %arg5[%c0_29, %c0_30] : memref<1x4xf32, #tpu.memory_space<vmem>>, vector<1x4xf32>
    %87 = vector.shape_cast %86 : vector<1x4xf32> to vector<1x1x1x4xf32>
    %88 = vector.broadcast %87 : vector<1x1x1x4xf32> to vector<8x8x2x4xf32>
    %89 = arith.addf %85, %88 : vector<8x8x2x4xf32>
    %c0_31 = arith.constant 0 : index
    %c0_32 = arith.constant 0 : index
    %c0_33 = arith.constant 0 : index
    %90 = vector.load %arg6[%c0_31, %c0_32, %c0_33] : memref<4x1x8xf32, #tpu.memory_space<vmem>>, vector<4x1x8xf32>
    %cst_34 = arith.constant 0.000000e+00 : f32
    %91 = vector.broadcast %cst_34 : f32 to vector<8x8x2x8xf32>
    %92 = vector.extract_strided_slice %89 {offsets = [0, 0, 0, 0], sizes = [8, 8, 2, 1], strides = [1, 1, 1, 1]} : vector<8x8x2x4xf32> to vector<8x8x2x1xf32>
    %93 = vector.extract_strided_slice %90 {offsets = [0, 0, 0], sizes = [1, 1, 8], strides = [1, 1, 1]} : vector<4x1x8xf32> to vector<1x1x8xf32>
    %94 = vector.shape_cast %93 : vector<1x1x8xf32> to vector<1x8xf32>
    %95 = vector.shape_cast %94 : vector<1x8xf32> to vector<1x1x1x8xf32>
    %96 = vector.broadcast %92 : vector<8x8x2x1xf32> to vector<8x8x2x8xf32>
    %97 = vector.broadcast %95 : vector<1x1x1x8xf32> to vector<8x8x2x8xf32>
    %98 = arith.mulf %96, %97 : vector<8x8x2x8xf32>
    %99 = arith.addf %91, %98 : vector<8x8x2x8xf32>
    %100 = vector.extract_strided_slice %89 {offsets = [0, 0, 0, 1], sizes = [8, 8, 2, 1], strides = [1, 1, 1, 1]} : vector<8x8x2x4xf32> to vector<8x8x2x1xf32>
    %101 = vector.extract_strided_slice %90 {offsets = [1, 0, 0], sizes = [1, 1, 8], strides = [1, 1, 1]} : vector<4x1x8xf32> to vector<1x1x8xf32>
    %102 = vector.shape_cast %101 : vector<1x1x8xf32> to vector<1x8xf32>
    %103 = vector.shape_cast %102 : vector<1x8xf32> to vector<1x1x1x8xf32>
    %104 = vector.broadcast %100 : vector<8x8x2x1xf32> to vector<8x8x2x8xf32>
    %105 = vector.broadcast %103 : vector<1x1x1x8xf32> to vector<8x8x2x8xf32>
    %106 = arith.mulf %104, %105 : vector<8x8x2x8xf32>
    %107 = arith.addf %99, %106 : vector<8x8x2x8xf32>
    %108 = vector.extract_strided_slice %89 {offsets = [0, 0, 0, 2], sizes = [8, 8, 2, 1], strides = [1, 1, 1, 1]} : vector<8x8x2x4xf32> to vector<8x8x2x1xf32>
    %109 = vector.extract_strided_slice %90 {offsets = [2, 0, 0], sizes = [1, 1, 8], strides = [1, 1, 1]} : vector<4x1x8xf32> to vector<1x1x8xf32>
    %110 = vector.shape_cast %109 : vector<1x1x8xf32> to vector<1x8xf32>
    %111 = vector.shape_cast %110 : vector<1x8xf32> to vector<1x1x1x8xf32>
    %112 = vector.broadcast %108 : vector<8x8x2x1xf32> to vector<8x8x2x8xf32>
    %113 = vector.broadcast %111 : vector<1x1x1x8xf32> to vector<8x8x2x8xf32>
    %114 = arith.mulf %112, %113 : vector<8x8x2x8xf32>
    %115 = arith.addf %107, %114 : vector<8x8x2x8xf32>
    %116 = vector.extract_strided_slice %89 {offsets = [0, 0, 0, 3], sizes = [8, 8, 2, 1], strides = [1, 1, 1, 1]} : vector<8x8x2x4xf32> to vector<8x8x2x1xf32>
    %117 = vector.extract_strided_slice %90 {offsets = [3, 0, 0], sizes = [1, 1, 8], strides = [1, 1, 1]} : vector<4x1x8xf32> to vector<1x1x8xf32>
    %118 = vector.shape_cast %117 : vector<1x1x8xf32> to vector<1x8xf32>
    %119 = vector.shape_cast %118 : vector<1x8xf32> to vector<1x1x1x8xf32>
    %120 = vector.broadcast %116 : vector<8x8x2x1xf32> to vector<8x8x2x8xf32>
    %121 = vector.broadcast %119 : vector<1x1x1x8xf32> to vector<8x8x2x8xf32>
    %122 = arith.mulf %120, %121 : vector<8x8x2x8xf32>
    %123 = arith.addf %115, %122 : vector<8x8x2x8xf32>
    %c0_35 = arith.constant 0 : index
    %c0_36 = arith.constant 0 : index
    %124 = vector.load %arg7[%c0_35, %c0_36] : memref<1x8xf32, #tpu.memory_space<vmem>>, vector<1x8xf32>
    %125 = vector.shape_cast %124 : vector<1x8xf32> to vector<1x1x1x8xf32>
    %126 = vector.broadcast %125 : vector<1x1x1x8xf32> to vector<8x8x2x8xf32>
    %127 = arith.addf %123, %126 : vector<8x8x2x8xf32>
    %cst_37 = arith.constant dense<0.000000e+00> : vector<8xf32>
    %128 = vector.multi_reduction <add>, %127, %cst_37 [0, 1, 2] : vector<8x8x2x8xf32> to vector<8xf32>
    %129 = vector.shape_cast %128 : vector<8xf32> to vector<1x1x1x8xf32>
    %cst_38 = arith.constant 1.280000e+02 : f32
    %130 = vector.broadcast %cst_38 : f32 to vector<1x1x1x8xf32>
    %131 = arith.divf %129, %130 : vector<1x1x1x8xf32>
    %132 = vector.broadcast %131 : vector<1x1x1x8xf32> to vector<8x8x2x8xf32>
    %133 = arith.subf %127, %132 : vector<8x8x2x8xf32>
    %134 = arith.mulf %133, %133 : vector<8x8x2x8xf32>
    %cst_39 = arith.constant dense<0.000000e+00> : vector<8xf32>
    %135 = vector.multi_reduction <add>, %134, %cst_39 [0, 1, 2] : vector<8x8x2x8xf32> to vector<8xf32>
    %136 = vector.shape_cast %135 : vector<8xf32> to vector<1x1x1x8xf32>
    %cst_40 = arith.constant 1.280000e+02 : f32
    %137 = vector.broadcast %cst_40 : f32 to vector<1x1x1x8xf32>
    %138 = arith.divf %136, %137 : vector<1x1x1x8xf32>
    %139 = vector.broadcast %131 : vector<1x1x1x8xf32> to vector<8x8x2x8xf32>
    %140 = arith.subf %127, %139 : vector<8x8x2x8xf32>
    %cst_41 = arith.constant 9.99999974E-6 : f32
    %141 = vector.broadcast %cst_41 : f32 to vector<1x1x1x8xf32>
    %142 = arith.addf %138, %141 : vector<1x1x1x8xf32>
    %143 = math.rsqrt %142 : vector<1x1x1x8xf32>
    %144 = vector.broadcast %143 : vector<1x1x1x8xf32> to vector<8x8x2x8xf32>
    %145 = arith.mulf %140, %144 : vector<8x8x2x8xf32>
    %c0_42 = arith.constant 0 : index
    %c0_43 = arith.constant 0 : index
    %146 = vector.load %arg8[%c0_42, %c0_43] : memref<1x8xf32, #tpu.memory_space<vmem>>, vector<1x8xf32>
    %147 = vector.shape_cast %146 : vector<1x8xf32> to vector<1x1x1x8xf32>
    %148 = vector.broadcast %147 : vector<1x1x1x8xf32> to vector<8x8x2x8xf32>
    %149 = arith.mulf %145, %148 : vector<8x8x2x8xf32>
    %c0_44 = arith.constant 0 : index
    %c0_45 = arith.constant 0 : index
    %150 = vector.load %arg9[%c0_44, %c0_45] : memref<1x8xf32, #tpu.memory_space<vmem>>, vector<1x8xf32>
    %151 = vector.shape_cast %150 : vector<1x8xf32> to vector<1x1x1x8xf32>
    %152 = vector.broadcast %151 : vector<1x1x1x8xf32> to vector<8x8x2x8xf32>
    %153 = arith.addf %149, %152 : vector<8x8x2x8xf32>
    %c0_46 = arith.constant 0 : index
    %c0_47 = arith.constant 0 : index
    %c0_48 = arith.constant 0 : index
    %c0_49 = arith.constant 0 : index
    %154 = vector.load %arg10[%c0_46, %c0_47, %c0_48, %c0_49] : memref<8x8x2x8xf32, #tpu.memory_space<vmem>>, vector<8x8x2x8xf32>
    tpu.vector_store %arg10[%c0_46, %c0_47, %c0_48, %c0_49], %153 {strides = array<i32>} : memref<8x8x2x8xf32, #tpu.memory_space<vmem>>, vector<8x8x2x8xf32>,
    return
  }
}

</mosaic_0001>

<llo_original>
// kernel: tpu_custom_call.1
$region0: #{tpu_custom_call.1}
  #allocation0 [shape = 'u32[]', space=smem, size = 0x4, offset = 0x4, fixed_abs, tag = 'smem constant byte address 0x4 - core index']
  #allocation1 [shape = 'u32[144,128]{1,0:T(1,128)}', space=vmem, size = 0x12000, scoped, tag = 'internal scratch']
  %s0 = inlined_call_operand.vmem [shape: f32[8,8,2,4], index: 0, kind: input, shape index: {}]
  %s1 = inlined_call_operand.vmem [shape: f32[8,8,2,4], index: 1, kind: input, shape index: {}]
  %s2 = inlined_call_operand.vmem [shape: f32[8,8,2,4], index: 2, kind: input, shape index: {}]
  %s3 = inlined_call_operand.vmem [shape: f32[8,8,2,4], index: 3, kind: input, shape index: {}]
  %s4 = inlined_call_operand.vmem [shape: f32[3,3,1,4], index: 4, kind: input, shape index: {}]
  %s5 = inlined_call_operand.vmem [shape: f32[1,4], index: 5, kind: input, shape index: {}]
  %s6 = inlined_call_operand.vmem [shape: f32[4,1,8], index: 6, kind: input, shape index: {}]
  %s7 = inlined_call_operand.vmem [shape: f32[1,8], index: 7, kind: input, shape index: {}]
  %s8 = inlined_call_operand.vmem [shape: f32[1,8], index: 8, kind: input, shape index: {}]
  %s9 = inlined_call_operand.vmem [shape: f32[1,8], index: 9, kind: input, shape index: {}]
  %s10 = inlined_call_operand.hbm [shape: f32[8,8,2,8], index: 10, kind: output, shape index: {}]
  %s11 = sld [smem:[#allocation0]]
  $region50: #{tpu_custom_call.1} parent=0
    _
  %s13 = ssub.s32 1, %s11
  %s14 = scalar_select 0, %s13, %s11
  $region1: #{tpu_custom_call.1} parent=0
    #allocation2 [shape = 'u8[65536]{0}', space=vmem, size = 0x10000, scoped, tag = 'output window, operand 0, single buffered']
    #allocation3 [shape = 's32[1]{0}', space=sflag, size = 0x4, scoped, tag = 'scoped memory for tpu_custom_call.1']
    %15 = vsyncpa [#allocation3], 0
    // Predicated region
    $region2: #{tpu_custom_call.1} parent=1 // pred_check
      _
    $region3: #{tpu_custom_call.1} parent=1 // pred_check_branch
      %17 = sbr.rel (0) target = $region5
    $region4: #{tpu_custom_call.1} parent=1 // pred_region
      _
    $region5: #{tpu_custom_call.1} parent=1 // pred_fallthru
      _
    // Predicated region
    $region6: #{tpu_custom_call.1} parent=1 // pred_check
      _
    $region7: #{tpu_custom_call.1} parent=1 // pred_check_branch
      %19 = sbr.rel (0) target = $region9
    $region8: #{tpu_custom_call.1} parent=1 // pred_region
      _
    $region9: #{tpu_custom_call.1} parent=1 // pred_fallthru
      _
    // Predicated region
    $region10: #{tpu_custom_call.1} parent=1 // pred_check
      _
    $region11: #{tpu_custom_call.1} parent=1 // pred_check_branch
      %21 = sbr.rel (0) target = $region13
    $region12: #{tpu_custom_call.1} parent=1 // pred_region
      _
    $region13: #{tpu_custom_call.1} parent=1 // pred_fallthru
      _
    // Predicated region
    $region14: #{tpu_custom_call.1} parent=1 // pred_check
      _
    $region15: #{tpu_custom_call.1} parent=1 // pred_check_branch
      %23 = sbr.rel (0) target = $region17
    $region16: #{tpu_custom_call.1} parent=1 // pred_region
      _
    $region17: #{tpu_custom_call.1} parent=1 // pred_fallthru
      _
    // Predicated region
    $region18: #{tpu_custom_call.1} parent=1 // pred_check
      _
    $region19: #{tpu_custom_call.1} parent=1 // pred_check_branch
      %25 = sbr.rel (0) target = $region21
    $region20: #{tpu_custom_call.1} parent=1 // pred_region
      _
    $region21: #{tpu_custom_call.1} parent=1 // pred_fallthru
      _
    // Predicated region
    $region22: #{tpu_custom_call.1} parent=1 // pred_check
      _
    $region23: #{tpu_custom_call.1} parent=1 // pred_check_branch
      %27 = sbr.rel (0) target = $region25
    $region24: #{tpu_custom_call.1} parent=1 // pred_region
      _
    $region25: #{tpu_custom_call.1} parent=1 // pred_fallthru
      _
    // Predicated region
    $region26: #{tpu_custom_call.1} parent=1 // pred_check
      _
    $region27: #{tpu_custom_call.1} parent=1 // pred_check_branch
      %29 = sbr.rel (0) target = $region29
    $region28: #{tpu_custom_call.1} parent=1 // pred_region
      _
    $region29: #{tpu_custom_call.1} parent=1 // pred_fallthru
      _
    // Predicated region
    $region30: #{tpu_custom_call.1} parent=1 // pred_check
      _
    $region31: #{tpu_custom_call.1} parent=1 // pred_check_branch
      %31 = sbr.rel (0) target = $region33
    $region32: #{tpu_custom_call.1} parent=1 // pred_region
      _
    $region33: #{tpu_custom_call.1} parent=1 // pred_fallthru
      _
    // Predicated region
    $region34: #{tpu_custom_call.1} parent=1 // pred_check
      _
    $region35: #{tpu_custom_call.1} parent=1 // pred_check_branch
      %33 = sbr.rel (0) target = $region37
    $region36: #{tpu_custom_call.1} parent=1 // pred_region
      _
    $region37: #{tpu_custom_call.1} parent=1 // pred_fallthru
      _
    // Predicated region
    $region38: #{tpu_custom_call.1} parent=1 // pred_check
      _
    $region39: #{tpu_custom_call.1} parent=1 // pred_check_branch
      %35 = sbr.rel (0) target = $region41
    $region40: #{tpu_custom_call.1} parent=1 // pred_region
      _
    $region41: #{tpu_custom_call.1} parent=1 // pred_fallthru
      _
    %v36 = vld [vmem:[%s0] sm:$0x3]
    %v37 = vld [vmem:[%s0 + $0x2] sm:$0x3]
    %v38 = vld [vmem:[%s0 + $0x4] sm:$0x3]
    %v39 = vld [vmem:[%s0 + $0x6] sm:$0x3]
    %v40 = vld [vmem:[%s0 + $0x8] sm:$0x3]
    %v41 = vld [vmem:[%s0 + $0xa] sm:$0x3]
    %v42 = vld [vmem:[%s0 + $0xc] sm:$0x3]
    %v43 = vld [vmem:[%s0 + $0xe] sm:$0x3]
    %v44 = vld [vmem:[%s0 + $0x10] sm:$0x3]
    %v45 = vld [vmem:[%s0 + $0x12] sm:$0x3]
    %v46 = vld [vmem:[%s0 + $0x14] sm:$0x3]
    %v47 = vld [vmem:[%s0 + $0x16] sm:$0x3]
    %v48 = vld [vmem:[%s0 + $0x18] sm:$0x3]
    %v49 = vld [vmem:[%s0 + $0x1a] sm:$0x3]
    %v50 = vld [vmem:[%s0 + $0x1c] sm:$0x3]
    %v51 = vld [vmem:[%s0 + $0x1e] sm:$0x3]
    %v52 = vld [vmem:[%s0 + $0x20] sm:$0x3]
    %v53 = vld [vmem:[%s0 + $0x22] sm:$0x3]
    %v54 = vld [vmem:[%s0 + $0x24] sm:$0x3]
    %v55 = vld [vmem:[%s0 + $0x26] sm:$0x3]
    %v56 = vld [vmem:[%s0 + $0x28] sm:$0x3]
    %v57 = vld [vmem:[%s0 + $0x2a] sm:$0x3]
    %v58 = vld [vmem:[%s0 + $0x2c] sm:$0x3]
    %v59 = vld [vmem:[%s0 + $0x2e] sm:$0x3]
    %v60 = vld [vmem:[%s0 + $0x30] sm:$0x3]
    %v61 = vld [vmem:[%s0 + $0x32] sm:$0x3]
    %v62 = vld [vmem:[%s0 + $0x34] sm:$0x3]
    %v63 = vld [vmem:[%s0 + $0x36] sm:$0x3]
    %v64 = vld [vmem:[%s0 + $0x38] sm:$0x3]
    %v65 = vld [vmem:[%s0 + $0x3a] sm:$0x3]
    %v66 = vld [vmem:[%s0 + $0x3c] sm:$0x3]
    %v67 = vld [vmem:[%s0 + $0x3e] sm:$0x3]
    %v68 = vld [vmem:[%s0 + $0x40] sm:$0x3]
    %v69 = vld [vmem:[%s0 + $0x42] sm:$0x3]
    %v70 = vld [vmem:[%s0 + $0x44] sm:$0x3]
    %v71 = vld [vmem:[%s0 + $0x46] sm:$0x3]
    %v72 = vld [vmem:[%s0 + $0x48] sm:$0x3]
    %v73 = vld [vmem:[%s0 + $0x4a] sm:$0x3]
    %v74 = vld [vmem:[%s0 + $0x4c] sm:$0x3]
    %v75 = vld [vmem:[%s0 + $0x4e] sm:$0x3]
    %v76 = vld [vmem:[%s0 + $0x50] sm:$0x3]
    %v77 = vld [vmem:[%s0 + $0x52] sm:$0x3]
    %v78 = vld [vmem:[%s0 + $0x54] sm:$0x3]
    %v79 = vld [vmem:[%s0 + $0x56] sm:$0x3]
    %v80 = vld [vmem:[%s0 + $0x58] sm:$0x3]
    %v81 = vld [vmem:[%s0 + $0x5a] sm:$0x3]
    %v82 = vld [vmem:[%s0 + $0x5c] sm:$0x3]
    %v83 = vld [vmem:[%s0 + $0x5e] sm:$0x3]
    %v84 = vld [vmem:[%s0 + $0x60] sm:$0x3]
    %v85 = vld [vmem:[%s0 + $0x62] sm:$0x3]
    %v86 = vld [vmem:[%s0 + $0x64] sm:$0x3]
    %v87 = vld [vmem:[%s0 + $0x66] sm:$0x3]
    %v88 = vld [vmem:[%s0 + $0x68] sm:$0x3]
    %v89 = vld [vmem:[%s0 + $0x6a] sm:$0x3]
    %v90 = vld [vmem:[%s0 + $0x6c] sm:$0x3]
    %v91 = vld [vmem:[%s0 + $0x6e] sm:$0x3]
    %v92 = vld [vmem:[%s0 + $0x70] sm:$0x3]
    %v93 = vld [vmem:[%s0 + $0x72] sm:$0x3]
    %v94 = vld [vmem:[%s0 + $0x74] sm:$0x3]
    %v95 = vld [vmem:[%s0 + $0x76] sm:$0x3]
    %v96 = vld [vmem:[%s0 + $0x78] sm:$0x3]
    %v97 = vld [vmem:[%s0 + $0x7a] sm:$0x3]
    %v98 = vld [vmem:[%s0 + $0x7c] sm:$0x3]
    %v99 = vld [vmem:[%s0 + $0x7e] sm:$0x3]
    %v100 = vmax.f32 %v36, 0.0
    %v101 = vmax.f32 %v37, 0.0
    %v102 = vmax.f32 %v38, 0.0
    %v103 = vmax.f32 %v39, 0.0
    %v104 = vmax.f32 %v40, 0.0
    %v105 = vmax.f32 %v41, 0.0
    %v106 = vmax.f32 %v42, 0.0
    %v107 = vmax.f32 %v43, 0.0
    %v108 = vmax.f32 %v44, 0.0
    %v109 = vmax.f32 %v45, 0.0
    %v110 = vmax.f32 %v46, 0.0
    %v111 = vmax.f32 %v47, 0.0
    %v112 = vmax.f32 %v48, 0.0
    %v113 = vmax.f32 %v49, 0.0
    %v114 = vmax.f32 %v50, 0.0
    %v115 = vmax.f32 %v51, 0.0
    %v116 = vmax.f32 %v52, 0.0
    %v117 = vmax.f32 %v53, 0.0
    %v118 = vmax.f32 %v54, 0.0
    %v119 = vmax.f32 %v55, 0.0
    %v120 = vmax.f32 %v56, 0.0
    %v121 = vmax.f32 %v57, 0.0
    %v122 = vmax.f32 %v58, 0.0
    %v123 = vmax.f32 %v59, 0.0
    %v124 = vmax.f32 %v60, 0.0
    %v125 = vmax.f32 %v61, 0.0
    %v126 = vmax.f32 %v62, 0.0
    %v127 = vmax.f32 %v63, 0.0
    %v128 = vmax.f32 %v64, 0.0
    %v129 = vmax.f32 %v65, 0.0
    %v130 = vmax.f32 %v66, 0.0
    %v131 = vmax.f32 %v67, 0.0
    %v132 = vmax.f32 %v68, 0.0
    %v133 = vmax.f32 %v69, 0.0
    %v134 = vmax.f32 %v70, 0.0
    %v135 = vmax.f32 %v71, 0.0
    %v136 = vmax.f32 %v72, 0.0
    %v137 = vmax.f32 %v73, 0.0
    %v138 = vmax.f32 %v74, 0.0
    %v139 = vmax.f32 %v75, 0.0
    %v140 = vmax.f32 %v76, 0.0
    %v141 = vmax.f32 %v77, 0.0
    %v142 = vmax.f32 %v78, 0.0
    %v143 = vmax.f32 %v79, 0.0
    %v144 = vmax.f32 %v80, 0.0
    %v145 = vmax.f32 %v81, 0.0
    %v146 = vmax.f32 %v82, 0.0
    %v147 = vmax.f32 %v83, 0.0
    %v148 = vmax.f32 %v84, 0.0
    %v149 = vmax.f32 %v85, 0.0
    %v150 = vmax.f32 %v86, 0.0
    %v151 = vmax.f32 %v87, 0.0
    %v152 = vmax.f32 %v88, 0.0
    %v153 = vmax.f32 %v89, 0.0
    %v154 = vmax.f32 %v90, 0.0
    %v155 = vmax.f32 %v91, 0.0
    %v156 = vmax.f32 %v92, 0.0
    %v157 = vmax.f32 %v93, 0.0
    %v158 = vmax.f32 %v94, 0.0
    %v159 = vmax.f32 %v95, 0.0
    %v160 = vmax.f32 %v96, 0.0
    %v161 = vmax.f32 %v97, 0.0
    %v162 = vmax.f32 %v98, 0.0
    %v163 = vmax.f32 %v99, 0.0
    %v164 = vld [vmem:[%s1] sm:$0x3]
    %v165 = vld [vmem:[%s1 + $0x2] sm:$0x3]
    %v166 = vld [vmem:[%s1 + $0x4] sm:$0x3]
    %v167 = vld [vmem:[%s1 + $0x6] sm:$0x3]
    %v168 = vld [vmem:[%s1 + $0x8] sm:$0x3]
    %v169 = vld [vmem:[%s1 + $0xa] sm:$0x3]
    %v170 = vld [vmem:[%s1 + $0xc] sm:$0x3]
    %v171 = vld [vmem:[%s1 + $0xe] sm:$0x3]
    %v172 = vld [vmem:[%s1 + $0x10] sm:$0x3]
    %v173 = vld [vmem:[%s1 + $0x12] sm:$0x3]
    %v174 = vld [vmem:[%s1 + $0x14] sm:$0x3]
    %v175 = vld [vmem:[%s1 + $0x16] sm:$0x3]
    %v176 = vld [vmem:[%s1 + $0x18] sm:$0x3]
    %v177 = vld [vmem:[%s1 + $0x1a] sm:$0x3]
    %v178 = vld [vmem:[%s1 + $0x1c] sm:$0x3]
    %v179 = vld [vmem:[%s1 + $0x1e] sm:$0x3]
    %v180 = vld [vmem:[%s1 + $0x20] sm:$0x3]
    %v181 = vld [vmem:[%s1 + $0x22] sm:$0x3]
    %v182 = vld [vmem:[%s1 + $0x24] sm:$0x3]
    %v183 = vld [vmem:[%s1 + $0x26] sm:$0x3]
    %v184 = vld [vmem:[%s1 + $0x28] sm:$0x3]
    %v185 = vld [vmem:[%s1 + $0x2a] sm:$0x3]
    %v186 = vld [vmem:[%s1 + $0x2c] sm:$0x3]
    %v187 = vld [vmem:[%s1 + $0x2e] sm:$0x3]
    %v188 = vld [vmem:[%s1 + $0x30] sm:$0x3]
    %v189 = vld [vmem:[%s1 + $0x32] sm:$0x3]
    %v190 = vld [vmem:[%s1 + $0x34] sm:$0x3]
    %v191 = vld [vmem:[%s1 + $0x36] sm:$0x3]
    %v192 = vld [vmem:[%s1 + $0x38] sm:$0x3]
    %v193 = vld [vmem:[%s1 + $0x3a] sm:$0x3]
    %v194 = vld [vmem:[%s1 + $0x3c] sm:$0x3]
    %v195 = vld [vmem:[%s1 + $0x3e] sm:$0x3]
    %v196 = vld [vmem:[%s1 + $0x40] sm:$0x3]
    %v197 = vld [vmem:[%s1 + $0x42] sm:$0x3]
    %v198 = vld [vmem:[%s1 + $0x44] sm:$0x3]
    %v199 = vld [vmem:[%s1 + $0x46] sm:$0x3]
    %v200 = vld [vmem:[%s1 + $0x48] sm:$0x3]
    %v201 = vld [vmem:[%s1 + $0x4a] sm:$0x3]
    %v202 = vld [vmem:[%s1 + $0x4c] sm:$0x3]
    %v203 = vld [vmem:[%s1 + $0x4e] sm:$0x3]
    %v204 = vld [vmem:[%s1 + $0x50] sm:$0x3]
    %v205 = vld [vmem:[%s1 + $0x52] sm:$0x3]
    %v206 = vld [vmem:[%s1 + $0x54] sm:$0x3]
    %v207 = vld [vmem:[%s1 + $0x56] sm:$0x3]
    %v208 = vld [vmem:[%s1 + $0x58] sm:$0x3]
    %v209 = vld [vmem:[%s1 + $0x5a] sm:$0x3]
    %v210 = vld [vmem:[%s1 + $0x5c] sm:$0x3]
    %v211 = vld [vmem:[%s1 + $0x5e] sm:$0x3]
    %v212 = vld [vmem:[%s1 + $0x60] sm:$0x3]
    %v213 = vld [vmem:[%s1 + $0x62] sm:$0x3]
    %v214 = vld [vmem:[%s1 + $0x64] sm:$0x3]
    %v215 = vld [vmem:[%s1 + $0x66] sm:$0x3]
    %v216 = vld [vmem:[%s1 + $0x68] sm:$0x3]
    %v217 = vld [vmem:[%s1 + $0x6a] sm:$0x3]
    %v218 = vld [vmem:[%s1 + $0x6c] sm:$0x3]
    %v219 = vld [vmem:[%s1 + $0x6e] sm:$0x3]
    %v220 = vld [vmem:[%s1 + $0x70] sm:$0x3]
    %v221 = vld [vmem:[%s1 + $0x72] sm:$0x3]
    %v222 = vld [vmem:[%s1 + $0x74] sm:$0x3]
    %v223 = vld [vmem:[%s1 + $0x76] sm:$0x3]
    %v224 = vld [vmem:[%s1 + $0x78] sm:$0x3]
    %v225 = vld [vmem:[%s1 + $0x7a] sm:$0x3]
    %v226 = vld [vmem:[%s1 + $0x7c] sm:$0x3]
    %v227 = vld [vmem:[%s1 + $0x7e] sm:$0x3]
    %v228 = vmax.f32 %v164, 0.0
    %v229 = vmax.f32 %v165, 0.0
    %v230 = vmax.f32 %v166, 0.0
    %v231 = vmax.f32 %v167, 0.0
    %v232 = vmax.f32 %v168, 0.0
    %v233 = vmax.f32 %v169, 0.0
    %v234 = vmax.f32 %v170, 0.0
    %v235 = vmax.f32 %v171, 0.0
    %v236 = vmax.f32 %v172, 0.0
    %v237 = vmax.f32 %v173, 0.0
    %v238 = vmax.f32 %v174, 0.0
    %v239 = vmax.f32 %v175, 0.0
    %v240 = vmax.f32 %v176, 0.0
    %v241 = vmax.f32 %v177, 0.0
    %v242 = vmax.f32 %v178, 0.0
    %v243 = vmax.f32 %v179, 0.0
    %v244 = vmax.f32 %v180, 0.0
    %v245 = vmax.f32 %v181, 0.0
    %v246 = vmax.f32 %v182, 0.0
    %v247 = vmax.f32 %v183, 0.0
    %v248 = vmax.f32 %v184, 0.0
    %v249 = vmax.f32 %v185, 0.0
    %v250 = vmax.f32 %v186, 0.0
    %v251 = vmax.f32 %v187, 0.0
    %v252 = vmax.f32 %v188, 0.0
    %v253 = vmax.f32 %v189, 0.0
    %v254 = vmax.f32 %v190, 0.0
    %v255 = vmax.f32 %v191, 0.0
    %v256 = vmax.f32 %v192, 0.0
    %v257 = vmax.f32 %v193, 0.0
    %v258 = vmax.f32 %v194, 0.0
    %v259 = vmax.f32 %v195, 0.0
    %v260 = vmax.f32 %v196, 0.0
    %v261 = vmax.f32 %v197, 0.0
    %v262 = vmax.f32 %v198, 0.0
    %v263 = vmax.f32 %v199, 0.0
    %v264 = vmax.f32 %v200, 0.0
    %v265 = vmax.f32 %v201, 0.0
    %v266 = vmax.f32 %v202, 0.0
    %v267 = vmax.f32 %v203, 0.0
    %v268 = vmax.f32 %v204, 0.0
    %v269 = vmax.f32 %v205, 0.0
    %v270 = vmax.f32 %v206, 0.0
    %v271 = vmax.f32 %v207, 0.0
    %v272 = vmax.f32 %v208, 0.0
    %v273 = vmax.f32 %v209, 0.0
    %v274 = vmax.f32 %v210, 0.0
    %v275 = vmax.f32 %v211, 0.0
    %v276 = vmax.f32 %v212, 0.0
    %v277 = vmax.f32 %v213, 0.0
    %v278 = vmax.f32 %v214, 0.0
    %v279 = vmax.f32 %v215, 0.0
    %v280 = vmax.f32 %v216, 0.0
    %v281 = vmax.f32 %v217, 0.0
    %v282 = vmax.f32 %v218, 0.0
    %v283 = vmax.f32 %v219, 0.0
    %v284 = vmax.f32 %v220, 0.0
    %v285 = vmax.f32 %v221, 0.0
    %v286 = vmax.f32 %v222, 0.0
    %v287 = vmax.f32 %v223, 0.0
    %v288 = vmax.f32 %v224, 0.0
    %v289 = vmax.f32 %v225, 0.0
    %v290 = vmax.f32 %v226, 0.0
    %v291 = vmax.f32 %v227, 0.0
    %v292 = vld [vmem:[%s2] sm:$0x3]
    %v293 = vld [vmem:[%s2 + $0x2] sm:$0x3]
    %v294 = vld [vmem:[%s2 + $0x4] sm:$0x3]
    %v295 = vld [vmem:[%s2 + $0x6] sm:$0x3]
    %v296 = vld [vmem:[%s2 + $0x8] sm:$0x3]
    %v297 = vld [vmem:[%s2 + $0xa] sm:$0x3]
    %v298 = vld [vmem:[%s2 + $0xc] sm:$0x3]
    %v299 = vld [vmem:[%s2 + $0xe] sm:$0x3]
    %v300 = vld [vmem:[%s2 + $0x10] sm:$0x3]
    %v301 = vld [vmem:[%s2 + $0x12] sm:$0x3]
    %v302 = vld [vmem:[%s2 + $0x14] sm:$0x3]
    %v303 = vld [vmem:[%s2 + $0x16] sm:$0x3]
    %v304 = vld [vmem:[%s2 + $0x18] sm:$0x3]
    %v305 = vld [vmem:[%s2 + $0x1a] sm:$0x3]
    %v306 = vld [vmem:[%s2 + $0x1c] sm:$0x3]
    %v307 = vld [vmem:[%s2 + $0x1e] sm:$0x3]
    %v308 = vld [vmem:[%s2 + $0x20] sm:$0x3]
    %v309 = vld [vmem:[%s2 + $0x22] sm:$0x3]
    %v310 = vld [vmem:[%s2 + $0x24] sm:$0x3]
    %v311 = vld [vmem:[%s2 + $0x26] sm:$0x3]
    %v312 = vld [vmem:[%s2 + $0x28] sm:$0x3]
    %v313 = vld [vmem:[%s2 + $0x2a] sm:$0x3]
    %v314 = vld [vmem:[%s2 + $0x2c] sm:$0x3]
    %v315 = vld [vmem:[%s2 + $0x2e] sm:$0x3]
    %v316 = vld [vmem:[%s2 + $0x30] sm:$0x3]
    %v317 = vld [vmem:[%s2 + $0x32] sm:$0x3]
    %v318 = vld [vmem:[%s2 + $0x34] sm:$0x3]
    %v319 = vld [vmem:[%s2 + $0x36] sm:$0x3]
    %v320 = vld [vmem:[%s2 + $0x38] sm:$0x3]
    %v321 = vld [vmem:[%s2 + $0x3a] sm:$0x3]
    %v322 = vld [vmem:[%s2 + $0x3c] sm:$0x3]
    %v323 = vld [vmem:[%s2 + $0x3e] sm:$0x3]
    %v324 = vld [vmem:[%s2 + $0x40] sm:$0x3]
    %v325 = vld [vmem:[%s2 + $0x42] sm:$0x3]
    %v326 = vld [vmem:[%s2 + $0x44] sm:$0x3]
    %v327 = vld [vmem:[%s2 + $0x46] sm:$0x3]
    %v328 = vld [vmem:[%s2 + $0x48] sm:$0x3]
    %v329 = vld [vmem:[%s2 + $0x4a] sm:$0x3]
    %v330 = vld [vmem:[%s2 + $0x4c] sm:$0x3]
    %v331 = vld [vmem:[%s2 + $0x4e] sm:$0x3]
    %v332 = vld [vmem:[%s2 + $0x50] sm:$0x3]
    %v333 = vld [vmem:[%s2 + $0x52] sm:$0x3]
    %v334 = vld [vmem:[%s2 + $0x54] sm:$0x3]
    %v335 = vld [vmem:[%s2 + $0x56] sm:$0x3]
    %v336 = vld [vmem:[%s2 + $0x58] sm:$0x3]
    %v337 = vld [vmem:[%s2 + $0x5a] sm:$0x3]
    %v338 = vld [vmem:[%s2 + $0x5c] sm:$0x3]
    %v339 = vld [vmem:[%s2 + $0x5e] sm:$0x3]
    %v340 = vld [vmem:[%s2 + $0x60] sm:$0x3]
    %v341 = vld [vmem:[%s2 + $0x62] sm:$0x3]
    %v342 = vld [vmem:[%s2 + $0x64] sm:$0x3]
    %v343 = vld [vmem:[%s2 + $0x66] sm:$0x3]
    %v344 = vld [vmem:[%s2 + $0x68] sm:$0x3]
    %v345 = vld [vmem:[%s2 + $0x6a] sm:$0x3]
    %v346 = vld [vmem:[%s2 + $0x6c] sm:$0x3]
    %v347 = vld [vmem:[%s2 + $0x6e] sm:$0x3]
    %v348 = vld [vmem:[%s2 + $0x70] sm:$0x3]
    %v349 = vld [vmem:[%s2 + $0x72] sm:$0x3]
    %v350 = vld [vmem:[%s2 + $0x74] sm:$0x3]
    %v351 = vld [vmem:[%s2 + $0x76] sm:$0x3]
    %v352 = vld [vmem:[%s2 + $0x78] sm:$0x3]
    %v353 = vld [vmem:[%s2 + $0x7a] sm:$0x3]
    %v354 = vld [vmem:[%s2 + $0x7c] sm:$0x3]
    %v355 = vld [vmem:[%s2 + $0x7e] sm:$0x3]
    %v356 = vmax.f32 %v292, 0.0
    %v357 = vmax.f32 %v293, 0.0
    %v358 = vmax.f32 %v294, 0.0
    %v359 = vmax.f32 %v295, 0.0
    %v360 = vmax.f32 %v296, 0.0
    %v361 = vmax.f32 %v297, 0.0
    %v362 = vmax.f32 %v298, 0.0
    %v363 = vmax.f32 %v299, 0.0
    %v364 = vmax.f32 %v300, 0.0
    %v365 = vmax.f32 %v301, 0.0
    %v366 = vmax.f32 %v302, 0.0
    %v367 = vmax.f32 %v303, 0.0
    %v368 = vmax.f32 %v304, 0.0
    %v369 = vmax.f32 %v305, 0.0
    %v370 = vmax.f32 %v306, 0.0
    %v371 = vmax.f32 %v307, 0.0
    %v372 = vmax.f32 %v308, 0.0
    %v373 = vmax.f32 %v309, 0.0
    %v374 = vmax.f32 %v310, 0.0
    %v375 = vmax.f32 %v311, 0.0
    %v376 = vmax.f32 %v312, 0.0
    %v377 = vmax.f32 %v313, 0.0
    %v378 = vmax.f32 %v314, 0.0
    %v379 = vmax.f32 %v315, 0.0
    %v380 = vmax.f32 %v316, 0.0
    %v381 = vmax.f32 %v317, 0.0
    %v382 = vmax.f32 %v318, 0.0
    %v383 = vmax.f32 %v319, 0.0
    %v384 = vmax.f32 %v320, 0.0
    %v385 = vmax.f32 %v321, 0.0
    %v386 = vmax.f32 %v322, 0.0
    %v387 = vmax.f32 %v323, 0.0
    %v388 = vmax.f32 %v324, 0.0
    %v389 = vmax.f32 %v325, 0.0
    %v390 = vmax.f32 %v326, 0.0
    %v391 = vmax.f32 %v327, 0.0
    %v392 = vmax.f32 %v328, 0.0
    %v393 = vmax.f32 %v329, 0.0
    %v394 = vmax.f32 %v330, 0.0
    %v395 = vmax.f32 %v331, 0.0
    %v396 = vmax.f32 %v332, 0.0
    %v397 = vmax.f32 %v333, 0.0
    %v398 = vmax.f32 %v334, 0.0
    %v399 = vmax.f32 %v335, 0.0
    %v400 = vmax.f32 %v336, 0.0
    %v401 = vmax.f32 %v337, 0.0
    %v402 = vmax.f32 %v338, 0.0
    %v403 = vmax.f32 %v339, 0.0
    %v404 = vmax.f32 %v340, 0.0
    %v405 = vmax.f32 %v341, 0.0
    %v406 = vmax.f32 %v342, 0.0
    %v407 = vmax.f32 %v343, 0.0
    %v408 = vmax.f32 %v344, 0.0
    %v409 = vmax.f32 %v345, 0.0
    %v410 = vmax.f32 %v346, 0.0
    %v411 = vmax.f32 %v347, 0.0
    %v412 = vmax.f32 %v348, 0.0
    %v413 = vmax.f32 %v349, 0.0
    %v414 = vmax.f32 %v350, 0.0
    %v415 = vmax.f32 %v351, 0.0
    %v416 = vmax.f32 %v352, 0.0
    %v417 = vmax.f32 %v353, 0.0
    %v418 = vmax.f32 %v354, 0.0
    %v419 = vmax.f32 %v355, 0.0
    %v420 = vld [vmem:[%s3] sm:$0x3]
    %v421 = vld [vmem:[%s3 + $0x2] sm:$0x3]
    %v422 = vld [vmem:[%s3 + $0x4] sm:$0x3]
    %v423 = vld [vmem:[%s3 + $0x6] sm:$0x3]
    %v424 = vld [vmem:[%s3 + $0x8] sm:$0x3]
    %v425 = vld [vmem:[%s3 + $0xa] sm:$0x3]
    %v426 = vld [vmem:[%s3 + $0xc] sm:$0x3]
    %v427 = vld [vmem:[%s3 + $0xe] sm:$0x3]
    %v428 = vld [vmem:[%s3 + $0x10] sm:$0x3]
    %v429 = vld [vmem:[%s3 + $0x12] sm:$0x3]
    %v430 = vld [vmem:[%s3 + $0x14] sm:$0x3]
    %v431 = vld [vmem:[%s3 + $0x16] sm:$0x3]
    %v432 = vld [vmem:[%s3 + $0x18] sm:$0x3]
    %v433 = vld [vmem:[%s3 + $0x1a] sm:$0x3]
    %v434 = vld [vmem:[%s3 + $0x1c] sm:$0x3]
    %v435 = vld [vmem:[%s3 + $0x1e] sm:$0x3]
    %v436 = vld [vmem:[%s3 + $0x20] sm:$0x3]
    %v437 = vld [vmem:[%s3 + $0x22] sm:$0x3]
    %v438 = vld [vmem:[%s3 + $0x24] sm:$0x3]
    %v439 = vld [vmem:[%s3 + $0x26] sm:$0x3]
    %v440 = vld [vmem:[%s3 + $0x28] sm:$0x3]
    %v441 = vld [vmem:[%s3 + $0x2a] sm:$0x3]
    %v442 = vld [vmem:[%s3 + $0x2c] sm:$0x3]
    %v443 = vld [vmem:[%s3 + $0x2e] sm:$0x3]
    %v444 = vld [vmem:[%s3 + $0x30] sm:$0x3]
    %v445 = vld [vmem:[%s3 + $0x32] sm:$0x3]
    %v446 = vld [vmem:[%s3 + $0x34] sm:$0x3]
    %v447 = vld [vmem:[%s3 + $0x36] sm:$0x3]
    %v448 = vld [vmem:[%s3 + $0x38] sm:$0x3]
    %v449 = vld [vmem:[%s3 + $0x3a] sm:$0x3]
    %v450 = vld [vmem:[%s3 + $0x3c] sm:$0x3]
    %v451 = vld [vmem:[%s3 + $0x3e] sm:$0x3]
    %v452 = vld [vmem:[%s3 + $0x40] sm:$0x3]
    %v453 = vld [vmem:[%s3 + $0x42] sm:$0x3]
    %v454 = vld [vmem:[%s3 + $0x44] sm:$0x3]
    %v455 = vld [vmem:[%s3 + $0x46] sm:$0x3]
    %v456 = vld [vmem:[%s3 + $0x48] sm:$0x3]
    %v457 = vld [vmem:[%s3 + $0x4a] sm:$0x3]
    %v458 = vld [vmem:[%s3 + $0x4c] sm:$0x3]
    %v459 = vld [vmem:[%s3 + $0x4e] sm:$0x3]
    %v460 = vld [vmem:[%s3 + $0x50] sm:$0x3]
    %v461 = vld [vmem:[%s3 + $0x52] sm:$0x3]
    %v462 = vld [vmem:[%s3 + $0x54] sm:$0x3]
    %v463 = vld [vmem:[%s3 + $0x56] sm:$0x3]
    %v464 = vld [vmem:[%s3 + $0x58] sm:$0x3]
    %v465 = vld [vmem:[%s3 + $0x5a] sm:$0x3]
    %v466 = vld [vmem:[%s3 + $0x5c] sm:$0x3]
    %v467 = vld [vmem:[%s3 + $0x5e] sm:$0x3]
    %v468 = vld [vmem:[%s3 + $0x60] sm:$0x3]
    %v469 = vld [vmem:[%s3 + $0x62] sm:$0x3]
    %v470 = vld [vmem:[%s3 + $0x64] sm:$0x3]
    %v471 = vld [vmem:[%s3 + $0x66] sm:$0x3]
    %v472 = vld [vmem:[%s3 + $0x68] sm:$0x3]
    %v473 = vld [vmem:[%s3 + $0x6a] sm:$0x3]
    %v474 = vld [vmem:[%s3 + $0x6c] sm:$0x3]
    %v475 = vld [vmem:[%s3 + $0x6e] sm:$0x3]
    %v476 = vld [vmem:[%s3 + $0x70] sm:$0x3]
    %v477 = vld [vmem:[%s3 + $0x72] sm:$0x3]
    %v478 = vld [vmem:[%s3 + $0x74] sm:$0x3]
    %v479 = vld [vmem:[%s3 + $0x76] sm:$0x3]
    %v480 = vld [vmem:[%s3 + $0x78] sm:$0x3]
    %v481 = vld [vmem:[%s3 + $0x7a] sm:$0x3]
    %v482 = vld [vmem:[%s3 + $0x7c] sm:$0x3]
    %v483 = vld [vmem:[%s3 + $0x7e] sm:$0x3]
    %v484 = vmax.f32 %v420, 0.0
    %v485 = vmax.f32 %v421, 0.0
    %v486 = vmax.f32 %v422, 0.0
    %v487 = vmax.f32 %v423, 0.0
    %v488 = vmax.f32 %v424, 0.0
    %v489 = vmax.f32 %v425, 0.0
    %v490 = vmax.f32 %v426, 0.0
    %v491 = vmax.f32 %v427, 0.0
    %v492 = vmax.f32 %v428, 0.0
    %v493 = vmax.f32 %v429, 0.0
    %v494 = vmax.f32 %v430, 0.0
    %v495 = vmax.f32 %v431, 0.0
    %v496 = vmax.f32 %v432, 0.0
    %v497 = vmax.f32 %v433, 0.0
    %v498 = vmax.f32 %v434, 0.0
    %v499 = vmax.f32 %v435, 0.0
    %v500 = vmax.f32 %v436, 0.0
    %v501 = vmax.f32 %v437, 0.0
    %v502 = vmax.f32 %v438, 0.0
    %v503 = vmax.f32 %v439, 0.0
    %v504 = vmax.f32 %v440, 0.0
    %v505 = vmax.f32 %v441, 0.0
    %v506 = vmax.f32 %v442, 0.0
    %v507 = vmax.f32 %v443, 0.0
    %v508 = vmax.f32 %v444, 0.0
    %v509 = vmax.f32 %v445, 0.0
    %v510 = vmax.f32 %v446, 0.0
    %v511 = vmax.f32 %v447, 0.0
    %v512 = vmax.f32 %v448, 0.0
    %v513 = vmax.f32 %v449, 0.0
    %v514 = vmax.f32 %v450, 0.0
    %v515 = vmax.f32 %v451, 0.0
    %v516 = vmax.f32 %v452, 0.0
    %v517 = vmax.f32 %v453, 0.0
    %v518 = vmax.f32 %v454, 0.0
    %v519 = vmax.f32 %v455, 0.0
    %v520 = vmax.f32 %v456, 0.0
    %v521 = vmax.f32 %v457, 0.0
    %v522 = vmax.f32 %v458, 0.0
    %v523 = vmax.f32 %v459, 0.0
    %v524 = vmax.f32 %v460, 0.0
    %v525 = vmax.f32 %v461, 0.0
    %v526 = vmax.f32 %v462, 0.0
    %v527 = vmax.f32 %v463, 0.0
    %v528 = vmax.f32 %v464, 0.0
    %v529 = vmax.f32 %v465, 0.0
    %v530 = vmax.f32 %v466, 0.0
    %v531 = vmax.f32 %v467, 0.0
    %v532 = vmax.f32 %v468, 0.0
    %v533 = vmax.f32 %v469, 0.0
    %v534 = vmax.f32 %v470, 0.0
    %v535 = vmax.f32 %v471, 0.0
    %v536 = vmax.f32 %v472, 0.0
    %v537 = vmax.f32 %v473, 0.0
    %v538 = vmax.f32 %v474, 0.0
    %v539 = vmax.f32 %v475, 0.0
    %v540 = vmax.f32 %v476, 0.0
    %v541 = vmax.f32 %v477, 0.0
    %v542 = vmax.f32 %v478, 0.0
    %v543 = vmax.f32 %v479, 0.0
    %v544 = vmax.f32 %v480, 0.0
    %v545 = vmax.f32 %v481, 0.0
    %v546 = vmax.f32 %v482, 0.0
    %v547 = vmax.f32 %v483, 0.0
    %v548 = vld [vmem:[%s4] sm:$0x1]
    %v549 = vld [vmem:[%s4 + $0x1] sm:$0x1]
    %v550 = vld [vmem:[%s4 + $0x2] sm:$0x1]
    %v551 = vld [vmem:[%s4 + $0x3] sm:$0x1]
    %v552 = vld [vmem:[%s4 + $0x4] sm:$0x1]
    %v553 = vld [vmem:[%s4 + $0x5] sm:$0x1]
    %v554 = vld [vmem:[%s4 + $0x6] sm:$0x1]
    %v555 = vld [vmem:[%s4 + $0x7] sm:$0x1]
    %v556 = vld [vmem:[%s4 + $0x8] sm:$0x1]
    %v558 = vlaneseq
    %v559 = vshrl.u32 %v558, 7
    %v560 = vsub.s32 0, %v559
    %v561 = vrot.slane %v548, %v560
    %v563 = vmul.f32 %v561, 0.0
    %v564 = vmul.f32 %v484, %v561
    %v565 = vmul.f32 %v485, %v561
    %v566 = vmul.f32 %v486, %v561
    %v567 = vmul.f32 %v487, %v561
    %v568 = vmul.f32 %v488, %v561
    %v569 = vmul.f32 %v489, %v561
    %v570 = vmul.f32 %v490, %v561
    %v571 = vmul.f32 %v492, %v561
    %v572 = vmul.f32 %v493, %v561
    %v573 = vmul.f32 %v494, %v561
    %v574 = vmul.f32 %v495, %v561
    %v575 = vmul.f32 %v496, %v561
    %v576 = vmul.f32 %v497, %v561
    %v577 = vmul.f32 %v498, %v561
    %v578 = vmul.f32 %v500, %v561
    %v579 = vmul.f32 %v501, %v561
    %v580 = vmul.f32 %v502, %v561
    %v581 = vmul.f32 %v503, %v561
    %v582 = vmul.f32 %v504, %v561
    %v583 = vmul.f32 %v505, %v561
    %v584 = vmul.f32 %v506, %v561
    %v585 = vmul.f32 %v508, %v561
    %v586 = vmul.f32 %v509, %v561
    %v587 = vmul.f32 %v510, %v561
    %v588 = vmul.f32 %v511, %v561
    %v589 = vmul.f32 %v512, %v561
    %v590 = vmul.f32 %v513, %v561
    %v591 = vmul.f32 %v514, %v561
    %v592 = vmul.f32 %v516, %v561
    %v593 = vmul.f32 %v517, %v561
    %v594 = vmul.f32 %v518, %v561
    %v595 = vmul.f32 %v519, %v561
    %v596 = vmul.f32 %v520, %v561
    %v597 = vmul.f32 %v521, %v561
    %v598 = vmul.f32 %v522, %v561
    %v599 = vmul.f32 %v524, %v561
    %v600 = vmul.f32 %v525, %v561
    %v601 = vmul.f32 %v526, %v561
    %v602 = vmul.f32 %v527, %v561
    %v603 = vmul.f32 %v528, %v561
    %v604 = vmul.f32 %v529, %v561
    %v605 = vmul.f32 %v530, %v561
    %v606 = vmul.f32 %v532, %v561
    %v607 = vmul.f32 %v533, %v561
    %v608 = vmul.f32 %v534, %v561
    %v609 = vmul.f32 %v535, %v561
    %v610 = vmul.f32 %v536, %v561
    %v611 = vmul.f32 %v537, %v561
    %v612 = vmul.f32 %v538, %v561
    %v613 = vadd.f32 %v563, 0.0
    %v614 = vadd.f32 %v564, 0.0
    %v615 = vadd.f32 %v565, 0.0
    %v616 = vadd.f32 %v566, 0.0
    %v617 = vadd.f32 %v567, 0.0
    %v618 = vadd.f32 %v568, 0.0
    %v619 = vadd.f32 %v569, 0.0
    %v620 = vadd.f32 %v570, 0.0
    %v621 = vadd.f32 %v571, 0.0
    %v622 = vadd.f32 %v572, 0.0
    %v623 = vadd.f32 %v573, 0.0
    %v624 = vadd.f32 %v574, 0.0
    %v625 = vadd.f32 %v575, 0.0
    %v626 = vadd.f32 %v576, 0.0
    %v627 = vadd.f32 %v577, 0.0
    %v628 = vadd.f32 %v578, 0.0
    %v629 = vadd.f32 %v579, 0.0
    %v630 = vadd.f32 %v580, 0.0
    %v631 = vadd.f32 %v581, 0.0
    %v632 = vadd.f32 %v582, 0.0
    %v633 = vadd.f32 %v583, 0.0
    %v634 = vadd.f32 %v584, 0.0
    %v635 = vadd.f32 %v585, 0.0
    %v636 = vadd.f32 %v586, 0.0
    %v637 = vadd.f32 %v587, 0.0
    %v638 = vadd.f32 %v588, 0.0
    %v639 = vadd.f32 %v589, 0.0
    %v640 = vadd.f32 %v590, 0.0
    %v641 = vadd.f32 %v591, 0.0
    %v642 = vadd.f32 %v592, 0.0
    %v643 = vadd.f32 %v593, 0.0
    %v644 = vadd.f32 %v594, 0.0
    %v645 = vadd.f32 %v595, 0.0
    %v646 = vadd.f32 %v596, 0.0
    %v647 = vadd.f32 %v597, 0.0
    %v648 = vadd.f32 %v598, 0.0
    %v649 = vadd.f32 %v599, 0.0
    %v650 = vadd.f32 %v600, 0.0
    %v651 = vadd.f32 %v601, 0.0
    %v652 = vadd.f32 %v602, 0.0
    %v653 = vadd.f32 %v603, 0.0
    %v654 = vadd.f32 %v604, 0.0
    %v655 = vadd.f32 %v605, 0.0
    %v656 = vadd.f32 %v606, 0.0
    %v657 = vadd.f32 %v607, 0.0
    %v658 = vadd.f32 %v608, 0.0
    %v659 = vadd.f32 %v609, 0.0
    %v660 = vadd.f32 %v610, 0.0
    %v661 = vadd.f32 %v611, 0.0
    %v662 = vadd.f32 %v612, 0.0
    %v664 = vlaneseq
    %v665 = vshrl.u32 %v664, 7
    %v666 = vsub.s32 0, %v665
    %v667 = vrot.slane %v549, %v666
    %v669 = vmul.f32 %v667, 0.0
    %v670 = vmul.f32 %v356, %v667
    %v671 = vmul.f32 %v357, %v667
    %v672 = vmul.f32 %v358, %v667
    %v673 = vmul.f32 %v359, %v667
    %v674 = vmul.f32 %v360, %v667
    %v675 = vmul.f32 %v361, %v667
    %v676 = vmul.f32 %v362, %v667
    %v677 = vmul.f32 %v363, %v667
    %v678 = vmul.f32 %v364, %v667
    %v679 = vmul.f32 %v365, %v667
    %v680 = vmul.f32 %v366, %v667
    %v681 = vmul.f32 %v367, %v667
    %v682 = vmul.f32 %v368, %v667
    %v683 = vmul.f32 %v369, %v667
    %v684 = vmul.f32 %v370, %v667
    %v685 = vmul.f32 %v371, %v667
    %v686 = vmul.f32 %v372, %v667
    %v687 = vmul.f32 %v373, %v667
    %v688 = vmul.f32 %v374, %v667
    %v689 = vmul.f32 %v375, %v667
    %v690 = vmul.f32 %v376, %v667
    %v691 = vmul.f32 %v377, %v667
    %v692 = vmul.f32 %v378, %v667
    %v693 = vmul.f32 %v379, %v667
    %v694 = vmul.f32 %v380, %v667
    %v695 = vmul.f32 %v381, %v667
    %v696 = vmul.f32 %v382, %v667
    %v697 = vmul.f32 %v383, %v667
    %v698 = vmul.f32 %v384, %v667
    %v699 = vmul.f32 %v385, %v667
    %v700 = vmul.f32 %v386, %v667
    %v701 = vmul.f32 %v387, %v667
    %v702 = vmul.f32 %v388, %v667
    %v703 = vmul.f32 %v389, %v667
    %v704 = vmul.f32 %v390, %v667
    %v705 = vmul.f32 %v391, %v667
    %v706 = vmul.f32 %v392, %v667
    %v707 = vmul.f32 %v393, %v667
    %v708 = vmul.f32 %v394, %v667
    %v709 = vmul.f32 %v395, %v667
    %v710 = vmul.f32 %v396, %v667
    %v711 = vmul.f32 %v397, %v667
    %v712 = vmul.f32 %v398, %v667
    %v713 = vmul.f32 %v399, %v667
    %v714 = vmul.f32 %v400, %v667
    %v715 = vmul.f32 %v401, %v667
    %v716 = vmul.f32 %v402, %v667
    %v717 = vmul.f32 %v403, %v667
    %v718 = vmul.f32 %v404, %v667
    %v719 = vmul.f32 %v405, %v667
    %v720 = vmul.f32 %v406, %v667
    %v721 = vmul.f32 %v407, %v667
    %v722 = vmul.f32 %v408, %v667
    %v723 = vmul.f32 %v409, %v667
    %v724 = vmul.f32 %v410, %v667
    %v725 = vmul.f32 %v411, %v667
    %v726 = vadd.f32 %v613, %v669
    %v727 = vadd.f32 %v613, %v670
    %v728 = vadd.f32 %v614, %v671
    %v729 = vadd.f32 %v615, %v672
    %v730 = vadd.f32 %v616, %v673
    %v731 = vadd.f32 %v617, %v674
    %v732 = vadd.f32 %v618, %v675
    %v733 = vadd.f32 %v619, %v676
    %v734 = vadd.f32 %v620, %v677
    %v735 = vadd.f32 %v613, %v678
    %v736 = vadd.f32 %v621, %v679
    %v737 = vadd.f32 %v622, %v680
    %v738 = vadd.f32 %v623, %v681
    %v739 = vadd.f32 %v624, %v682
    %v740 = vadd.f32 %v625, %v683
    %v741 = vadd.f32 %v626, %v684
    %v742 = vadd.f32 %v627, %v685
    %v743 = vadd.f32 %v613, %v686
    %v744 = vadd.f32 %v628, %v687
    %v745 = vadd.f32 %v629, %v688
    %v746 = vadd.f32 %v630, %v689
    %v747 = vadd.f32 %v631, %v690
    %v748 = vadd.f32 %v632, %v691
    %v749 = vadd.f32 %v633, %v692
    %v750 = vadd.f32 %v634, %v693
    %v751 = vadd.f32 %v613, %v694
    %v752 = vadd.f32 %v635, %v695
    %v753 = vadd.f32 %v636, %v696
    %v754 = vadd.f32 %v637, %v697
    %v755 = vadd.f32 %v638, %v698
    %v756 = vadd.f32 %v639, %v699
    %v757 = vadd.f32 %v640, %v700
    %v758 = vadd.f32 %v641, %v701
    %v759 = vadd.f32 %v613, %v702
    %v760 = vadd.f32 %v642, %v703
    %v761 = vadd.f32 %v643, %v704
    %v762 = vadd.f32 %v644, %v705
    %v763 = vadd.f32 %v645, %v706
    %v764 = vadd.f32 %v646, %v707
    %v765 = vadd.f32 %v647, %v708
    %v766 = vadd.f32 %v648, %v709
    %v767 = vadd.f32 %v613, %v710
    %v768 = vadd.f32 %v649, %v711
    %v769 = vadd.f32 %v650, %v712
    %v770 = vadd.f32 %v651, %v713
    %v771 = vadd.f32 %v652, %v714
    %v772 = vadd.f32 %v653, %v715
    %v773 = vadd.f32 %v654, %v716
    %v774 = vadd.f32 %v655, %v717
    %v775 = vadd.f32 %v613, %v718
    %v776 = vadd.f32 %v656, %v719
    %v777 = vadd.f32 %v657, %v720
    %v778 = vadd.f32 %v658, %v721
    %v779 = vadd.f32 %v659, %v722
    %v780 = vadd.f32 %v660, %v723
    %v781 = vadd.f32 %v661, %v724
    %v782 = vadd.f32 %v662, %v725
    %v784 = vlaneseq
    %v785 = vshrl.u32 %v784, 7
    %v786 = vsub.s32 0, %v785
    %v787 = vrot.slane %v550, %v786
    %v789 = vmul.f32 %v787, 0.0
    %v790 = vmul.f32 %v484, %v787
    %v791 = vmul.f32 %v485, %v787
    %v792 = vmul.f32 %v486, %v787
    %v793 = vmul.f32 %v487, %v787
    %v794 = vmul.f32 %v488, %v787
    %v795 = vmul.f32 %v489, %v787
    %v796 = vmul.f32 %v490, %v787
    %v797 = vmul.f32 %v491, %v787
    %v798 = vmul.f32 %v492, %v787
    %v799 = vmul.f32 %v493, %v787
    %v800 = vmul.f32 %v494, %v787
    %v801 = vmul.f32 %v495, %v787
    %v802 = vmul.f32 %v496, %v787
    %v803 = vmul.f32 %v497, %v787
    %v804 = vmul.f32 %v498, %v787
    %v805 = vmul.f32 %v499, %v787
    %v806 = vmul.f32 %v500, %v787
    %v807 = vmul.f32 %v501, %v787
    %v808 = vmul.f32 %v502, %v787
    %v809 = vmul.f32 %v503, %v787
    %v810 = vmul.f32 %v504, %v787
    %v811 = vmul.f32 %v505, %v787
    %v812 = vmul.f32 %v506, %v787
    %v813 = vmul.f32 %v507, %v787
    %v814 = vmul.f32 %v508, %v787
    %v815 = vmul.f32 %v509, %v787
    %v816 = vmul.f32 %v510, %v787
    %v817 = vmul.f32 %v511, %v787
    %v818 = vmul.f32 %v512, %v787
    %v819 = vmul.f32 %v513, %v787
    %v820 = vmul.f32 %v514, %v787
    %v821 = vmul.f32 %v515, %v787
    %v822 = vmul.f32 %v516, %v787
    %v823 = vmul.f32 %v517, %v787
    %v824 = vmul.f32 %v518, %v787
    %v825 = vmul.f32 %v519, %v787
    %v826 = vmul.f32 %v520, %v787
    %v827 = vmul.f32 %v521, %v787
    %v828 = vmul.f32 %v522, %v787
    %v829 = vmul.f32 %v523, %v787
    %v830 = vmul.f32 %v524, %v787
    %v831 = vmul.f32 %v525, %v787
    %v832 = vmul.f32 %v526, %v787
    %v833 = vmul.f32 %v527, %v787
    %v834 = vmul.f32 %v528, %v787
    %v835 = vmul.f32 %v529, %v787
    %v836 = vmul.f32 %v530, %v787
    %v837 = vmul.f32 %v531, %v787
    %v838 = vmul.f32 %v532, %v787
    %v839 = vmul.f32 %v533, %v787
    %v840 = vmul.f32 %v534, %v787
    %v841 = vmul.f32 %v535, %v787
    %v842 = vmul.f32 %v536, %v787
    %v843 = vmul.f32 %v537, %v787
    %v844 = vmul.f32 %v538, %v787
    %v845 = vmul.f32 %v539, %v787
    %v846 = vadd.f32 %v726, %v789
    %v847 = vadd.f32 %v727, %v790
    %v848 = vadd.f32 %v728, %v791
    %v849 = vadd.f32 %v729, %v792
    %v850 = vadd.f32 %v730, %v793
    %v851 = vadd.f32 %v731, %v794
    %v852 = vadd.f32 %v732, %v795
    %v853 = vadd.f32 %v733, %v796
    %v854 = vadd.f32 %v734, %v797
    %v855 = vadd.f32 %v735, %v798
    %v856 = vadd.f32 %v736, %v799
    %v857 = vadd.f32 %v737, %v800
    %v858 = vadd.f32 %v738, %v801
    %v859 = vadd.f32 %v739, %v802
    %v860 = vadd.f32 %v740, %v803
    %v861 = vadd.f32 %v741, %v804
    %v862 = vadd.f32 %v742, %v805
    %v863 = vadd.f32 %v743, %v806
    %v864 = vadd.f32 %v744, %v807
    %v865 = vadd.f32 %v745, %v808
    %v866 = vadd.f32 %v746, %v809
    %v867 = vadd.f32 %v747, %v810
    %v868 = vadd.f32 %v748, %v811
    %v869 = vadd.f32 %v749, %v812
    %v870 = vadd.f32 %v750, %v813
    %v871 = vadd.f32 %v751, %v814
    %v872 = vadd.f32 %v752, %v815
    %v873 = vadd.f32 %v753, %v816
    %v874 = vadd.f32 %v754, %v817
    %v875 = vadd.f32 %v755, %v818
    %v876 = vadd.f32 %v756, %v819
    %v877 = vadd.f32 %v757, %v820
    %v878 = vadd.f32 %v758, %v821
    %v879 = vadd.f32 %v759, %v822
    %v880 = vadd.f32 %v760, %v823
    %v881 = vadd.f32 %v761, %v824
    %v882 = vadd.f32 %v762, %v825
    %v883 = vadd.f32 %v763, %v826
    %v884 = vadd.f32 %v764, %v827
    %v885 = vadd.f32 %v765, %v828
    %v886 = vadd.f32 %v766, %v829
    %v887 = vadd.f32 %v767, %v830
    %v888 = vadd.f32 %v768, %v831
    %v889 = vadd.f32 %v769, %v832
    %v890 = vadd.f32 %v770, %v833
    %v891 = vadd.f32 %v771, %v834
    %v892 = vadd.f32 %v772, %v835
    %v893 = vadd.f32 %v773, %v836
    %v894 = vadd.f32 %v774, %v837
    %v895 = vadd.f32 %v775, %v838
    %v896 = vadd.f32 %v776, %v839
    %v897 = vadd.f32 %v777, %v840
    %v898 = vadd.f32 %v778, %v841
    %v899 = vadd.f32 %v779, %v842
    %v900 = vadd.f32 %v780, %v843
    %v901 = vadd.f32 %v781, %v844
    %v902 = vadd.f32 %v782, %v845
    %v904 = vlaneseq
    %v905 = vshrl.u32 %v904, 7
    %v906 = vsub.s32 0, %v905
    %v907 = vrot.slane %v551, %v906
    %v909 = vmul.f32 %v907, 0.0
    %v910 = vmul.f32 %v228, %v907
    %v911 = vmul.f32 %v229, %v907
    %v912 = vmul.f32 %v230, %v907
    %v913 = vmul.f32 %v231, %v907
    %v914 = vmul.f32 %v232, %v907
    %v915 = vmul.f32 %v233, %v907
    %v916 = vmul.f32 %v234, %v907
    %v917 = vmul.f32 %v236, %v907
    %v918 = vmul.f32 %v237, %v907
    %v919 = vmul.f32 %v238, %v907
    %v920 = vmul.f32 %v239, %v907
    %v921 = vmul.f32 %v240, %v907
    %v922 = vmul.f32 %v241, %v907
    %v923 = vmul.f32 %v242, %v907
    %v924 = vmul.f32 %v244, %v907
    %v925 = vmul.f32 %v245, %v907
    %v926 = vmul.f32 %v246, %v907
    %v927 = vmul.f32 %v247, %v907
    %v928 = vmul.f32 %v248, %v907
    %v929 = vmul.f32 %v249, %v907
    %v930 = vmul.f32 %v250, %v907
    %v931 = vmul.f32 %v252, %v907
    %v932 = vmul.f32 %v253, %v907
    %v933 = vmul.f32 %v254, %v907
    %v934 = vmul.f32 %v255, %v907
    %v935 = vmul.f32 %v256, %v907
    %v936 = vmul.f32 %v257, %v907
    %v937 = vmul.f32 %v258, %v907
    %v938 = vmul.f32 %v260, %v907
    %v939 = vmul.f32 %v261, %v907
    %v940 = vmul.f32 %v262, %v907
    %v941 = vmul.f32 %v263, %v907
    %v942 = vmul.f32 %v264, %v907
    %v943 = vmul.f32 %v265, %v907
    %v944 = vmul.f32 %v266, %v907
    %v945 = vmul.f32 %v268, %v907
    %v946 = vmul.f32 %v269, %v907
    %v947 = vmul.f32 %v270, %v907
    %v948 = vmul.f32 %v271, %v907
    %v949 = vmul.f32 %v272, %v907
    %v950 = vmul.f32 %v273, %v907
    %v951 = vmul.f32 %v274, %v907
    %v952 = vmul.f32 %v276, %v907
    %v953 = vmul.f32 %v277, %v907
    %v954 = vmul.f32 %v278, %v907
    %v955 = vmul.f32 %v279, %v907
    %v956 = vmul.f32 %v280, %v907
    %v957 = vmul.f32 %v281, %v907
    %v958 = vmul.f32 %v282, %v907
    %v959 = vmul.f32 %v284, %v907
    %v960 = vmul.f32 %v285, %v907
    %v961 = vmul.f32 %v286, %v907
    %v962 = vmul.f32 %v287, %v907
    %v963 = vmul.f32 %v288, %v907
    %v964 = vmul.f32 %v289, %v907
    %v965 = vmul.f32 %v290, %v907
    %v966 = vadd.f32 %v846, %v909
    %v967 = vadd.f32 %v846, %v910
    %v968 = vadd.f32 %v846, %v911
    %v969 = vadd.f32 %v846, %v912
    %v970 = vadd.f32 %v846, %v913
    %v971 = vadd.f32 %v846, %v914
    %v972 = vadd.f32 %v846, %v915
    %v973 = vadd.f32 %v846, %v916
    %v974 = vadd.f32 %v847, %v909
    %v975 = vadd.f32 %v848, %v917
    %v976 = vadd.f32 %v849, %v918
    %v977 = vadd.f32 %v850, %v919
    %v978 = vadd.f32 %v851, %v920
    %v979 = vadd.f32 %v852, %v921
    %v980 = vadd.f32 %v853, %v922
    %v981 = vadd.f32 %v854, %v923
    %v982 = vadd.f32 %v855, %v909
    %v983 = vadd.f32 %v856, %v924
    %v984 = vadd.f32 %v857, %v925
    %v985 = vadd.f32 %v858, %v926
    %v986 = vadd.f32 %v859, %v927
    %v987 = vadd.f32 %v860, %v928
    %v988 = vadd.f32 %v861, %v929
    %v989 = vadd.f32 %v862, %v930
    %v990 = vadd.f32 %v863, %v909
    %v991 = vadd.f32 %v864, %v931
    %v992 = vadd.f32 %v865, %v932
    %v993 = vadd.f32 %v866, %v933
    %v994 = vadd.f32 %v867, %v934
    %v995 = vadd.f32 %v868, %v935
    %v996 = vadd.f32 %v869, %v936
    %v997 = vadd.f32 %v870, %v937
    %v998 = vadd.f32 %v871, %v909
    %v999 = vadd.f32 %v872, %v938
    %v1000 = vadd.f32 %v873, %v939
    %v1001 = vadd.f32 %v874, %v940
    %v1002 = vadd.f32 %v875, %v941
    %v1003 = vadd.f32 %v876, %v942
    %v1004 = vadd.f32 %v877, %v943
    %v1005 = vadd.f32 %v878, %v944
    %v1006 = vadd.f32 %v879, %v909
    %v1007 = vadd.f32 %v880, %v945
    %v1008 = vadd.f32 %v881, %v946
    %v1009 = vadd.f32 %v882, %v947
    %v1010 = vadd.f32 %v883, %v948
    %v1011 = vadd.f32 %v884, %v949
    %v1012 = vadd.f32 %v885, %v950
    %v1013 = vadd.f32 %v886, %v951
    %v1014 = vadd.f32 %v887, %v909
    %v1015 = vadd.f32 %v888, %v952
    %v1016 = vadd.f32 %v889, %v953
    %v1017 = vadd.f32 %v890, %v954
    %v1018 = vadd.f32 %v891, %v955
    %v1019 = vadd.f32 %v892, %v956
    %v1020 = vadd.f32 %v893, %v957
    %v1021 = vadd.f32 %v894, %v958
    %v1022 = vadd.f32 %v895, %v909
    %v1023 = vadd.f32 %v896, %v959
    %v1024 = vadd.f32 %v897, %v960
    %v1025 = vadd.f32 %v898, %v961
    %v1026 = vadd.f32 %v899, %v962
    %v1027 = vadd.f32 %v900, %v963
    %v1028 = vadd.f32 %v901, %v964
    %v1029 = vadd.f32 %v902, %v965
    %v1031 = vlaneseq
    %v1032 = vshrl.u32 %v1031, 7
    %v1033 = vsub.s32 0, %v1032
    %v1034 = vrot.slane %v552, %v1033
    %v1036 = vmul.f32 %v100, %v1034
    %v1037 = vmul.f32 %v101, %v1034
    %v1038 = vmul.f32 %v102, %v1034
    %v1039 = vmul.f32 %v103, %v1034
    %v1040 = vmul.f32 %v104, %v1034
    %v1041 = vmul.f32 %v105, %v1034
    %v1042 = vmul.f32 %v106, %v1034
    %v1043 = vmul.f32 %v107, %v1034
    %v1044 = vmul.f32 %v108, %v1034
    %v1045 = vmul.f32 %v109, %v1034
    %v1046 = vmul.f32 %v110, %v1034
    %v1047 = vmul.f32 %v111, %v1034
    %v1048 = vmul.f32 %v112, %v1034
    %v1049 = vmul.f32 %v113, %v1034
    %v1050 = vmul.f32 %v114, %v1034
    %v1051 = vmul.f32 %v115, %v1034
    %v1052 = vmul.f32 %v116, %v1034
    %v1053 = vmul.f32 %v117, %v1034
    %v1054 = vmul.f32 %v118, %v1034
    %v1055 = vmul.f32 %v119, %v1034
    %v1056 = vmul.f32 %v120, %v1034
    %v1057 = vmul.f32 %v121, %v1034
    %v1058 = vmul.f32 %v122, %v1034
    %v1059 = vmul.f32 %v123, %v1034
    %v1060 = vmul.f32 %v124, %v1034
    %v1061 = vmul.f32 %v125, %v1034
    %v1062 = vmul.f32 %v126, %v1034
    %v1063 = vmul.f32 %v127, %v1034
    %v1064 = vmul.f32 %v128, %v1034
    %v1065 = vmul.f32 %v129, %v1034
    %v1066 = vmul.f32 %v130, %v1034
    %v1067 = vmul.f32 %v131, %v1034
    %v1068 = vmul.f32 %v132, %v1034
    %v1069 = vmul.f32 %v133, %v1034
    %v1070 = vmul.f32 %v134, %v1034
    %v1071 = vmul.f32 %v135, %v1034
    %v1072 = vmul.f32 %v136, %v1034
    %v1073 = vmul.f32 %v137, %v1034
    %v1074 = vmul.f32 %v138, %v1034
    %v1075 = vmul.f32 %v139, %v1034
    %v1076 = vmul.f32 %v140, %v1034
    %v1077 = vmul.f32 %v141, %v1034
    %v1078 = vmul.f32 %v142, %v1034
    %v1079 = vmul.f32 %v143, %v1034
    %v1080 = vmul.f32 %v144, %v1034
    %v1081 = vmul.f32 %v145, %v1034
    %v1082 = vmul.f32 %v146, %v1034
    %v1083 = vmul.f32 %v147, %v1034
    %v1084 = vmul.f32 %v148, %v1034
    %v1085 = vmul.f32 %v149, %v1034
    %v1086 = vmul.f32 %v150, %v1034
    %v1087 = vmul.f32 %v151, %v1034
    %v1088 = vmul.f32 %v152, %v1034
    %v1089 = vmul.f32 %v153, %v1034
    %v1090 = vmul.f32 %v154, %v1034
    %v1091 = vmul.f32 %v155, %v1034
    %v1092 = vmul.f32 %v156, %v1034
    %v1093 = vmul.f32 %v157, %v1034
    %v1094 = vmul.f32 %v158, %v1034
    %v1095 = vmul.f32 %v159, %v1034
    %v1096 = vmul.f32 %v160, %v1034
    %v1097 = vmul.f32 %v161, %v1034
    %v1098 = vmul.f32 %v162, %v1034
    %v1099 = vmul.f32 %v163, %v1034
    %v1100 = vadd.f32 %v966, %v1036
    %v1101 = vadd.f32 %v967, %v1037
    %v1102 = vadd.f32 %v968, %v1038
    %v1103 = vadd.f32 %v969, %v1039
    %v1104 = vadd.f32 %v970, %v1040
    %v1105 = vadd.f32 %v971, %v1041
    %v1106 = vadd.f32 %v972, %v1042
    %v1107 = vadd.f32 %v973, %v1043
    %v1108 = vadd.f32 %v974, %v1044
    %v1109 = vadd.f32 %v975, %v1045
    %v1110 = vadd.f32 %v976, %v1046
    %v1111 = vadd.f32 %v977, %v1047
    %v1112 = vadd.f32 %v978, %v1048
    %v1113 = vadd.f32 %v979, %v1049
    %v1114 = vadd.f32 %v980, %v1050
    %v1115 = vadd.f32 %v981, %v1051
    %v1116 = vadd.f32 %v982, %v1052
    %v1117 = vadd.f32 %v983, %v1053
    %v1118 = vadd.f32 %v984, %v1054
    %v1119 = vadd.f32 %v985, %v1055
    %v1120 = vadd.f32 %v986, %v1056
    %v1121 = vadd.f32 %v987, %v1057
    %v1122 = vadd.f32 %v988, %v1058
    %v1123 = vadd.f32 %v989, %v1059
    %v1124 = vadd.f32 %v990, %v1060
    %v1125 = vadd.f32 %v991, %v1061
    %v1126 = vadd.f32 %v992, %v1062
    %v1127 = vadd.f32 %v993, %v1063
    %v1128 = vadd.f32 %v994, %v1064
    %v1129 = vadd.f32 %v995, %v1065
    %v1130 = vadd.f32 %v996, %v1066
    %v1131 = vadd.f32 %v997, %v1067
    %v1132 = vadd.f32 %v998, %v1068
    %v1133 = vadd.f32 %v999, %v1069
    %v1134 = vadd.f32 %v1000, %v1070
    %v1135 = vadd.f32 %v1001, %v1071
    %v1136 = vadd.f32 %v1002, %v1072
    %v1137 = vadd.f32 %v1003, %v1073
    %v1138 = vadd.f32 %v1004, %v1074
    %v1139 = vadd.f32 %v1005, %v1075
    %v1140 = vadd.f32 %v1006, %v1076
    %v1141 = vadd.f32 %v1007, %v1077
    %v1142 = vadd.f32 %v1008, %v1078
    %v1143 = vadd.f32 %v1009, %v1079
    %v1144 = vadd.f32 %v1010, %v1080
    %v1145 = vadd.f32 %v1011, %v1081
    %v1146 = vadd.f32 %v1012, %v1082
    %v1147 = vadd.f32 %v1013, %v1083
    %v1148 = vadd.f32 %v1014, %v1084
    %v1149 = vadd.f32 %v1015, %v1085
    %v1150 = vadd.f32 %v1016, %v1086
    %v1151 = vadd.f32 %v1017, %v1087
    %v1152 = vadd.f32 %v1018, %v1088
    %v1153 = vadd.f32 %v1019, %v1089
    %v1154 = vadd.f32 %v1020, %v1090
    %v1155 = vadd.f32 %v1021, %v1091
    %v1156 = vadd.f32 %v1022, %v1092
    %v1157 = vadd.f32 %v1023, %v1093
    %v1158 = vadd.f32 %v1024, %v1094
    %v1159 = vadd.f32 %v1025, %v1095
    %v1160 = vadd.f32 %v1026, %v1096
    %v1161 = vadd.f32 %v1027, %v1097
    %v1162 = vadd.f32 %v1028, %v1098
    %v1163 = vadd.f32 %v1029, %v1099
    %v1165 = vlaneseq
    %v1166 = vshrl.u32 %v1165, 7
    %v1167 = vsub.s32 0, %v1166
    %v1168 = vrot.slane %v553, %v1167
    %v1170 = vmul.f32 %v228, %v1168
    %v1171 = vmul.f32 %v229, %v1168
    %v1172 = vmul.f32 %v230, %v1168
    %v1173 = vmul.f32 %v231, %v1168
    %v1174 = vmul.f32 %v232, %v1168
    %v1175 = vmul.f32 %v233, %v1168
    %v1176 = vmul.f32 %v234, %v1168
    %v1177 = vmul.f32 %v235, %v1168
    %v1178 = vmul.f32 %v236, %v1168
    %v1179 = vmul.f32 %v237, %v1168
    %v1180 = vmul.f32 %v238, %v1168
    %v1181 = vmul.f32 %v239, %v1168
    %v1182 = vmul.f32 %v240, %v1168
    %v1183 = vmul.f32 %v241, %v1168
    %v1184 = vmul.f32 %v242, %v1168
    %v1185 = vmul.f32 %v243, %v1168
    %v1186 = vmul.f32 %v244, %v1168
    %v1187 = vmul.f32 %v245, %v1168
    %v1188 = vmul.f32 %v246, %v1168
    %v1189 = vmul.f32 %v247, %v1168
    %v1190 = vmul.f32 %v248, %v1168
    %v1191 = vmul.f32 %v249, %v1168
    %v1192 = vmul.f32 %v250, %v1168
    %v1193 = vmul.f32 %v251, %v1168
    %v1194 = vmul.f32 %v252, %v1168
    %v1195 = vmul.f32 %v253, %v1168
    %v1196 = vmul.f32 %v254, %v1168
    %v1197 = vmul.f32 %v255, %v1168
    %v1198 = vmul.f32 %v256, %v1168
    %v1199 = vmul.f32 %v257, %v1168
    %v1200 = vmul.f32 %v258, %v1168
    %v1201 = vmul.f32 %v259, %v1168
    %v1202 = vmul.f32 %v260, %v1168
    %v1203 = vmul.f32 %v261, %v1168
    %v1204 = vmul.f32 %v262, %v1168
    %v1205 = vmul.f32 %v263, %v1168
    %v1206 = vmul.f32 %v264, %v1168
    %v1207 = vmul.f32 %v265, %v1168
    %v1208 = vmul.f32 %v266, %v1168
    %v1209 = vmul.f32 %v267, %v1168
    %v1210 = vmul.f32 %v268, %v1168
    %v1211 = vmul.f32 %v269, %v1168
    %v1212 = vmul.f32 %v270, %v1168
    %v1213 = vmul.f32 %v271, %v1168
    %v1214 = vmul.f32 %v272, %v1168
    %v1215 = vmul.f32 %v273, %v1168
    %v1216 = vmul.f32 %v274, %v1168
    %v1217 = vmul.f32 %v275, %v1168
    %v1218 = vmul.f32 %v276, %v1168
    %v1219 = vmul.f32 %v277, %v1168
    %v1220 = vmul.f32 %v278, %v1168
    %v1221 = vmul.f32 %v279, %v1168
    %v1222 = vmul.f32 %v280, %v1168
    %v1223 = vmul.f32 %v281, %v1168
    %v1224 = vmul.f32 %v282, %v1168
    %v1225 = vmul.f32 %v283, %v1168
    %v1226 = vmul.f32 %v284, %v1168
    %v1227 = vmul.f32 %v285, %v1168
    %v1228 = vmul.f32 %v286, %v1168
    %v1229 = vmul.f32 %v287, %v1168
    %v1230 = vmul.f32 %v288, %v1168
    %v1231 = vmul.f32 %v289, %v1168
    %v1232 = vmul.f32 %v290, %v1168
    %v1233 = vmul.f32 %v291, %v1168
    %v1234 = vadd.f32 %v1100, %v1170
    %v1235 = vadd.f32 %v1101, %v1171
    %v1236 = vadd.f32 %v1102, %v1172
    %v1237 = vadd.f32 %v1103, %v1173
    %v1238 = vadd.f32 %v1104, %v1174
    %v1239 = vadd.f32 %v1105, %v1175
    %v1240 = vadd.f32 %v1106, %v1176
    %v1241 = vadd.f32 %v1107, %v1177
    %v1242 = vadd.f32 %v1108, %v1178
    %v1243 = vadd.f32 %v1109, %v1179
    %v1244 = vadd.f32 %v1110, %v1180
    %v1245 = vadd.f32 %v1111, %v1181
    %v1246 = vadd.f32 %v1112, %v1182
    %v1247 = vadd.f32 %v1113, %v1183
    %v1248 = vadd.f32 %v1114, %v1184
    %v1249 = vadd.f32 %v1115, %v1185
    %v1250 = vadd.f32 %v1116, %v1186
    %v1251 = vadd.f32 %v1117, %v1187
    %v1252 = vadd.f32 %v1118, %v1188
    %v1253 = vadd.f32 %v1119, %v1189
    %v1254 = vadd.f32 %v1120, %v1190
    %v1255 = vadd.f32 %v1121, %v1191
    %v1256 = vadd.f32 %v1122, %v1192
    %v1257 = vadd.f32 %v1123, %v1193
    %v1258 = vadd.f32 %v1124, %v1194
    %v1259 = vadd.f32 %v1125, %v1195
    %v1260 = vadd.f32 %v1126, %v1196
    %v1261 = vadd.f32 %v1127, %v1197
    %v1262 = vadd.f32 %v1128, %v1198
    %v1263 = vadd.f32 %v1129, %v1199
    %v1264 = vadd.f32 %v1130, %v1200
    %v1265 = vadd.f32 %v1131, %v1201
    %v1266 = vadd.f32 %v1132, %v1202
    %v1267 = vadd.f32 %v1133, %v1203
    %v1268 = vadd.f32 %v1134, %v1204
    %v1269 = vadd.f32 %v1135, %v1205
    %v1270 = vadd.f32 %v1136, %v1206
    %v1271 = vadd.f32 %v1137, %v1207
    %v1272 = vadd.f32 %v1138, %v1208
    %v1273 = vadd.f32 %v1139, %v1209
    %v1274 = vadd.f32 %v1140, %v1210
    %v1275 = vadd.f32 %v1141, %v1211
    %v1276 = vadd.f32 %v1142, %v1212
    %v1277 = vadd.f32 %v1143, %v1213
    %v1278 = vadd.f32 %v1144, %v1214
    %v1279 = vadd.f32 %v1145, %v1215
    %v1280 = vadd.f32 %v1146, %v1216
    %v1281 = vadd.f32 %v1147, %v1217
    %v1282 = vadd.f32 %v1148, %v1218
    %v1283 = vadd.f32 %v1149, %v1219
    %v1284 = vadd.f32 %v1150, %v1220
    %v1285 = vadd.f32 %v1151, %v1221
    %v1286 = vadd.f32 %v1152, %v1222
    %v1287 = vadd.f32 %v1153, %v1223
    %v1288 = vadd.f32 %v1154, %v1224
    %v1289 = vadd.f32 %v1155, %v1225
    %v1290 = vadd.f32 %v1156, %v1226
    %v1291 = vadd.f32 %v1157, %v1227
    %v1292 = vadd.f32 %v1158, %v1228
    %v1293 = vadd.f32 %v1159, %v1229
    %v1294 = vadd.f32 %v1160, %v1230
    %v1295 = vadd.f32 %v1161, %v1231
    %v1296 = vadd.f32 %v1162, %v1232
    %v1297 = vadd.f32 %v1163, %v1233
    %v1299 = vlaneseq
    %v1300 = vshrl.u32 %v1299, 7
    %v1301 = vsub.s32 0, %v1300
    %v1302 = vrot.slane %v554, %v1301
    %v1304 = vmul.f32 %v1302, 0.0
    %v1305 = vmul.f32 %v484, %v1302
    %v1306 = vmul.f32 %v485, %v1302
    %v1307 = vmul.f32 %v486, %v1302
    %v1308 = vmul.f32 %v487, %v1302
    %v1309 = vmul.f32 %v488, %v1302
    %v1310 = vmul.f32 %v489, %v1302
    %v1311 = vmul.f32 %v490, %v1302
    %v1312 = vmul.f32 %v492, %v1302
    %v1313 = vmul.f32 %v493, %v1302
    %v1314 = vmul.f32 %v494, %v1302
    %v1315 = vmul.f32 %v495, %v1302
    %v1316 = vmul.f32 %v496, %v1302
    %v1317 = vmul.f32 %v497, %v1302
    %v1318 = vmul.f32 %v498, %v1302
    %v1319 = vmul.f32 %v500, %v1302
    %v1320 = vmul.f32 %v501, %v1302
    %v1321 = vmul.f32 %v502, %v1302
    %v1322 = vmul.f32 %v503, %v1302
    %v1323 = vmul.f32 %v504, %v1302
    %v1324 = vmul.f32 %v505, %v1302
    %v1325 = vmul.f32 %v506, %v1302
    %v1326 = vmul.f32 %v508, %v1302
    %v1327 = vmul.f32 %v509, %v1302
    %v1328 = vmul.f32 %v510, %v1302
    %v1329 = vmul.f32 %v511, %v1302
    %v1330 = vmul.f32 %v512, %v1302
    %v1331 = vmul.f32 %v513, %v1302
    %v1332 = vmul.f32 %v514, %v1302
    %v1333 = vmul.f32 %v516, %v1302
    %v1334 = vmul.f32 %v517, %v1302
    %v1335 = vmul.f32 %v518, %v1302
    %v1336 = vmul.f32 %v519, %v1302
    %v1337 = vmul.f32 %v520, %v1302
    %v1338 = vmul.f32 %v521, %v1302
    %v1339 = vmul.f32 %v522, %v1302
    %v1340 = vmul.f32 %v524, %v1302
    %v1341 = vmul.f32 %v525, %v1302
    %v1342 = vmul.f32 %v526, %v1302
    %v1343 = vmul.f32 %v527, %v1302
    %v1344 = vmul.f32 %v528, %v1302
    %v1345 = vmul.f32 %v529, %v1302
    %v1346 = vmul.f32 %v530, %v1302
    %v1347 = vmul.f32 %v532, %v1302
    %v1348 = vmul.f32 %v533, %v1302
    %v1349 = vmul.f32 %v534, %v1302
    %v1350 = vmul.f32 %v535, %v1302
    %v1351 = vmul.f32 %v536, %v1302
    %v1352 = vmul.f32 %v537, %v1302
    %v1353 = vmul.f32 %v538, %v1302
    %v1354 = vmul.f32 %v540, %v1302
    %v1355 = vmul.f32 %v541, %v1302
    %v1356 = vmul.f32 %v542, %v1302
    %v1357 = vmul.f32 %v543, %v1302
    %v1358 = vmul.f32 %v544, %v1302
    %v1359 = vmul.f32 %v545, %v1302
    %v1360 = vmul.f32 %v546, %v1302
    %v1361 = vadd.f32 %v1234, %v1304
    %v1362 = vadd.f32 %v1235, %v1305
    %v1363 = vadd.f32 %v1236, %v1306
    %v1364 = vadd.f32 %v1237, %v1307
    %v1365 = vadd.f32 %v1238, %v1308
    %v1366 = vadd.f32 %v1239, %v1309
    %v1367 = vadd.f32 %v1240, %v1310
    %v1368 = vadd.f32 %v1241, %v1311
    %v1369 = vadd.f32 %v1242, %v1304
    %v1370 = vadd.f32 %v1243, %v1312
    %v1371 = vadd.f32 %v1244, %v1313
    %v1372 = vadd.f32 %v1245, %v1314
    %v1373 = vadd.f32 %v1246, %v1315
    %v1374 = vadd.f32 %v1247, %v1316
    %v1375 = vadd.f32 %v1248, %v1317
    %v1376 = vadd.f32 %v1249, %v1318
    %v1377 = vadd.f32 %v1250, %v1304
    %v1378 = vadd.f32 %v1251, %v1319
    %v1379 = vadd.f32 %v1252, %v1320
    %v1380 = vadd.f32 %v1253, %v1321
    %v1381 = vadd.f32 %v1254, %v1322
    %v1382 = vadd.f32 %v1255, %v1323
    %v1383 = vadd.f32 %v1256, %v1324
    %v1384 = vadd.f32 %v1257, %v1325
    %v1385 = vadd.f32 %v1258, %v1304
    %v1386 = vadd.f32 %v1259, %v1326
    %v1387 = vadd.f32 %v1260, %v1327
    %v1388 = vadd.f32 %v1261, %v1328
    %v1389 = vadd.f32 %v1262, %v1329
    %v1390 = vadd.f32 %v1263, %v1330
    %v1391 = vadd.f32 %v1264, %v1331
    %v1392 = vadd.f32 %v1265, %v1332
    %v1393 = vadd.f32 %v1266, %v1304
    %v1394 = vadd.f32 %v1267, %v1333
    %v1395 = vadd.f32 %v1268, %v1334
    %v1396 = vadd.f32 %v1269, %v1335
    %v1397 = vadd.f32 %v1270, %v1336
    %v1398 = vadd.f32 %v1271, %v1337
    %v1399 = vadd.f32 %v1272, %v1338
    %v1400 = vadd.f32 %v1273, %v1339
    %v1401 = vadd.f32 %v1274, %v1304
    %v1402 = vadd.f32 %v1275, %v1340
    %v1403 = vadd.f32 %v1276, %v1341
    %v1404 = vadd.f32 %v1277, %v1342
    %v1405 = vadd.f32 %v1278, %v1343
    %v1406 = vadd.f32 %v1279, %v1344
    %v1407 = vadd.f32 %v1280, %v1345
    %v1408 = vadd.f32 %v1281, %v1346
    %v1409 = vadd.f32 %v1282, %v1304
    %v1410 = vadd.f32 %v1283, %v1347
    %v1411 = vadd.f32 %v1284, %v1348
    %v1412 = vadd.f32 %v1285, %v1349
    %v1413 = vadd.f32 %v1286, %v1350
    %v1414 = vadd.f32 %v1287, %v1351
    %v1415 = vadd.f32 %v1288, %v1352
    %v1416 = vadd.f32 %v1289, %v1353
    %v1417 = vadd.f32 %v1290, %v1304
    %v1418 = vadd.f32 %v1291, %v1354
    %v1419 = vadd.f32 %v1292, %v1355
    %v1420 = vadd.f32 %v1293, %v1356
    %v1421 = vadd.f32 %v1294, %v1357
    %v1422 = vadd.f32 %v1295, %v1358
    %v1423 = vadd.f32 %v1296, %v1359
    %v1424 = vadd.f32 %v1297, %v1360
    %v1426 = vlaneseq
    %v1427 = vshrl.u32 %v1426, 7
    %v1428 = vsub.s32 0, %v1427
    %v1429 = vrot.slane %v555, %v1428
    %v1431 = vmul.f32 %v356, %v1429
    %v1432 = vmul.f32 %v357, %v1429
    %v1433 = vmul.f32 %v358, %v1429
    %v1434 = vmul.f32 %v359, %v1429
    %v1435 = vmul.f32 %v360, %v1429
    %v1436 = vmul.f32 %v361, %v1429
    %v1437 = vmul.f32 %v362, %v1429
    %v1438 = vmul.f32 %v363, %v1429
    %v1439 = vmul.f32 %v364, %v1429
    %v1440 = vmul.f32 %v365, %v1429
    %v1441 = vmul.f32 %v366, %v1429
    %v1442 = vmul.f32 %v367, %v1429
    %v1443 = vmul.f32 %v368, %v1429
    %v1444 = vmul.f32 %v369, %v1429
    %v1445 = vmul.f32 %v370, %v1429
    %v1446 = vmul.f32 %v371, %v1429
    %v1447 = vmul.f32 %v372, %v1429
    %v1448 = vmul.f32 %v373, %v1429
    %v1449 = vmul.f32 %v374, %v1429
    %v1450 = vmul.f32 %v375, %v1429
    %v1451 = vmul.f32 %v376, %v1429
    %v1452 = vmul.f32 %v377, %v1429
    %v1453 = vmul.f32 %v378, %v1429
    %v1454 = vmul.f32 %v379, %v1429
    %v1455 = vmul.f32 %v380, %v1429
    %v1456 = vmul.f32 %v381, %v1429
    %v1457 = vmul.f32 %v382, %v1429
    %v1458 = vmul.f32 %v383, %v1429
    %v1459 = vmul.f32 %v384, %v1429
    %v1460 = vmul.f32 %v385, %v1429
    %v1461 = vmul.f32 %v386, %v1429
    %v1462 = vmul.f32 %v387, %v1429
    %v1463 = vmul.f32 %v388, %v1429
    %v1464 = vmul.f32 %v389, %v1429
    %v1465 = vmul.f32 %v390, %v1429
    %v1466 = vmul.f32 %v391, %v1429
    %v1467 = vmul.f32 %v392, %v1429
    %v1468 = vmul.f32 %v393, %v1429
    %v1469 = vmul.f32 %v394, %v1429
    %v1470 = vmul.f32 %v395, %v1429
    %v1471 = vmul.f32 %v396, %v1429
    %v1472 = vmul.f32 %v397, %v1429
    %v1473 = vmul.f32 %v398, %v1429
    %v1474 = vmul.f32 %v399, %v1429
    %v1475 = vmul.f32 %v400, %v1429
    %v1476 = vmul.f32 %v401, %v1429
    %v1477 = vmul.f32 %v402, %v1429
    %v1478 = vmul.f32 %v403, %v1429
    %v1479 = vmul.f32 %v404, %v1429
    %v1480 = vmul.f32 %v405, %v1429
    %v1481 = vmul.f32 %v406, %v1429
    %v1482 = vmul.f32 %v407, %v1429
    %v1483 = vmul.f32 %v408, %v1429
    %v1484 = vmul.f32 %v409, %v1429
    %v1485 = vmul.f32 %v410, %v1429
    %v1486 = vmul.f32 %v411, %v1429
    %v1487 = vmul.f32 %v412, %v1429
    %v1488 = vmul.f32 %v413, %v1429
    %v1489 = vmul.f32 %v414, %v1429
    %v1490 = vmul.f32 %v415, %v1429
    %v1491 = vmul.f32 %v416, %v1429
    %v1492 = vmul.f32 %v417, %v1429
    %v1493 = vmul.f32 %v418, %v1429
    %v1494 = vmul.f32 %v419, %v1429
    %v1495 = vadd.f32 %v1361, %v1431
    %v1496 = vadd.f32 %v1362, %v1432
    %v1497 = vadd.f32 %v1363, %v1433
    %v1498 = vadd.f32 %v1364, %v1434
    %v1499 = vadd.f32 %v1365, %v1435
    %v1500 = vadd.f32 %v1366, %v1436
    %v1501 = vadd.f32 %v1367, %v1437
    %v1502 = vadd.f32 %v1368, %v1438
    %v1503 = vadd.f32 %v1369, %v1439
    %v1504 = vadd.f32 %v1370, %v1440
    %v1505 = vadd.f32 %v1371, %v1441
    %v1506 = vadd.f32 %v1372, %v1442
    %v1507 = vadd.f32 %v1373, %v1443
    %v1508 = vadd.f32 %v1374, %v1444
    %v1509 = vadd.f32 %v1375, %v1445
    %v1510 = vadd.f32 %v1376, %v1446
    %v1511 = vadd.f32 %v1377, %v1447
    %v1512 = vadd.f32 %v1378, %v1448
    %v1513 = vadd.f32 %v1379, %v1449
    %v1514 = vadd.f32 %v1380, %v1450
    %v1515 = vadd.f32 %v1381, %v1451
    %v1516 = vadd.f32 %v1382, %v1452
    %v1517 = vadd.f32 %v1383, %v1453
    %v1518 = vadd.f32 %v1384, %v1454
    %v1519 = vadd.f32 %v1385, %v1455
    %v1520 = vadd.f32 %v1386, %v1456
    %v1521 = vadd.f32 %v1387, %v1457
    %v1522 = vadd.f32 %v1388, %v1458
    %v1523 = vadd.f32 %v1389, %v1459
    %v1524 = vadd.f32 %v1390, %v1460
    %v1525 = vadd.f32 %v1391, %v1461
    %v1526 = vadd.f32 %v1392, %v1462
    %v1527 = vadd.f32 %v1393, %v1463
    %v1528 = vadd.f32 %v1394, %v1464
    %v1529 = vadd.f32 %v1395, %v1465
    %v1530 = vadd.f32 %v1396, %v1466
    %v1531 = vadd.f32 %v1397, %v1467
    %v1532 = vadd.f32 %v1398, %v1468
    %v1533 = vadd.f32 %v1399, %v1469
    %v1534 = vadd.f32 %v1400, %v1470
    %v1535 = vadd.f32 %v1401, %v1471
    %v1536 = vadd.f32 %v1402, %v1472
    %v1537 = vadd.f32 %v1403, %v1473
    %v1538 = vadd.f32 %v1404, %v1474
    %v1539 = vadd.f32 %v1405, %v1475
    %v1540 = vadd.f32 %v1406, %v1476
    %v1541 = vadd.f32 %v1407, %v1477
    %v1542 = vadd.f32 %v1408, %v1478
    %v1543 = vadd.f32 %v1409, %v1479
    %v1544 = vadd.f32 %v1410, %v1480
    %v1545 = vadd.f32 %v1411, %v1481
    %v1546 = vadd.f32 %v1412, %v1482
    %v1547 = vadd.f32 %v1413, %v1483
    %v1548 = vadd.f32 %v1414, %v1484
    %v1549 = vadd.f32 %v1415, %v1485
    %v1550 = vadd.f32 %v1416, %v1486
    %v1551 = vadd.f32 %v1417, %v1487
    %v1552 = vadd.f32 %v1418, %v1488
    %v1553 = vadd.f32 %v1419, %v1489
    %v1554 = vadd.f32 %v1420, %v1490
    %v1555 = vadd.f32 %v1421, %v1491
    %v1556 = vadd.f32 %v1422, %v1492
    %v1557 = vadd.f32 %v1423, %v1493
    %v1558 = vadd.f32 %v1424, %v1494
    %v1560 = vlaneseq
    %v1561 = vshrl.u32 %v1560, 7
    %v1562 = vsub.s32 0, %v1561
    %v1563 = vrot.slane %v556, %v1562
    %v1565 = vmul.f32 %v484, %v1563
    %v1566 = vmul.f32 %v485, %v1563
    %v1567 = vmul.f32 %v486, %v1563
    %v1568 = vmul.f32 %v487, %v1563
    %v1569 = vmul.f32 %v488, %v1563
    %v1570 = vmul.f32 %v489, %v1563
    %v1571 = vmul.f32 %v490, %v1563
    %v1572 = vmul.f32 %v491, %v1563
    %v1573 = vmul.f32 %v492, %v1563
    %v1574 = vmul.f32 %v493, %v1563
    %v1575 = vmul.f32 %v494, %v1563
    %v1576 = vmul.f32 %v495, %v1563
    %v1577 = vmul.f32 %v496, %v1563
    %v1578 = vmul.f32 %v497, %v1563
    %v1579 = vmul.f32 %v498, %v1563
    %v1580 = vmul.f32 %v499, %v1563
    %v1581 = vmul.f32 %v500, %v1563
    %v1582 = vmul.f32 %v501, %v1563
    %v1583 = vmul.f32 %v502, %v1563
    %v1584 = vmul.f32 %v503, %v1563
    %v1585 = vmul.f32 %v504, %v1563
    %v1586 = vmul.f32 %v505, %v1563
    %v1587 = vmul.f32 %v506, %v1563
    %v1588 = vmul.f32 %v507, %v1563
    %v1589 = vmul.f32 %v508, %v1563
    %v1590 = vmul.f32 %v509, %v1563
    %v1591 = vmul.f32 %v510, %v1563
    %v1592 = vmul.f32 %v511, %v1563
    %v1593 = vmul.f32 %v512, %v1563
    %v1594 = vmul.f32 %v513, %v1563
    %v1595 = vmul.f32 %v514, %v1563
    %v1596 = vmul.f32 %v515, %v1563
    %v1597 = vmul.f32 %v516, %v1563
    %v1598 = vmul.f32 %v517, %v1563
    %v1599 = vmul.f32 %v518, %v1563
    %v1600 = vmul.f32 %v519, %v1563
    %v1601 = vmul.f32 %v520, %v1563
    %v1602 = vmul.f32 %v521, %v1563
    %v1603 = vmul.f32 %v522, %v1563
    %v1604 = vmul.f32 %v523, %v1563
    %v1605 = vmul.f32 %v524, %v1563
    %v1606 = vmul.f32 %v525, %v1563
    %v1607 = vmul.f32 %v526, %v1563
    %v1608 = vmul.f32 %v527, %v1563
    %v1609 = vmul.f32 %v528, %v1563
    %v1610 = vmul.f32 %v529, %v1563
    %v1611 = vmul.f32 %v530, %v1563
    %v1612 = vmul.f32 %v531, %v1563
    %v1613 = vmul.f32 %v532, %v1563
    %v1614 = vmul.f32 %v533, %v1563
    %v1615 = vmul.f32 %v534, %v1563
    %v1616 = vmul.f32 %v535, %v1563
    %v1617 = vmul.f32 %v536, %v1563
    %v1618 = vmul.f32 %v537, %v1563
    %v1619 = vmul.f32 %v538, %v1563
    %v1620 = vmul.f32 %v539, %v1563
    %v1621 = vmul.f32 %v540, %v1563
    %v1622 = vmul.f32 %v541, %v1563
    %v1623 = vmul.f32 %v542, %v1563
    %v1624 = vmul.f32 %v543, %v1563
    %v1625 = vmul.f32 %v544, %v1563
    %v1626 = vmul.f32 %v545, %v1563
    %v1627 = vmul.f32 %v546, %v1563
    %v1628 = vmul.f32 %v547, %v1563
    %v1629 = vadd.f32 %v1495, %v1565
    %v1630 = vadd.f32 %v1496, %v1566
    %v1631 = vadd.f32 %v1497, %v1567
    %v1632 = vadd.f32 %v1498, %v1568
    %v1633 = vadd.f32 %v1499, %v1569
    %v1634 = vadd.f32 %v1500, %v1570
    %v1635 = vadd.f32 %v1501, %v1571
    %v1636 = vadd.f32 %v1502, %v1572
    %v1637 = vadd.f32 %v1503, %v1573
    %v1638 = vadd.f32 %v1504, %v1574
    %v1639 = vadd.f32 %v1505, %v1575
    %v1640 = vadd.f32 %v1506, %v1576
    %v1641 = vadd.f32 %v1507, %v1577
    %v1642 = vadd.f32 %v1508, %v1578
    %v1643 = vadd.f32 %v1509, %v1579
    %v1644 = vadd.f32 %v1510, %v1580
    %v1645 = vadd.f32 %v1511, %v1581
    %v1646 = vadd.f32 %v1512, %v1582
    %v1647 = vadd.f32 %v1513, %v1583
    %v1648 = vadd.f32 %v1514, %v1584
    %v1649 = vadd.f32 %v1515, %v1585
    %v1650 = vadd.f32 %v1516, %v1586
    %v1651 = vadd.f32 %v1517, %v1587
    %v1652 = vadd.f32 %v1518, %v1588
    %v1653 = vadd.f32 %v1519, %v1589
    %v1654 = vadd.f32 %v1520, %v1590
    %v1655 = vadd.f32 %v1521, %v1591
    %v1656 = vadd.f32 %v1522, %v1592
    %v1657 = vadd.f32 %v1523, %v1593
    %v1658 = vadd.f32 %v1524, %v1594
    %v1659 = vadd.f32 %v1525, %v1595
    %v1660 = vadd.f32 %v1526, %v1596
    %v1661 = vadd.f32 %v1527, %v1597
    %v1662 = vadd.f32 %v1528, %v1598
    %v1663 = vadd.f32 %v1529, %v1599
    %v1664 = vadd.f32 %v1530, %v1600
    %v1665 = vadd.f32 %v1531, %v1601
    %v1666 = vadd.f32 %v1532, %v1602
    %v1667 = vadd.f32 %v1533, %v1603
    %v1668 = vadd.f32 %v1534, %v1604
    %v1669 = vadd.f32 %v1535, %v1605
    %v1670 = vadd.f32 %v1536, %v1606
    %v1671 = vadd.f32 %v1537, %v1607
    %v1672 = vadd.f32 %v1538, %v1608
    %v1673 = vadd.f32 %v1539, %v1609
    %v1674 = vadd.f32 %v1540, %v1610
    %v1675 = vadd.f32 %v1541, %v1611
    %v1676 = vadd.f32 %v1542, %v1612
    %v1677 = vadd.f32 %v1543, %v1613
    %v1678 = vadd.f32 %v1544, %v1614
    %v1679 = vadd.f32 %v1545, %v1615
    %v1680 = vadd.f32 %v1546, %v1616
    %v1681 = vadd.f32 %v1547, %v1617
    %v1682 = vadd.f32 %v1548, %v1618
    %v1683 = vadd.f32 %v1549, %v1619
    %v1684 = vadd.f32 %v1550, %v1620
    %v1685 = vadd.f32 %v1551, %v1621
    %v1686 = vadd.f32 %v1552, %v1622
    %v1687 = vadd.f32 %v1553, %v1623
    %v1688 = vadd.f32 %v1554, %v1624
    %v1689 = vadd.f32 %v1555, %v1625
    %v1690 = vadd.f32 %v1556, %v1626
    %v1691 = vadd.f32 %v1557, %v1627
    %v1692 = vadd.f32 %v1558, %v1628
    %v1693 = vld [vmem:[%s5] sm:$0x1]
    %v1695 = vlaneseq
    %v1696 = vshrl.u32 %v1695, 7
    %v1697 = vsub.s32 0, %v1696
    %v1698 = vrot.slane %v1693, %v1697
    %v1700 = vadd.f32 %v1629, %v1698
    %v1701 = vadd.f32 %v1630, %v1698
    %v1702 = vadd.f32 %v1631, %v1698
    %v1703 = vadd.f32 %v1632, %v1698
    %v1704 = vadd.f32 %v1633, %v1698
    %v1705 = vadd.f32 %v1634, %v1698
    %v1706 = vadd.f32 %v1635, %v1698
    %v1707 = vadd.f32 %v1636, %v1698
    %v1708 = vadd.f32 %v1637, %v1698
    %v1709 = vadd.f32 %v1638, %v1698
    %v1710 = vadd.f32 %v1639, %v1698
    %v1711 = vadd.f32 %v1640, %v1698
    %v1712 = vadd.f32 %v1641, %v1698
    %v1713 = vadd.f32 %v1642, %v1698
    %v1714 = vadd.f32 %v1643, %v1698
    %v1715 = vadd.f32 %v1644, %v1698
    %v1716 = vadd.f32 %v1645, %v1698
    %v1717 = vadd.f32 %v1646, %v1698
    %v1718 = vadd.f32 %v1647, %v1698
    %v1719 = vadd.f32 %v1648, %v1698
    %v1720 = vadd.f32 %v1649, %v1698
    %v1721 = vadd.f32 %v1650, %v1698
    %v1722 = vadd.f32 %v1651, %v1698
    %v1723 = vadd.f32 %v1652, %v1698
    %v1724 = vadd.f32 %v1653, %v1698
    %v1725 = vadd.f32 %v1654, %v1698
    %v1726 = vadd.f32 %v1655, %v1698
    %v1727 = vadd.f32 %v1656, %v1698
    %v1728 = vadd.f32 %v1657, %v1698
    %v1729 = vadd.f32 %v1658, %v1698
    %v1730 = vadd.f32 %v1659, %v1698
    %v1731 = vadd.f32 %v1660, %v1698
    %v1732 = vadd.f32 %v1661, %v1698
    %v1733 = vadd.f32 %v1662, %v1698
    %v1734 = vadd.f32 %v1663, %v1698
    %v1735 = vadd.f32 %v1664, %v1698
    %v1736 = vadd.f32 %v1665, %v1698
    %v1737 = vadd.f32 %v1666, %v1698
    %v1738 = vadd.f32 %v1667, %v1698
    %v1739 = vadd.f32 %v1668, %v1698
    %v1740 = vadd.f32 %v1669, %v1698
    %v1741 = vadd.f32 %v1670, %v1698
    %v1742 = vadd.f32 %v1671, %v1698
    %v1743 = vadd.f32 %v1672, %v1698
    %v1744 = vadd.f32 %v1673, %v1698
    %v1745 = vadd.f32 %v1674, %v1698
    %v1746 = vadd.f32 %v1675, %v1698
    %v1747 = vadd.f32 %v1676, %v1698
    %v1748 = vadd.f32 %v1677, %v1698
    %v1749 = vadd.f32 %v1678, %v1698
    %v1750 = vadd.f32 %v1679, %v1698
    %v1751 = vadd.f32 %v1680, %v1698
    %v1752 = vadd.f32 %v1681, %v1698
    %v1753 = vadd.f32 %v1682, %v1698
    %v1754 = vadd.f32 %v1683, %v1698
    %v1755 = vadd.f32 %v1684, %v1698
    %v1756 = vadd.f32 %v1685, %v1698
    %v1757 = vadd.f32 %v1686, %v1698
    %v1758 = vadd.f32 %v1687, %v1698
    %v1759 = vadd.f32 %v1688, %v1698
    %v1760 = vadd.f32 %v1689, %v1698
    %v1761 = vadd.f32 %v1690, %v1698
    %v1762 = vadd.f32 %v1691, %v1698
    %v1763 = vadd.f32 %v1692, %v1698
    %v1764 = vld [vmem:[%s6] sm:$0x1]
    %v1765 = vld [vmem:[%s6 + $0x1] sm:$0x1]
    %v1766 = vld [vmem:[%s6 + $0x2] sm:$0x1]
    %v1767 = vld [vmem:[%s6 + $0x3] sm:$0x1]
    %1769 = vset.pattern.permute.xlu0 0
    %1770 = vperm.xlu0 %1769, %v1700
    %v1771 = vpop.permute.xlu0 %1770
    %1774 = vset.pattern.permute.xlu0 0
    %1775 = vperm.xlu0 %1774, %v1701
    %v1776 = vpop.permute.xlu0 %1775
    %1779 = vset.pattern.permute.xlu0 0
    %1780 = vperm.xlu0 %1779, %v1702
    %v1781 = vpop.permute.xlu0 %1780
    %1784 = vset.pattern.permute.xlu0 0
    %1785 = vperm.xlu0 %1784, %v1703
    %v1786 = vpop.permute.xlu0 %1785
    %1789 = vset.pattern.permute.xlu0 0
    %1790 = vperm.xlu0 %1789, %v1704
    %v1791 = vpop.permute.xlu0 %1790
    %1794 = vset.pattern.permute.xlu0 0
    %1795 = vperm.xlu0 %1794, %v1705
    %v1796 = vpop.permute.xlu0 %1795
    %1799 = vset.pattern.permute.xlu0 0
    %1800 = vperm.xlu0 %1799, %v1706
    %v1801 = vpop.permute.xlu0 %1800
    %1804 = vset.pattern.permute.xlu0 0
    %1805 = vperm.xlu0 %1804, %v1707
    %v1806 = vpop.permute.xlu0 %1805
    %1809 = vset.pattern.permute.xlu0 0
    %1810 = vperm.xlu0 %1809, %v1708
    %v1811 = vpop.permute.xlu0 %1810
    %1814 = vset.pattern.permute.xlu0 0
    %1815 = vperm.xlu0 %1814, %v1709
    %v1816 = vpop.permute.xlu0 %1815
    %1819 = vset.pattern.permute.xlu0 0
    %1820 = vperm.xlu0 %1819, %v1710
    %v1821 = vpop.permute.xlu0 %1820
    %1824 = vset.pattern.permute.xlu0 0
    %1825 = vperm.xlu0 %1824, %v1711
    %v1826 = vpop.permute.xlu0 %1825
    %1829 = vset.pattern.permute.xlu0 0
    %1830 = vperm.xlu0 %1829, %v1712
    %v1831 = vpop.permute.xlu0 %1830
    %1834 = vset.pattern.permute.xlu0 0
    %1835 = vperm.xlu0 %1834, %v1713
    %v1836 = vpop.permute.xlu0 %1835
    %1839 = vset.pattern.permute.xlu0 0
    %1840 = vperm.xlu0 %1839, %v1714
    %v1841 = vpop.permute.xlu0 %1840
    %1844 = vset.pattern.permute.xlu0 0
    %1845 = vperm.xlu0 %1844, %v1715
    %v1846 = vpop.permute.xlu0 %1845
    %1849 = vset.pattern.permute.xlu0 0
    %1850 = vperm.xlu0 %1849, %v1716
    %v1851 = vpop.permute.xlu0 %1850
    %1854 = vset.pattern.permute.xlu0 0
    %1855 = vperm.xlu0 %1854, %v1717
    %v1856 = vpop.permute.xlu0 %1855
    %1859 = vset.pattern.permute.xlu0 0
    %1860 = vperm.xlu0 %1859, %v1718
    %v1861 = vpop.permute.xlu0 %1860
    %1864 = vset.pattern.permute.xlu0 0
    %1865 = vperm.xlu0 %1864, %v1719
    %v1866 = vpop.permute.xlu0 %1865
    %1869 = vset.pattern.permute.xlu0 0
    %1870 = vperm.xlu0 %1869, %v1720
    %v1871 = vpop.permute.xlu0 %1870
    %1874 = vset.pattern.permute.xlu0 0
    %1875 = vperm.xlu0 %1874, %v1721
    %v1876 = vpop.permute.xlu0 %1875
    %1879 = vset.pattern.permute.xlu0 0
    %1880 = vperm.xlu0 %1879, %v1722
    %v1881 = vpop.permute.xlu0 %1880
    %1884 = vset.pattern.permute.xlu0 0
    %1885 = vperm.xlu0 %1884, %v1723
    %v1886 = vpop.permute.xlu0 %1885
    %1889 = vset.pattern.permute.xlu0 0
    %1890 = vperm.xlu0 %1889, %v1724
    %v1891 = vpop.permute.xlu0 %1890
    %1894 = vset.pattern.permute.xlu0 0
    %1895 = vperm.xlu0 %1894, %v1725
    %v1896 = vpop.permute.xlu0 %1895
    %1899 = vset.pattern.permute.xlu0 0
    %1900 = vperm.xlu0 %1899, %v1726
    %v1901 = vpop.permute.xlu0 %1900
    %1904 = vset.pattern.permute.xlu0 0
    %1905 = vperm.xlu0 %1904, %v1727
    %v1906 = vpop.permute.xlu0 %1905
    %1909 = vset.pattern.permute.xlu0 0
    %1910 = vperm.xlu0 %1909, %v1728
    %v1911 = vpop.permute.xlu0 %1910
    %1914 = vset.pattern.permute.xlu0 0
    %1915 = vperm.xlu0 %1914, %v1729
    %v1916 = vpop.permute.xlu0 %1915
    %1919 = vset.pattern.permute.xlu0 0
    %1920 = vperm.xlu0 %1919, %v1730
    %v1921 = vpop.permute.xlu0 %1920
    %1924 = vset.pattern.permute.xlu0 0
    %1925 = vperm.xlu0 %1924, %v1731
    %v1926 = vpop.permute.xlu0 %1925
    %1929 = vset.pattern.permute.xlu0 0
    %1930 = vperm.xlu0 %1929, %v1732
    %v1931 = vpop.permute.xlu0 %1930
    %1934 = vset.pattern.permute.xlu0 0
    %1935 = vperm.xlu0 %1934, %v1733
    %v1936 = vpop.permute.xlu0 %1935
    %1939 = vset.pattern.permute.xlu0 0
    %1940 = vperm.xlu0 %1939, %v1734
    %v1941 = vpop.permute.xlu0 %1940
    %1944 = vset.pattern.permute.xlu0 0
    %1945 = vperm.xlu0 %1944, %v1735
    %v1946 = vpop.permute.xlu0 %1945
    %1949 = vset.pattern.permute.xlu0 0
    %1950 = vperm.xlu0 %1949, %v1736
    %v1951 = vpop.permute.xlu0 %1950
    %1954 = vset.pattern.permute.xlu0 0
    %1955 = vperm.xlu0 %1954, %v1737
    %v1956 = vpop.permute.xlu0 %1955
    %1959 = vset.pattern.permute.xlu0 0
    %1960 = vperm.xlu0 %1959, %v1738
    %v1961 = vpop.permute.xlu0 %1960
    %1964 = vset.pattern.permute.xlu0 0
    %1965 = vperm.xlu0 %1964, %v1739
    %v1966 = vpop.permute.xlu0 %1965
    %1969 = vset.pattern.permute.xlu0 0
    %1970 = vperm.xlu0 %1969, %v1740
    %v1971 = vpop.permute.xlu0 %1970
    %1974 = vset.pattern.permute.xlu0 0
    %1975 = vperm.xlu0 %1974, %v1741
    %v1976 = vpop.permute.xlu0 %1975
    %1979 = vset.pattern.permute.xlu0 0
    %1980 = vperm.xlu0 %1979, %v1742
    %v1981 = vpop.permute.xlu0 %1980
    %1984 = vset.pattern.permute.xlu0 0
    %1985 = vperm.xlu0 %1984, %v1743
    %v1986 = vpop.permute.xlu0 %1985
    %1989 = vset.pattern.permute.xlu0 0
    %1990 = vperm.xlu0 %1989, %v1744
    %v1991 = vpop.permute.xlu0 %1990
    %1994 = vset.pattern.permute.xlu0 0
    %1995 = vperm.xlu0 %1994, %v1745
    %v1996 = vpop.permute.xlu0 %1995
    %1999 = vset.pattern.permute.xlu0 0
    %2000 = vperm.xlu0 %1999, %v1746
    %v2001 = vpop.permute.xlu0 %2000
    %2004 = vset.pattern.permute.xlu0 0
    %2005 = vperm.xlu0 %2004, %v1747
    %v2006 = vpop.permute.xlu0 %2005
    %2009 = vset.pattern.permute.xlu0 0
    %2010 = vperm.xlu0 %2009, %v1748
    %v2011 = vpop.permute.xlu0 %2010
    %2014 = vset.pattern.permute.xlu0 0
    %2015 = vperm.xlu0 %2014, %v1749
    %v2016 = vpop.permute.xlu0 %2015
    %2019 = vset.pattern.permute.xlu0 0
    %2020 = vperm.xlu0 %2019, %v1750
    %v2021 = vpop.permute.xlu0 %2020
    %2024 = vset.pattern.permute.xlu0 0
    %2025 = vperm.xlu0 %2024, %v1751
    %v2026 = vpop.permute.xlu0 %2025
    %2029 = vset.pattern.permute.xlu0 0
    %2030 = vperm.xlu0 %2029, %v1752
    %v2031 = vpop.permute.xlu0 %2030
    %2034 = vset.pattern.permute.xlu0 0
    %2035 = vperm.xlu0 %2034, %v1753
    %v2036 = vpop.permute.xlu0 %2035
    %2039 = vset.pattern.permute.xlu0 0
    %2040 = vperm.xlu0 %2039, %v1754
    %v2041 = vpop.permute.xlu0 %2040
    %2044 = vset.pattern.permute.xlu0 0
    %2045 = vperm.xlu0 %2044, %v1755
    %v2046 = vpop.permute.xlu0 %2045
    %2049 = vset.pattern.permute.xlu0 0
    %2050 = vperm.xlu0 %2049, %v1756
    %v2051 = vpop.permute.xlu0 %2050
    %2054 = vset.pattern.permute.xlu0 0
    %2055 = vperm.xlu0 %2054, %v1757
    %v2056 = vpop.permute.xlu0 %2055
    %2059 = vset.pattern.permute.xlu0 0
    %2060 = vperm.xlu0 %2059, %v1758
    %v2061 = vpop.permute.xlu0 %2060
    %2064 = vset.pattern.permute.xlu0 0
    %2065 = vperm.xlu0 %2064, %v1759
    %v2066 = vpop.permute.xlu0 %2065
    %2069 = vset.pattern.permute.xlu0 0
    %2070 = vperm.xlu0 %2069, %v1760
    %v2071 = vpop.permute.xlu0 %2070
    %2074 = vset.pattern.permute.xlu0 0
    %2075 = vperm.xlu0 %2074, %v1761
    %v2076 = vpop.permute.xlu0 %2075
    %2079 = vset.pattern.permute.xlu0 0
    %2080 = vperm.xlu0 %2079, %v1762
    %v2081 = vpop.permute.xlu0 %2080
    %2084 = vset.pattern.permute.xlu0 0
    %2085 = vperm.xlu0 %2084, %v1763
    %v2086 = vpop.permute.xlu0 %2085
    %v2089 = vlaneseq
    %v2090 = vshrl.u32 %v2089, 7
    %v2091 = vsub.s32 0, %v2090
    %v2092 = vrot.slane %v1764, %v2091
    %v2094 = vmul.f32 %v1771, %v2092
    %v2095 = vmul.f32 %v1776, %v2092
    %v2096 = vmul.f32 %v1781, %v2092
    %v2097 = vmul.f32 %v1786, %v2092
    %v2098 = vmul.f32 %v1791, %v2092
    %v2099 = vmul.f32 %v1796, %v2092
    %v2100 = vmul.f32 %v1801, %v2092
    %v2101 = vmul.f32 %v1806, %v2092
    %v2102 = vmul.f32 %v1811, %v2092
    %v2103 = vmul.f32 %v1816, %v2092
    %v2104 = vmul.f32 %v1821, %v2092
    %v2105 = vmul.f32 %v1826, %v2092
    %v2106 = vmul.f32 %v1831, %v2092
    %v2107 = vmul.f32 %v1836, %v2092
    %v2108 = vmul.f32 %v1841, %v2092
    %v2109 = vmul.f32 %v1846, %v2092
    %v2110 = vmul.f32 %v1851, %v2092
    %v2111 = vmul.f32 %v1856, %v2092
    %v2112 = vmul.f32 %v1861, %v2092
    %v2113 = vmul.f32 %v1866, %v2092
    %v2114 = vmul.f32 %v1871, %v2092
    %v2115 = vmul.f32 %v1876, %v2092
    %v2116 = vmul.f32 %v1881, %v2092
    %v2117 = vmul.f32 %v1886, %v2092
    %v2118 = vmul.f32 %v1891, %v2092
    %v2119 = vmul.f32 %v1896, %v2092
    %v2120 = vmul.f32 %v1901, %v2092
    %v2121 = vmul.f32 %v1906, %v2092
    %v2122 = vmul.f32 %v1911, %v2092
    %v2123 = vmul.f32 %v1916, %v2092
    %v2124 = vmul.f32 %v1921, %v2092
    %v2125 = vmul.f32 %v1926, %v2092
    %v2126 = vmul.f32 %v1931, %v2092
    %v2127 = vmul.f32 %v1936, %v2092
    %v2128 = vmul.f32 %v1941, %v2092
    %v2129 = vmul.f32 %v1946, %v2092
    %v2130 = vmul.f32 %v1951, %v2092
    %v2131 = vmul.f32 %v1956, %v2092
    %v2132 = vmul.f32 %v1961, %v2092
    %v2133 = vmul.f32 %v1966, %v2092
    %v2134 = vmul.f32 %v1971, %v2092
    %v2135 = vmul.f32 %v1976, %v2092
    %v2136 = vmul.f32 %v1981, %v2092
    %v2137 = vmul.f32 %v1986, %v2092
    %v2138 = vmul.f32 %v1991, %v2092
    %v2139 = vmul.f32 %v1996, %v2092
    %v2140 = vmul.f32 %v2001, %v2092
    %v2141 = vmul.f32 %v2006, %v2092
    %v2142 = vmul.f32 %v2011, %v2092
    %v2143 = vmul.f32 %v2016, %v2092
    %v2144 = vmul.f32 %v2021, %v2092
    %v2145 = vmul.f32 %v2026, %v2092
    %v2146 = vmul.f32 %v2031, %v2092
    %v2147 = vmul.f32 %v2036, %v2092
    %v2148 = vmul.f32 %v2041, %v2092
    %v2149 = vmul.f32 %v2046, %v2092
    %v2150 = vmul.f32 %v2051, %v2092
    %v2151 = vmul.f32 %v2056, %v2092
    %v2152 = vmul.f32 %v2061, %v2092
    %v2153 = vmul.f32 %v2066, %v2092
    %v2154 = vmul.f32 %v2071, %v2092
    %v2155 = vmul.f32 %v2076, %v2092
    %v2156 = vmul.f32 %v2081, %v2092
    %v2157 = vmul.f32 %v2086, %v2092
    %v2158 = vadd.f32 %v2094, 0.0
    %v2159 = vadd.f32 %v2095, 0.0
    %v2160 = vadd.f32 %v2096, 0.0
    %v2161 = vadd.f32 %v2097, 0.0
    %v2162 = vadd.f32 %v2098, 0.0
    %v2163 = vadd.f32 %v2099, 0.0
    %v2164 = vadd.f32 %v2100, 0.0
    %v2165 = vadd.f32 %v2101, 0.0
    %v2166 = vadd.f32 %v2102, 0.0
    %v2167 = vadd.f32 %v2103, 0.0
    %v2168 = vadd.f32 %v2104, 0.0
    %v2169 = vadd.f32 %v2105, 0.0
    %v2170 = vadd.f32 %v2106, 0.0
    %v2171 = vadd.f32 %v2107, 0.0
    %v2172 = vadd.f32 %v2108, 0.0
    %v2173 = vadd.f32 %v2109, 0.0
    %v2174 = vadd.f32 %v2110, 0.0
    %v2175 = vadd.f32 %v2111, 0.0
    %v2176 = vadd.f32 %v2112, 0.0
    %v2177 = vadd.f32 %v2113, 0.0
    %v2178 = vadd.f32 %v2114, 0.0
    %v2179 = vadd.f32 %v2115, 0.0
    %v2180 = vadd.f32 %v2116, 0.0
    %v2181 = vadd.f32 %v2117, 0.0
    %v2182 = vadd.f32 %v2118, 0.0
    %v2183 = vadd.f32 %v2119, 0.0
    %v2184 = vadd.f32 %v2120, 0.0
    %v2185 = vadd.f32 %v2121, 0.0
    %v2186 = vadd.f32 %v2122, 0.0
    %v2187 = vadd.f32 %v2123, 0.0
    %v2188 = vadd.f32 %v2124, 0.0
    %v2189 = vadd.f32 %v2125, 0.0
    %v2190 = vadd.f32 %v2126, 0.0
    %v2191 = vadd.f32 %v2127, 0.0
    %v2192 = vadd.f32 %v2128, 0.0
    %v2193 = vadd.f32 %v2129, 0.0
    %v2194 = vadd.f32 %v2130, 0.0
    %v2195 = vadd.f32 %v2131, 0.0
    %v2196 = vadd.f32 %v2132, 0.0
    %v2197 = vadd.f32 %v2133, 0.0
    %v2198 = vadd.f32 %v2134, 0.0
    %v2199 = vadd.f32 %v2135, 0.0
    %v2200 = vadd.f32 %v2136, 0.0
    %v2201 = vadd.f32 %v2137, 0.0
    %v2202 = vadd.f32 %v2138, 0.0
    %v2203 = vadd.f32 %v2139, 0.0
    %v2204 = vadd.f32 %v2140, 0.0
    %v2205 = vadd.f32 %v2141, 0.0
    %v2206 = vadd.f32 %v2142, 0.0
    %v2207 = vadd.f32 %v2143, 0.0
    %v2208 = vadd.f32 %v2144, 0.0
    %v2209 = vadd.f32 %v2145, 0.0
    %v2210 = vadd.f32 %v2146, 0.0
    %v2211 = vadd.f32 %v2147, 0.0
    %v2212 = vadd.f32 %v2148, 0.0
    %v2213 = vadd.f32 %v2149, 0.0
    %v2214 = vadd.f32 %v2150, 0.0
    %v2215 = vadd.f32 %v2151, 0.0
    %v2216 = vadd.f32 %v2152, 0.0
    %v2217 = vadd.f32 %v2153, 0.0
    %v2218 = vadd.f32 %v2154, 0.0
    %v2219 = vadd.f32 %v2155, 0.0
    %v2220 = vadd.f32 %v2156, 0.0
    %v2221 = vadd.f32 %v2157, 0.0
    %2222 = vset.pattern.permute.xlu0 1
    %2223 = vperm.xlu0 %2222, %v1700
    %v2224 = vpop.permute.xlu0 %2223
    %2226 = vset.pattern.permute.xlu0 1
    %2227 = vperm.xlu0 %2226, %v1701
    %v2228 = vpop.permute.xlu0 %2227
    %2230 = vset.pattern.permute.xlu0 1
    %2231 = vperm.xlu0 %2230, %v1702
    %v2232 = vpop.permute.xlu0 %2231
    %2234 = vset.pattern.permute.xlu0 1
    %2235 = vperm.xlu0 %2234, %v1703
    %v2236 = vpop.permute.xlu0 %2235
    %2238 = vset.pattern.permute.xlu0 1
    %2239 = vperm.xlu0 %2238, %v1704
    %v2240 = vpop.permute.xlu0 %2239
    %2242 = vset.pattern.permute.xlu0 1
    %2243 = vperm.xlu0 %2242, %v1705
    %v2244 = vpop.permute.xlu0 %2243
    %2246 = vset.pattern.permute.xlu0 1
    %2247 = vperm.xlu0 %2246, %v1706
    %v2248 = vpop.permute.xlu0 %2247
    %2250 = vset.pattern.permute.xlu0 1
    %2251 = vperm.xlu0 %2250, %v1707
    %v2252 = vpop.permute.xlu0 %2251
    %2254 = vset.pattern.permute.xlu0 1
    %2255 = vperm.xlu0 %2254, %v1708
    %v2256 = vpop.permute.xlu0 %2255
    %2258 = vset.pattern.permute.xlu0 1
    %2259 = vperm.xlu0 %2258, %v1709
    %v2260 = vpop.permute.xlu0 %2259
    %2262 = vset.pattern.permute.xlu0 1
    %2263 = vperm.xlu0 %2262, %v1710
    %v2264 = vpop.permute.xlu0 %2263
    %2266 = vset.pattern.permute.xlu0 1
    %2267 = vperm.xlu0 %2266, %v1711
    %v2268 = vpop.permute.xlu0 %2267
    %2270 = vset.pattern.permute.xlu0 1
    %2271 = vperm.xlu0 %2270, %v1712
    %v2272 = vpop.permute.xlu0 %2271
    %2274 = vset.pattern.permute.xlu0 1
    %2275 = vperm.xlu0 %2274, %v1713
    %v2276 = vpop.permute.xlu0 %2275
    %2278 = vset.pattern.permute.xlu0 1
    %2279 = vperm.xlu0 %2278, %v1714
    %v2280 = vpop.permute.xlu0 %2279
    %2282 = vset.pattern.permute.xlu0 1
    %2283 = vperm.xlu0 %2282, %v1715
    %v2284 = vpop.permute.xlu0 %2283
    %2286 = vset.pattern.permute.xlu0 1
    %2287 = vperm.xlu0 %2286, %v1716
    %v2288 = vpop.permute.xlu0 %2287
    %2290 = vset.pattern.permute.xlu0 1
    %2291 = vperm.xlu0 %2290, %v1717
    %v2292 = vpop.permute.xlu0 %2291
    %2294 = vset.pattern.permute.xlu0 1
    %2295 = vperm.xlu0 %2294, %v1718
    %v2296 = vpop.permute.xlu0 %2295
    %2298 = vset.pattern.permute.xlu0 1
    %2299 = vperm.xlu0 %2298, %v1719
    %v2300 = vpop.permute.xlu0 %2299
    %2302 = vset.pattern.permute.xlu0 1
    %2303 = vperm.xlu0 %2302, %v1720
    %v2304 = vpop.permute.xlu0 %2303
    %2306 = vset.pattern.permute.xlu0 1
    %2307 = vperm.xlu0 %2306, %v1721
    %v2308 = vpop.permute.xlu0 %2307
    %2310 = vset.pattern.permute.xlu0 1
    %2311 = vperm.xlu0 %2310, %v1722
    %v2312 = vpop.permute.xlu0 %2311
    %2314 = vset.pattern.permute.xlu0 1
    %2315 = vperm.xlu0 %2314, %v1723
    %v2316 = vpop.permute.xlu0 %2315
    %2318 = vset.pattern.permute.xlu0 1
    %2319 = vperm.xlu0 %2318, %v1724
    %v2320 = vpop.permute.xlu0 %2319
    %2322 = vset.pattern.permute.xlu0 1
    %2323 = vperm.xlu0 %2322, %v1725
    %v2324 = vpop.permute.xlu0 %2323
    %2326 = vset.pattern.permute.xlu0 1
    %2327 = vperm.xlu0 %2326, %v1726
    %v2328 = vpop.permute.xlu0 %2327
    %2330 = vset.pattern.permute.xlu0 1
    %2331 = vperm.xlu0 %2330, %v1727
    %v2332 = vpop.permute.xlu0 %2331
    %2334 = vset.pattern.permute.xlu0 1
    %2335 = vperm.xlu0 %2334, %v1728
    %v2336 = vpop.permute.xlu0 %2335
    %2338 = vset.pattern.permute.xlu0 1
    %2339 = vperm.xlu0 %2338, %v1729
    %v2340 = vpop.permute.xlu0 %2339
    %2342 = vset.pattern.permute.xlu0 1
    %2343 = vperm.xlu0 %2342, %v1730
    %v2344 = vpop.permute.xlu0 %2343
    %2346 = vset.pattern.permute.xlu0 1
    %2347 = vperm.xlu0 %2346, %v1731
    %v2348 = vpop.permute.xlu0 %2347
    %2350 = vset.pattern.permute.xlu0 1
    %2351 = vperm.xlu0 %2350, %v1732
    %v2352 = vpop.permute.xlu0 %2351
    %2354 = vset.pattern.permute.xlu0 1
    %2355 = vperm.xlu0 %2354, %v1733
    %v2356 = vpop.permute.xlu0 %2355
    %2358 = vset.pattern.permute.xlu0 1
    %2359 = vperm.xlu0 %2358, %v1734
    %v2360 = vpop.permute.xlu0 %2359
    %2362 = vset.pattern.permute.xlu0 1
    %2363 = vperm.xlu0 %2362, %v1735
    %v2364 = vpop.permute.xlu0 %2363
    %2366 = vset.pattern.permute.xlu0 1
    %2367 = vperm.xlu0 %2366, %v1736
    %v2368 = vpop.permute.xlu0 %2367
    %2370 = vset.pattern.permute.xlu0 1
    %2371 = vperm.xlu0 %2370, %v1737
    %v2372 = vpop.permute.xlu0 %2371
    %2374 = vset.pattern.permute.xlu0 1
    %2375 = vperm.xlu0 %2374, %v1738
    %v2376 = vpop.permute.xlu0 %2375
    %2378 = vset.pattern.permute.xlu0 1
    %2379 = vperm.xlu0 %2378, %v1739
    %v2380 = vpop.permute.xlu0 %2379
    %2382 = vset.pattern.permute.xlu0 1
    %2383 = vperm.xlu0 %2382, %v1740
    %v2384 = vpop.permute.xlu0 %2383
    %2386 = vset.pattern.permute.xlu0 1
    %2387 = vperm.xlu0 %2386, %v1741
    %v2388 = vpop.permute.xlu0 %2387
    %2390 = vset.pattern.permute.xlu0 1
    %2391 = vperm.xlu0 %2390, %v1742
    %v2392 = vpop.permute.xlu0 %2391
    %2394 = vset.pattern.permute.xlu0 1
    %2395 = vperm.xlu0 %2394, %v1743
    %v2396 = vpop.permute.xlu0 %2395
    %2398 = vset.pattern.permute.xlu0 1
    %2399 = vperm.xlu0 %2398, %v1744
    %v2400 = vpop.permute.xlu0 %2399
    %2402 = vset.pattern.permute.xlu0 1
    %2403 = vperm.xlu0 %2402, %v1745
    %v2404 = vpop.permute.xlu0 %2403
    %2406 = vset.pattern.permute.xlu0 1
    %2407 = vperm.xlu0 %2406, %v1746
    %v2408 = vpop.permute.xlu0 %2407
    %2410 = vset.pattern.permute.xlu0 1
    %2411 = vperm.xlu0 %2410, %v1747
    %v2412 = vpop.permute.xlu0 %2411
    %2414 = vset.pattern.permute.xlu0 1
    %2415 = vperm.xlu0 %2414, %v1748
    %v2416 = vpop.permute.xlu0 %2415
    %2418 = vset.pattern.permute.xlu0 1
    %2419 = vperm.xlu0 %2418, %v1749
    %v2420 = vpop.permute.xlu0 %2419
    %2422 = vset.pattern.permute.xlu0 1
    %2423 = vperm.xlu0 %2422, %v1750
    %v2424 = vpop.permute.xlu0 %2423
    %2426 = vset.pattern.permute.xlu0 1
    %2427 = vperm.xlu0 %2426, %v1751
    %v2428 = vpop.permute.xlu0 %2427
    %2430 = vset.pattern.permute.xlu0 1
    %2431 = vperm.xlu0 %2430, %v1752
    %v2432 = vpop.permute.xlu0 %2431
    %2434 = vset.pattern.permute.xlu0 1
    %2435 = vperm.xlu0 %2434, %v1753
    %v2436 = vpop.permute.xlu0 %2435
    %2438 = vset.pattern.permute.xlu0 1
    %2439 = vperm.xlu0 %2438, %v1754
    %v2440 = vpop.permute.xlu0 %2439
    %2442 = vset.pattern.permute.xlu0 1
    %2443 = vperm.xlu0 %2442, %v1755
    %v2444 = vpop.permute.xlu0 %2443
    %2446 = vset.pattern.permute.xlu0 1
    %2447 = vperm.xlu0 %2446, %v1756
    %v2448 = vpop.permute.xlu0 %2447
    %2450 = vset.pattern.permute.xlu0 1
    %2451 = vperm.xlu0 %2450, %v1757
    %v2452 = vpop.permute.xlu0 %2451
    %2454 = vset.pattern.permute.xlu0 1
    %2455 = vperm.xlu0 %2454, %v1758
    %v2456 = vpop.permute.xlu0 %2455
    %2458 = vset.pattern.permute.xlu0 1
    %2459 = vperm.xlu0 %2458, %v1759
    %v2460 = vpop.permute.xlu0 %2459
    %2462 = vset.pattern.permute.xlu0 1
    %2463 = vperm.xlu0 %2462, %v1760
    %v2464 = vpop.permute.xlu0 %2463
    %2466 = vset.pattern.permute.xlu0 1
    %2467 = vperm.xlu0 %2466, %v1761
    %v2468 = vpop.permute.xlu0 %2467
    %2470 = vset.pattern.permute.xlu0 1
    %2471 = vperm.xlu0 %2470, %v1762
    %v2472 = vpop.permute.xlu0 %2471
    %2474 = vset.pattern.permute.xlu0 1
    %2475 = vperm.xlu0 %2474, %v1763
    %v2476 = vpop.permute.xlu0 %2475
    %v2479 = vlaneseq
    %v2480 = vshrl.u32 %v2479, 7
    %v2481 = vsub.s32 0, %v2480
    %v2482 = vrot.slane %v1765, %v2481
    %v2484 = vmul.f32 %v2224, %v2482
    %v2485 = vmul.f32 %v2228, %v2482
    %v2486 = vmul.f32 %v2232, %v2482
    %v2487 = vmul.f32 %v2236, %v2482
    %v2488 = vmul.f32 %v2240, %v2482
    %v2489 = vmul.f32 %v2244, %v2482
    %v2490 = vmul.f32 %v2248, %v2482
    %v2491 = vmul.f32 %v2252, %v2482
    %v2492 = vmul.f32 %v2256, %v2482
    %v2493 = vmul.f32 %v2260, %v2482
    %v2494 = vmul.f32 %v2264, %v2482
    %v2495 = vmul.f32 %v2268, %v2482
    %v2496 = vmul.f32 %v2272, %v2482
    %v2497 = vmul.f32 %v2276, %v2482
    %v2498 = vmul.f32 %v2280, %v2482
    %v2499 = vmul.f32 %v2284, %v2482
    %v2500 = vmul.f32 %v2288, %v2482
    %v2501 = vmul.f32 %v2292, %v2482
    %v2502 = vmul.f32 %v2296, %v2482
    %v2503 = vmul.f32 %v2300, %v2482
    %v2504 = vmul.f32 %v2304, %v2482
    %v2505 = vmul.f32 %v2308, %v2482
    %v2506 = vmul.f32 %v2312, %v2482
    %v2507 = vmul.f32 %v2316, %v2482
    %v2508 = vmul.f32 %v2320, %v2482
    %v2509 = vmul.f32 %v2324, %v2482
    %v2510 = vmul.f32 %v2328, %v2482
    %v2511 = vmul.f32 %v2332, %v2482
    %v2512 = vmul.f32 %v2336, %v2482
    %v2513 = vmul.f32 %v2340, %v2482
    %v2514 = vmul.f32 %v2344, %v2482
    %v2515 = vmul.f32 %v2348, %v2482
    %v2516 = vmul.f32 %v2352, %v2482
    %v2517 = vmul.f32 %v2356, %v2482
    %v2518 = vmul.f32 %v2360, %v2482
    %v2519 = vmul.f32 %v2364, %v2482
    %v2520 = vmul.f32 %v2368, %v2482
    %v2521 = vmul.f32 %v2372, %v2482
    %v2522 = vmul.f32 %v2376, %v2482
    %v2523 = vmul.f32 %v2380, %v2482
    %v2524 = vmul.f32 %v2384, %v2482
    %v2525 = vmul.f32 %v2388, %v2482
    %v2526 = vmul.f32 %v2392, %v2482
    %v2527 = vmul.f32 %v2396, %v2482
    %v2528 = vmul.f32 %v2400, %v2482
    %v2529 = vmul.f32 %v2404, %v2482
    %v2530 = vmul.f32 %v2408, %v2482
    %v2531 = vmul.f32 %v2412, %v2482
    %v2532 = vmul.f32 %v2416, %v2482
    %v2533 = vmul.f32 %v2420, %v2482
    %v2534 = vmul.f32 %v2424, %v2482
    %v2535 = vmul.f32 %v2428, %v2482
    %v2536 = vmul.f32 %v2432, %v2482
    %v2537 = vmul.f32 %v2436, %v2482
    %v2538 = vmul.f32 %v2440, %v2482
    %v2539 = vmul.f32 %v2444, %v2482
    %v2540 = vmul.f32 %v2448, %v2482
    %v2541 = vmul.f32 %v2452, %v2482
    %v2542 = vmul.f32 %v2456, %v2482
    %v2543 = vmul.f32 %v2460, %v2482
    %v2544 = vmul.f32 %v2464, %v2482
    %v2545 = vmul.f32 %v2468, %v2482
    %v2546 = vmul.f32 %v2472, %v2482
    %v2547 = vmul.f32 %v2476, %v2482
    %v2548 = vadd.f32 %v2158, %v2484
    %v2549 = vadd.f32 %v2159, %v2485
    %v2550 = vadd.f32 %v2160, %v2486
    %v2551 = vadd.f32 %v2161, %v2487
    %v2552 = vadd.f32 %v2162, %v2488
    %v2553 = vadd.f32 %v2163, %v2489
    %v2554 = vadd.f32 %v2164, %v2490
    %v2555 = vadd.f32 %v2165, %v2491
    %v2556 = vadd.f32 %v2166, %v2492
    %v2557 = vadd.f32 %v2167, %v2493
    %v2558 = vadd.f32 %v2168, %v2494
    %v2559 = vadd.f32 %v2169, %v2495
    %v2560 = vadd.f32 %v2170, %v2496
    %v2561 = vadd.f32 %v2171, %v2497
    %v2562 = vadd.f32 %v2172, %v2498
    %v2563 = vadd.f32 %v2173, %v2499
    %v2564 = vadd.f32 %v2174, %v2500
    %v2565 = vadd.f32 %v2175, %v2501
    %v2566 = vadd.f32 %v2176, %v2502
    %v2567 = vadd.f32 %v2177, %v2503
    %v2568 = vadd.f32 %v2178, %v2504
    %v2569 = vadd.f32 %v2179, %v2505
    %v2570 = vadd.f32 %v2180, %v2506
    %v2571 = vadd.f32 %v2181, %v2507
    %v2572 = vadd.f32 %v2182, %v2508
    %v2573 = vadd.f32 %v2183, %v2509
    %v2574 = vadd.f32 %v2184, %v2510
    %v2575 = vadd.f32 %v2185, %v2511
    %v2576 = vadd.f32 %v2186, %v2512
    %v2577 = vadd.f32 %v2187, %v2513
    %v2578 = vadd.f32 %v2188, %v2514
    %v2579 = vadd.f32 %v2189, %v2515
    %v2580 = vadd.f32 %v2190, %v2516
    %v2581 = vadd.f32 %v2191, %v2517
    %v2582 = vadd.f32 %v2192, %v2518
    %v2583 = vadd.f32 %v2193, %v2519
    %v2584 = vadd.f32 %v2194, %v2520
    %v2585 = vadd.f32 %v2195, %v2521
    %v2586 = vadd.f32 %v2196, %v2522
    %v2587 = vadd.f32 %v2197, %v2523
    %v2588 = vadd.f32 %v2198, %v2524
    %v2589 = vadd.f32 %v2199, %v2525
    %v2590 = vadd.f32 %v2200, %v2526
    %v2591 = vadd.f32 %v2201, %v2527
    %v2592 = vadd.f32 %v2202, %v2528
    %v2593 = vadd.f32 %v2203, %v2529
    %v2594 = vadd.f32 %v2204, %v2530
    %v2595 = vadd.f32 %v2205, %v2531
    %v2596 = vadd.f32 %v2206, %v2532
    %v2597 = vadd.f32 %v2207, %v2533
    %v2598 = vadd.f32 %v2208, %v2534
    %v2599 = vadd.f32 %v2209, %v2535
    %v2600 = vadd.f32 %v2210, %v2536
    %v2601 = vadd.f32 %v2211, %v2537
    %v2602 = vadd.f32 %v2212, %v2538
    %v2603 = vadd.f32 %v2213, %v2539
    %v2604 = vadd.f32 %v2214, %v2540
    %v2605 = vadd.f32 %v2215, %v2541
    %v2606 = vadd.f32 %v2216, %v2542
    %v2607 = vadd.f32 %v2217, %v2543
    %v2608 = vadd.f32 %v2218, %v2544
    %v2609 = vadd.f32 %v2219, %v2545
    %v2610 = vadd.f32 %v2220, %v2546
    %v2611 = vadd.f32 %v2221, %v2547
    %2612 = vset.pattern.permute.xlu0 2
    %2613 = vperm.xlu0 %2612, %v1700
    %v2614 = vpop.permute.xlu0 %2613
    %2616 = vset.pattern.permute.xlu0 2
    %2617 = vperm.xlu0 %2616, %v1701
    %v2618 = vpop.permute.xlu0 %2617
    %2620 = vset.pattern.permute.xlu0 2
    %2621 = vperm.xlu0 %2620, %v1702
    %v2622 = vpop.permute.xlu0 %2621
    %2624 = vset.pattern.permute.xlu0 2
    %2625 = vperm.xlu0 %2624, %v1703
    %v2626 = vpop.permute.xlu0 %2625
    %2628 = vset.pattern.permute.xlu0 2
    %2629 = vperm.xlu0 %2628, %v1704
    %v2630 = vpop.permute.xlu0 %2629
    %2632 = vset.pattern.permute.xlu0 2
    %2633 = vperm.xlu0 %2632, %v1705
    %v2634 = vpop.permute.xlu0 %2633
    %2636 = vset.pattern.permute.xlu0 2
    %2637 = vperm.xlu0 %2636, %v1706
    %v2638 = vpop.permute.xlu0 %2637
    %2640 = vset.pattern.permute.xlu0 2
    %2641 = vperm.xlu0 %2640, %v1707
    %v2642 = vpop.permute.xlu0 %2641
    %2644 = vset.pattern.permute.xlu0 2
    %2645 = vperm.xlu0 %2644, %v1708
    %v2646 = vpop.permute.xlu0 %2645
    %2648 = vset.pattern.permute.xlu0 2
    %2649 = vperm.xlu0 %2648, %v1709
    %v2650 = vpop.permute.xlu0 %2649
    %2652 = vset.pattern.permute.xlu0 2
    %2653 = vperm.xlu0 %2652, %v1710
    %v2654 = vpop.permute.xlu0 %2653
    %2656 = vset.pattern.permute.xlu0 2
    %2657 = vperm.xlu0 %2656, %v1711
    %v2658 = vpop.permute.xlu0 %2657
    %2660 = vset.pattern.permute.xlu0 2
    %2661 = vperm.xlu0 %2660, %v1712
    %v2662 = vpop.permute.xlu0 %2661
    %2664 = vset.pattern.permute.xlu0 2
    %2665 = vperm.xlu0 %2664, %v1713
    %v2666 = vpop.permute.xlu0 %2665
    %2668 = vset.pattern.permute.xlu0 2
    %2669 = vperm.xlu0 %2668, %v1714
    %v2670 = vpop.permute.xlu0 %2669
    %2672 = vset.pattern.permute.xlu0 2
    %2673 = vperm.xlu0 %2672, %v1715
    %v2674 = vpop.permute.xlu0 %2673
    %2676 = vset.pattern.permute.xlu0 2
    %2677 = vperm.xlu0 %2676, %v1716
    %v2678 = vpop.permute.xlu0 %2677
    %2680 = vset.pattern.permute.xlu0 2
    %2681 = vperm.xlu0 %2680, %v1717
    %v2682 = vpop.permute.xlu0 %2681
    %2684 = vset.pattern.permute.xlu0 2
    %2685 = vperm.xlu0 %2684, %v1718
    %v2686 = vpop.permute.xlu0 %2685
    %2688 = vset.pattern.permute.xlu0 2
    %2689 = vperm.xlu0 %2688, %v1719
    %v2690 = vpop.permute.xlu0 %2689
    %2692 = vset.pattern.permute.xlu0 2
    %2693 = vperm.xlu0 %2692, %v1720
    %v2694 = vpop.permute.xlu0 %2693
    %2696 = vset.pattern.permute.xlu0 2
    %2697 = vperm.xlu0 %2696, %v1721
    %v2698 = vpop.permute.xlu0 %2697
    %2700 = vset.pattern.permute.xlu0 2
    %2701 = vperm.xlu0 %2700, %v1722
    %v2702 = vpop.permute.xlu0 %2701
    %2704 = vset.pattern.permute.xlu0 2
    %2705 = vperm.xlu0 %2704, %v1723
    %v2706 = vpop.permute.xlu0 %2705
    %2708 = vset.pattern.permute.xlu0 2
    %2709 = vperm.xlu0 %2708, %v1724
    %v2710 = vpop.permute.xlu0 %2709
    %2712 = vset.pattern.permute.xlu0 2
    %2713 = vperm.xlu0 %2712, %v1725
    %v2714 = vpop.permute.xlu0 %2713
    %2716 = vset.pattern.permute.xlu0 2
    %2717 = vperm.xlu0 %2716, %v1726
    %v2718 = vpop.permute.xlu0 %2717
    %2720 = vset.pattern.permute.xlu0 2
    %2721 = vperm.xlu0 %2720, %v1727
    %v2722 = vpop.permute.xlu0 %2721
    %2724 = vset.pattern.permute.xlu0 2
    %2725 = vperm.xlu0 %2724, %v1728
    %v2726 = vpop.permute.xlu0 %2725
    %2728 = vset.pattern.permute.xlu0 2
    %2729 = vperm.xlu0 %2728, %v1729
    %v2730 = vpop.permute.xlu0 %2729
    %2732 = vset.pattern.permute.xlu0 2
    %2733 = vperm.xlu0 %2732, %v1730
    %v2734 = vpop.permute.xlu0 %2733
    %2736 = vset.pattern.permute.xlu0 2
    %2737 = vperm.xlu0 %2736, %v1731
    %v2738 = vpop.permute.xlu0 %2737
    %2740 = vset.pattern.permute.xlu0 2
    %2741 = vperm.xlu0 %2740, %v1732
    %v2742 = vpop.permute.xlu0 %2741
    %2744 = vset.pattern.permute.xlu0 2
    %2745 = vperm.xlu0 %2744, %v1733
    %v2746 = vpop.permute.xlu0 %2745
    %2748 = vset.pattern.permute.xlu0 2
    %2749 = vperm.xlu0 %2748, %v1734
    %v2750 = vpop.permute.xlu0 %2749
    %2752 = vset.pattern.permute.xlu0 2
    %2753 = vperm.xlu0 %2752, %v1735
    %v2754 = vpop.permute.xlu0 %2753
    %2756 = vset.pattern.permute.xlu0 2
    %2757 = vperm.xlu0 %2756, %v1736
    %v2758 = vpop.permute.xlu0 %2757
    %2760 = vset.pattern.permute.xlu0 2
    %2761 = vperm.xlu0 %2760, %v1737
    %v2762 = vpop.permute.xlu0 %2761
    %2764 = vset.pattern.permute.xlu0 2
    %2765 = vperm.xlu0 %2764, %v1738
    %v2766 = vpop.permute.xlu0 %2765
    %2768 = vset.pattern.permute.xlu0 2
    %2769 = vperm.xlu0 %2768, %v1739
    %v2770 = vpop.permute.xlu0 %2769
    %2772 = vset.pattern.permute.xlu0 2
    %2773 = vperm.xlu0 %2772, %v1740
    %v2774 = vpop.permute.xlu0 %2773
    %2776 = vset.pattern.permute.xlu0 2
    %2777 = vperm.xlu0 %2776, %v1741
    %v2778 = vpop.permute.xlu0 %2777
    %2780 = vset.pattern.permute.xlu0 2
    %2781 = vperm.xlu0 %2780, %v1742
    %v2782 = vpop.permute.xlu0 %2781
    %2784 = vset.pattern.permute.xlu0 2
    %2785 = vperm.xlu0 %2784, %v1743
    %v2786 = vpop.permute.xlu0 %2785
    %2788 = vset.pattern.permute.xlu0 2
    %2789 = vperm.xlu0 %2788, %v1744
    %v2790 = vpop.permute.xlu0 %2789
    %2792 = vset.pattern.permute.xlu0 2
    %2793 = vperm.xlu0 %2792, %v1745
    %v2794 = vpop.permute.xlu0 %2793
    %2796 = vset.pattern.permute.xlu0 2
    %2797 = vperm.xlu0 %2796, %v1746
    %v2798 = vpop.permute.xlu0 %2797
    %2800 = vset.pattern.permute.xlu0 2
    %2801 = vperm.xlu0 %2800, %v1747
    %v2802 = vpop.permute.xlu0 %2801
    %2804 = vset.pattern.permute.xlu0 2
    %2805 = vperm.xlu0 %2804, %v1748
    %v2806 = vpop.permute.xlu0 %2805
    %2808 = vset.pattern.permute.xlu0 2
    %2809 = vperm.xlu0 %2808, %v1749
    %v2810 = vpop.permute.xlu0 %2809
    %2812 = vset.pattern.permute.xlu0 2
    %2813 = vperm.xlu0 %2812, %v1750
    %v2814 = vpop.permute.xlu0 %2813
    %2816 = vset.pattern.permute.xlu0 2
    %2817 = vperm.xlu0 %2816, %v1751
    %v2818 = vpop.permute.xlu0 %2817
    %2820 = vset.pattern.permute.xlu0 2
    %2821 = vperm.xlu0 %2820, %v1752
    %v2822 = vpop.permute.xlu0 %2821
    %2824 = vset.pattern.permute.xlu0 2
    %2825 = vperm.xlu0 %2824, %v1753
    %v2826 = vpop.permute.xlu0 %2825
    %2828 = vset.pattern.permute.xlu0 2
    %2829 = vperm.xlu0 %2828, %v1754
    %v2830 = vpop.permute.xlu0 %2829
    %2832 = vset.pattern.permute.xlu0 2
    %2833 = vperm.xlu0 %2832, %v1755
    %v2834 = vpop.permute.xlu0 %2833
    %2836 = vset.pattern.permute.xlu0 2
    %2837 = vperm.xlu0 %2836, %v1756
    %v2838 = vpop.permute.xlu0 %2837
    %2840 = vset.pattern.permute.xlu0 2
    %2841 = vperm.xlu0 %2840, %v1757
    %v2842 = vpop.permute.xlu0 %2841
    %2844 = vset.pattern.permute.xlu0 2
    %2845 = vperm.xlu0 %2844, %v1758
    %v2846 = vpop.permute.xlu0 %2845
    %2848 = vset.pattern.permute.xlu0 2
    %2849 = vperm.xlu0 %2848, %v1759
    %v2850 = vpop.permute.xlu0 %2849
    %2852 = vset.pattern.permute.xlu0 2
    %2853 = vperm.xlu0 %2852, %v1760
    %v2854 = vpop.permute.xlu0 %2853
    %2856 = vset.pattern.permute.xlu0 2
    %2857 = vperm.xlu0 %2856, %v1761
    %v2858 = vpop.permute.xlu0 %2857
    %2860 = vset.pattern.permute.xlu0 2
    %2861 = vperm.xlu0 %2860, %v1762
    %v2862 = vpop.permute.xlu0 %2861
    %2864 = vset.pattern.permute.xlu0 2
    %2865 = vperm.xlu0 %2864, %v1763
    %v2866 = vpop.permute.xlu0 %2865
    %v2869 = vlaneseq
    %v2870 = vshrl.u32 %v2869, 7
    %v2871 = vsub.s32 0, %v2870
    %v2872 = vrot.slane %v1766, %v2871
    %v2874 = vmul.f32 %v2614, %v2872
    %v2875 = vmul.f32 %v2618, %v2872
    %v2876 = vmul.f32 %v2622, %v2872
    %v2877 = vmul.f32 %v2626, %v2872
    %v2878 = vmul.f32 %v2630, %v2872
    %v2879 = vmul.f32 %v2634, %v2872
    %v2880 = vmul.f32 %v2638, %v2872
    %v2881 = vmul.f32 %v2642, %v2872
    %v2882 = vmul.f32 %v2646, %v2872
    %v2883 = vmul.f32 %v2650, %v2872
    %v2884 = vmul.f32 %v2654, %v2872
    %v2885 = vmul.f32 %v2658, %v2872
    %v2886 = vmul.f32 %v2662, %v2872
    %v2887 = vmul.f32 %v2666, %v2872
    %v2888 = vmul.f32 %v2670, %v2872
    %v2889 = vmul.f32 %v2674, %v2872
    %v2890 = vmul.f32 %v2678, %v2872
    %v2891 = vmul.f32 %v2682, %v2872
    %v2892 = vmul.f32 %v2686, %v2872
    %v2893 = vmul.f32 %v2690, %v2872
    %v2894 = vmul.f32 %v2694, %v2872
    %v2895 = vmul.f32 %v2698, %v2872
    %v2896 = vmul.f32 %v2702, %v2872
    %v2897 = vmul.f32 %v2706, %v2872
    %v2898 = vmul.f32 %v2710, %v2872
    %v2899 = vmul.f32 %v2714, %v2872
    %v2900 = vmul.f32 %v2718, %v2872
    %v2901 = vmul.f32 %v2722, %v2872
    %v2902 = vmul.f32 %v2726, %v2872
    %v2903 = vmul.f32 %v2730, %v2872
    %v2904 = vmul.f32 %v2734, %v2872
    %v2905 = vmul.f32 %v2738, %v2872
    %v2906 = vmul.f32 %v2742, %v2872
    %v2907 = vmul.f32 %v2746, %v2872
    %v2908 = vmul.f32 %v2750, %v2872
    %v2909 = vmul.f32 %v2754, %v2872
    %v2910 = vmul.f32 %v2758, %v2872
    %v2911 = vmul.f32 %v2762, %v2872
    %v2912 = vmul.f32 %v2766, %v2872
    %v2913 = vmul.f32 %v2770, %v2872
    %v2914 = vmul.f32 %v2774, %v2872
    %v2915 = vmul.f32 %v2778, %v2872
    %v2916 = vmul.f32 %v2782, %v2872
    %v2917 = vmul.f32 %v2786, %v2872
    %v2918 = vmul.f32 %v2790, %v2872
    %v2919 = vmul.f32 %v2794, %v2872
    %v2920 = vmul.f32 %v2798, %v2872
    %v2921 = vmul.f32 %v2802, %v2872
    %v2922 = vmul.f32 %v2806, %v2872
    %v2923 = vmul.f32 %v2810, %v2872
    %v2924 = vmul.f32 %v2814, %v2872
    %v2925 = vmul.f32 %v2818, %v2872
    %v2926 = vmul.f32 %v2822, %v2872
    %v2927 = vmul.f32 %v2826, %v2872
    %v2928 = vmul.f32 %v2830, %v2872
    %v2929 = vmul.f32 %v2834, %v2872
    %v2930 = vmul.f32 %v2838, %v2872
    %v2931 = vmul.f32 %v2842, %v2872
    %v2932 = vmul.f32 %v2846, %v2872
    %v2933 = vmul.f32 %v2850, %v2872
    %v2934 = vmul.f32 %v2854, %v2872
    %v2935 = vmul.f32 %v2858, %v2872
    %v2936 = vmul.f32 %v2862, %v2872
    %v2937 = vmul.f32 %v2866, %v2872
    %v2938 = vadd.f32 %v2548, %v2874
    %v2939 = vadd.f32 %v2549, %v2875
    %v2940 = vadd.f32 %v2550, %v2876
    %v2941 = vadd.f32 %v2551, %v2877
    %v2942 = vadd.f32 %v2552, %v2878
    %v2943 = vadd.f32 %v2553, %v2879
    %v2944 = vadd.f32 %v2554, %v2880
    %v2945 = vadd.f32 %v2555, %v2881
    %v2946 = vadd.f32 %v2556, %v2882
    %v2947 = vadd.f32 %v2557, %v2883
    %v2948 = vadd.f32 %v2558, %v2884
    %v2949 = vadd.f32 %v2559, %v2885
    %v2950 = vadd.f32 %v2560, %v2886
    %v2951 = vadd.f32 %v2561, %v2887
    %v2952 = vadd.f32 %v2562, %v2888
    %v2953 = vadd.f32 %v2563, %v2889
    %v2954 = vadd.f32 %v2564, %v2890
    %v2955 = vadd.f32 %v2565, %v2891
    %v2956 = vadd.f32 %v2566, %v2892
    %v2957 = vadd.f32 %v2567, %v2893
    %v2958 = vadd.f32 %v2568, %v2894
    %v2959 = vadd.f32 %v2569, %v2895
    %v2960 = vadd.f32 %v2570, %v2896
    %v2961 = vadd.f32 %v2571, %v2897
    %v2962 = vadd.f32 %v2572, %v2898
    %v2963 = vadd.f32 %v2573, %v2899
    %v2964 = vadd.f32 %v2574, %v2900
    %v2965 = vadd.f32 %v2575, %v2901
    %v2966 = vadd.f32 %v2576, %v2902
    %v2967 = vadd.f32 %v2577, %v2903
    %v2968 = vadd.f32 %v2578, %v2904
    %v2969 = vadd.f32 %v2579, %v2905
    %v2970 = vadd.f32 %v2580, %v2906
    %v2971 = vadd.f32 %v2581, %v2907
    %v2972 = vadd.f32 %v2582, %v2908
    %v2973 = vadd.f32 %v2583, %v2909
    %v2974 = vadd.f32 %v2584, %v2910
    %v2975 = vadd.f32 %v2585, %v2911
    %v2976 = vadd.f32 %v2586, %v2912
    %v2977 = vadd.f32 %v2587, %v2913
    %v2978 = vadd.f32 %v2588, %v2914
    %v2979 = vadd.f32 %v2589, %v2915
    %v2980 = vadd.f32 %v2590, %v2916
    %v2981 = vadd.f32 %v2591, %v2917
    %v2982 = vadd.f32 %v2592, %v2918
    %v2983 = vadd.f32 %v2593, %v2919
    %v2984 = vadd.f32 %v2594, %v2920
    %v2985 = vadd.f32 %v2595, %v2921
    %v2986 = vadd.f32 %v2596, %v2922
    %v2987 = vadd.f32 %v2597, %v2923
    %v2988 = vadd.f32 %v2598, %v2924
    %v2989 = vadd.f32 %v2599, %v2925
    %v2990 = vadd.f32 %v2600, %v2926
    %v2991 = vadd.f32 %v2601, %v2927
    %v2992 = vadd.f32 %v2602, %v2928
    %v2993 = vadd.f32 %v2603, %v2929
    %v2994 = vadd.f32 %v2604, %v2930
    %v2995 = vadd.f32 %v2605, %v2931
    %v2996 = vadd.f32 %v2606, %v2932
    %v2997 = vadd.f32 %v2607, %v2933
    %v2998 = vadd.f32 %v2608, %v2934
    %v2999 = vadd.f32 %v2609, %v2935
    %v3000 = vadd.f32 %v2610, %v2936
    %v3001 = vadd.f32 %v2611, %v2937
    %3002 = vset.pattern.permute.xlu0 3
    %3003 = vperm.xlu0 %3002, %v1700
    %v3004 = vpop.permute.xlu0 %3003
    %3006 = vset.pattern.permute.xlu0 3
    %3007 = vperm.xlu0 %3006, %v1701
    %v3008 = vpop.permute.xlu0 %3007
    %3010 = vset.pattern.permute.xlu0 3
    %3011 = vperm.xlu0 %3010, %v1702
    %v3012 = vpop.permute.xlu0 %3011
    %3014 = vset.pattern.permute.xlu0 3
    %3015 = vperm.xlu0 %3014, %v1703
    %v3016 = vpop.permute.xlu0 %3015
    %3018 = vset.pattern.permute.xlu0 3
    %3019 = vperm.xlu0 %3018, %v1704
    %v3020 = vpop.permute.xlu0 %3019
    %3022 = vset.pattern.permute.xlu0 3
    %3023 = vperm.xlu0 %3022, %v1705
    %v3024 = vpop.permute.xlu0 %3023
    %3026 = vset.pattern.permute.xlu0 3
    %3027 = vperm.xlu0 %3026, %v1706
    %v3028 = vpop.permute.xlu0 %3027
    %3030 = vset.pattern.permute.xlu0 3
    %3031 = vperm.xlu0 %3030, %v1707
    %v3032 = vpop.permute.xlu0 %3031
    %3034 = vset.pattern.permute.xlu0 3
    %3035 = vperm.xlu0 %3034, %v1708
    %v3036 = vpop.permute.xlu0 %3035
    %3038 = vset.pattern.permute.xlu0 3
    %3039 = vperm.xlu0 %3038, %v1709
    %v3040 = vpop.permute.xlu0 %3039
    %3042 = vset.pattern.permute.xlu0 3
    %3043 = vperm.xlu0 %3042, %v1710
    %v3044 = vpop.permute.xlu0 %3043
    %3046 = vset.pattern.permute.xlu0 3
    %3047 = vperm.xlu0 %3046, %v1711
    %v3048 = vpop.permute.xlu0 %3047
    %3050 = vset.pattern.permute.xlu0 3
    %3051 = vperm.xlu0 %3050, %v1712
    %v3052 = vpop.permute.xlu0 %3051
    %3054 = vset.pattern.permute.xlu0 3
    %3055 = vperm.xlu0 %3054, %v1713
    %v3056 = vpop.permute.xlu0 %3055
    %3058 = vset.pattern.permute.xlu0 3
    %3059 = vperm.xlu0 %3058, %v1714
    %v3060 = vpop.permute.xlu0 %3059
    %3062 = vset.pattern.permute.xlu0 3
    %3063 = vperm.xlu0 %3062, %v1715
    %v3064 = vpop.permute.xlu0 %3063
    %3066 = vset.pattern.permute.xlu0 3
    %3067 = vperm.xlu0 %3066, %v1716
    %v3068 = vpop.permute.xlu0 %3067
    %3070 = vset.pattern.permute.xlu0 3
    %3071 = vperm.xlu0 %3070, %v1717
    %v3072 = vpop.permute.xlu0 %3071
    %3074 = vset.pattern.permute.xlu0 3
    %3075 = vperm.xlu0 %3074, %v1718
    %v3076 = vpop.permute.xlu0 %3075
    %3078 = vset.pattern.permute.xlu0 3
    %3079 = vperm.xlu0 %3078, %v1719
    %v3080 = vpop.permute.xlu0 %3079
    %3082 = vset.pattern.permute.xlu0 3
    %3083 = vperm.xlu0 %3082, %v1720
    %v3084 = vpop.permute.xlu0 %3083
    %3086 = vset.pattern.permute.xlu0 3
    %3087 = vperm.xlu0 %3086, %v1721
    %v3088 = vpop.permute.xlu0 %3087
    %3090 = vset.pattern.permute.xlu0 3
    %3091 = vperm.xlu0 %3090, %v1722
    %v3092 = vpop.permute.xlu0 %3091
    %3094 = vset.pattern.permute.xlu0 3
    %3095 = vperm.xlu0 %3094, %v1723
    %v3096 = vpop.permute.xlu0 %3095
    %3098 = vset.pattern.permute.xlu0 3
    %3099 = vperm.xlu0 %3098, %v1724
    %v3100 = vpop.permute.xlu0 %3099
    %3102 = vset.pattern.permute.xlu0 3
    %3103 = vperm.xlu0 %3102, %v1725
    %v3104 = vpop.permute.xlu0 %3103
    %3106 = vset.pattern.permute.xlu0 3
    %3107 = vperm.xlu0 %3106, %v1726
    %v3108 = vpop.permute.xlu0 %3107
    %3110 = vset.pattern.permute.xlu0 3
    %3111 = vperm.xlu0 %3110, %v1727
    %v3112 = vpop.permute.xlu0 %3111
    %3114 = vset.pattern.permute.xlu0 3
    %3115 = vperm.xlu0 %3114, %v1728
    %v3116 = vpop.permute.xlu0 %3115
    %3118 = vset.pattern.permute.xlu0 3
    %3119 = vperm.xlu0 %3118, %v1729
    %v3120 = vpop.permute.xlu0 %3119
    %3122 = vset.pattern.permute.xlu0 3
    %3123 = vperm.xlu0 %3122, %v1730
    %v3124 = vpop.permute.xlu0 %3123
    %3126 = vset.pattern.permute.xlu0 3
    %3127 = vperm.xlu0 %3126, %v1731
    %v3128 = vpop.permute.xlu0 %3127
    %3130 = vset.pattern.permute.xlu0 3
    %3131 = vperm.xlu0 %3130, %v1732
    %v3132 = vpop.permute.xlu0 %3131
    %3134 = vset.pattern.permute.xlu0 3
    %3135 = vperm.xlu0 %3134, %v1733
    %v3136 = vpop.permute.xlu0 %3135
    %3138 = vset.pattern.permute.xlu0 3
    %3139 = vperm.xlu0 %3138, %v1734
    %v3140 = vpop.permute.xlu0 %3139
    %3142 = vset.pattern.permute.xlu0 3
    %3143 = vperm.xlu0 %3142, %v1735
    %v3144 = vpop.permute.xlu0 %3143
    %3146 = vset.pattern.permute.xlu0 3
    %3147 = vperm.xlu0 %3146, %v1736
    %v3148 = vpop.permute.xlu0 %3147
    %3150 = vset.pattern.permute.xlu0 3
    %3151 = vperm.xlu0 %3150, %v1737
    %v3152 = vpop.permute.xlu0 %3151
    %3154 = vset.pattern.permute.xlu0 3
    %3155 = vperm.xlu0 %3154, %v1738
    %v3156 = vpop.permute.xlu0 %3155
    %3158 = vset.pattern.permute.xlu0 3
    %3159 = vperm.xlu0 %3158, %v1739
    %v3160 = vpop.permute.xlu0 %3159
    %3162 = vset.pattern.permute.xlu0 3
    %3163 = vperm.xlu0 %3162, %v1740
    %v3164 = vpop.permute.xlu0 %3163
    %3166 = vset.pattern.permute.xlu0 3
    %3167 = vperm.xlu0 %3166, %v1741
    %v3168 = vpop.permute.xlu0 %3167
    %3170 = vset.pattern.permute.xlu0 3
    %3171 = vperm.xlu0 %3170, %v1742
    %v3172 = vpop.permute.xlu0 %3171
    %3174 = vset.pattern.permute.xlu0 3
    %3175 = vperm.xlu0 %3174, %v1743
    %v3176 = vpop.permute.xlu0 %3175
    %3178 = vset.pattern.permute.xlu0 3
    %3179 = vperm.xlu0 %3178, %v1744
    %v3180 = vpop.permute.xlu0 %3179
    %3182 = vset.pattern.permute.xlu0 3
    %3183 = vperm.xlu0 %3182, %v1745
    %v3184 = vpop.permute.xlu0 %3183
    %3186 = vset.pattern.permute.xlu0 3
    %3187 = vperm.xlu0 %3186, %v1746
    %v3188 = vpop.permute.xlu0 %3187
    %3190 = vset.pattern.permute.xlu0 3
    %3191 = vperm.xlu0 %3190, %v1747
    %v3192 = vpop.permute.xlu0 %3191
    %3194 = vset.pattern.permute.xlu0 3
    %3195 = vperm.xlu0 %3194, %v1748
    %v3196 = vpop.permute.xlu0 %3195
    %3198 = vset.pattern.permute.xlu0 3
    %3199 = vperm.xlu0 %3198, %v1749
    %v3200 = vpop.permute.xlu0 %3199
    %3202 = vset.pattern.permute.xlu0 3
    %3203 = vperm.xlu0 %3202, %v1750
    %v3204 = vpop.permute.xlu0 %3203
    %3206 = vset.pattern.permute.xlu0 3
    %3207 = vperm.xlu0 %3206, %v1751
    %v3208 = vpop.permute.xlu0 %3207
    %3210 = vset.pattern.permute.xlu0 3
    %3211 = vperm.xlu0 %3210, %v1752
    %v3212 = vpop.permute.xlu0 %3211
    %3214 = vset.pattern.permute.xlu0 3
    %3215 = vperm.xlu0 %3214, %v1753
    %v3216 = vpop.permute.xlu0 %3215
    %3218 = vset.pattern.permute.xlu0 3
    %3219 = vperm.xlu0 %3218, %v1754
    %v3220 = vpop.permute.xlu0 %3219
    %3222 = vset.pattern.permute.xlu0 3
    %3223 = vperm.xlu0 %3222, %v1755
    %v3224 = vpop.permute.xlu0 %3223
    %3226 = vset.pattern.permute.xlu0 3
    %3227 = vperm.xlu0 %3226, %v1756
    %v3228 = vpop.permute.xlu0 %3227
    %3230 = vset.pattern.permute.xlu0 3
    %3231 = vperm.xlu0 %3230, %v1757
    %v3232 = vpop.permute.xlu0 %3231
    %3234 = vset.pattern.permute.xlu0 3
    %3235 = vperm.xlu0 %3234, %v1758
    %v3236 = vpop.permute.xlu0 %3235
    %3238 = vset.pattern.permute.xlu0 3
    %3239 = vperm.xlu0 %3238, %v1759
    %v3240 = vpop.permute.xlu0 %3239
    %3242 = vset.pattern.permute.xlu0 3
    %3243 = vperm.xlu0 %3242, %v1760
    %v3244 = vpop.permute.xlu0 %3243
    %3246 = vset.pattern.permute.xlu0 3
    %3247 = vperm.xlu0 %3246, %v1761
    %v3248 = vpop.permute.xlu0 %3247
    %3250 = vset.pattern.permute.xlu0 3
    %3251 = vperm.xlu0 %3250, %v1762
    %v3252 = vpop.permute.xlu0 %3251
    %3254 = vset.pattern.permute.xlu0 3
    %3255 = vperm.xlu0 %3254, %v1763
    %v3256 = vpop.permute.xlu0 %3255
    %v3259 = vlaneseq
    %v3260 = vshrl.u32 %v3259, 7
    %v3261 = vsub.s32 0, %v3260
    %v3262 = vrot.slane %v1767, %v3261
    %v3264 = vmul.f32 %v3004, %v3262
    %v3265 = vmul.f32 %v3008, %v3262
    %v3266 = vmul.f32 %v3012, %v3262
    %v3267 = vmul.f32 %v3016, %v3262
    %v3268 = vmul.f32 %v3020, %v3262
    %v3269 = vmul.f32 %v3024, %v3262
    %v3270 = vmul.f32 %v3028, %v3262
    %v3271 = vmul.f32 %v3032, %v3262
    %v3272 = vmul.f32 %v3036, %v3262
    %v3273 = vmul.f32 %v3040, %v3262
    %v3274 = vmul.f32 %v3044, %v3262
    %v3275 = vmul.f32 %v3048, %v3262
    %v3276 = vmul.f32 %v3052, %v3262
    %v3277 = vmul.f32 %v3056, %v3262
    %v3278 = vmul.f32 %v3060, %v3262
    %v3279 = vmul.f32 %v3064, %v3262
    %v3280 = vmul.f32 %v3068, %v3262
    %v3281 = vmul.f32 %v3072, %v3262
    %v3282 = vmul.f32 %v3076, %v3262
    %v3283 = vmul.f32 %v3080, %v3262
    %v3284 = vmul.f32 %v3084, %v3262
    %v3285 = vmul.f32 %v3088, %v3262
    %v3286 = vmul.f32 %v3092, %v3262
    %v3287 = vmul.f32 %v3096, %v3262
    %v3288 = vmul.f32 %v3100, %v3262
    %v3289 = vmul.f32 %v3104, %v3262
    %v3290 = vmul.f32 %v3108, %v3262
    %v3291 = vmul.f32 %v3112, %v3262
    %v3292 = vmul.f32 %v3116, %v3262
    %v3293 = vmul.f32 %v3120, %v3262
    %v3294 = vmul.f32 %v3124, %v3262
    %v3295 = vmul.f32 %v3128, %v3262
    %v3296 = vmul.f32 %v3132, %v3262
    %v3297 = vmul.f32 %v3136, %v3262
    %v3298 = vmul.f32 %v3140, %v3262
    %v3299 = vmul.f32 %v3144, %v3262
    %v3300 = vmul.f32 %v3148, %v3262
    %v3301 = vmul.f32 %v3152, %v3262
    %v3302 = vmul.f32 %v3156, %v3262
    %v3303 = vmul.f32 %v3160, %v3262
    %v3304 = vmul.f32 %v3164, %v3262
    %v3305 = vmul.f32 %v3168, %v3262
    %v3306 = vmul.f32 %v3172, %v3262
    %v3307 = vmul.f32 %v3176, %v3262
    %v3308 = vmul.f32 %v3180, %v3262
    %v3309 = vmul.f32 %v3184, %v3262
    %v3310 = vmul.f32 %v3188, %v3262
    %v3311 = vmul.f32 %v3192, %v3262
    %v3312 = vmul.f32 %v3196, %v3262
    %v3313 = vmul.f32 %v3200, %v3262
    %v3314 = vmul.f32 %v3204, %v3262
    %v3315 = vmul.f32 %v3208, %v3262
    %v3316 = vmul.f32 %v3212, %v3262
    %v3317 = vmul.f32 %v3216, %v3262
    %v3318 = vmul.f32 %v3220, %v3262
    %v3319 = vmul.f32 %v3224, %v3262
    %v3320 = vmul.f32 %v3228, %v3262
    %v3321 = vmul.f32 %v3232, %v3262
    %v3322 = vmul.f32 %v3236, %v3262
    %v3323 = vmul.f32 %v3240, %v3262
    %v3324 = vmul.f32 %v3244, %v3262
    %v3325 = vmul.f32 %v3248, %v3262
    %v3326 = vmul.f32 %v3252, %v3262
    %v3327 = vmul.f32 %v3256, %v3262
    %v3328 = vadd.f32 %v2938, %v3264
    %v3329 = vadd.f32 %v2939, %v3265
    %v3330 = vadd.f32 %v2940, %v3266
    %v3331 = vadd.f32 %v2941, %v3267
    %v3332 = vadd.f32 %v2942, %v3268
    %v3333 = vadd.f32 %v2943, %v3269
    %v3334 = vadd.f32 %v2944, %v3270
    %v3335 = vadd.f32 %v2945, %v3271
    %v3336 = vadd.f32 %v2946, %v3272
    %v3337 = vadd.f32 %v2947, %v3273
    %v3338 = vadd.f32 %v2948, %v3274
    %v3339 = vadd.f32 %v2949, %v3275
    %v3340 = vadd.f32 %v2950, %v3276
    %v3341 = vadd.f32 %v2951, %v3277
    %v3342 = vadd.f32 %v2952, %v3278
    %v3343 = vadd.f32 %v2953, %v3279
    %v3344 = vadd.f32 %v2954, %v3280
    %v3345 = vadd.f32 %v2955, %v3281
    %v3346 = vadd.f32 %v2956, %v3282
    %v3347 = vadd.f32 %v2957, %v3283
    %v3348 = vadd.f32 %v2958, %v3284
    %v3349 = vadd.f32 %v2959, %v3285
    %v3350 = vadd.f32 %v2960, %v3286
    %v3351 = vadd.f32 %v2961, %v3287
    %v3352 = vadd.f32 %v2962, %v3288
    %v3353 = vadd.f32 %v2963, %v3289
    %v3354 = vadd.f32 %v2964, %v3290
    %v3355 = vadd.f32 %v2965, %v3291
    %v3356 = vadd.f32 %v2966, %v3292
    %v3357 = vadd.f32 %v2967, %v3293
    %v3358 = vadd.f32 %v2968, %v3294
    %v3359 = vadd.f32 %v2969, %v3295
    %v3360 = vadd.f32 %v2970, %v3296
    %v3361 = vadd.f32 %v2971, %v3297
    %v3362 = vadd.f32 %v2972, %v3298
    %v3363 = vadd.f32 %v2973, %v3299
    %v3364 = vadd.f32 %v2974, %v3300
    %v3365 = vadd.f32 %v2975, %v3301
    %v3366 = vadd.f32 %v2976, %v3302
    %v3367 = vadd.f32 %v2977, %v3303
    %v3368 = vadd.f32 %v2978, %v3304
    %v3369 = vadd.f32 %v2979, %v3305
    %v3370 = vadd.f32 %v2980, %v3306
    %v3371 = vadd.f32 %v2981, %v3307
    %v3372 = vadd.f32 %v2982, %v3308
    %v3373 = vadd.f32 %v2983, %v3309
    %v3374 = vadd.f32 %v2984, %v3310
    %v3375 = vadd.f32 %v2985, %v3311
    %v3376 = vadd.f32 %v2986, %v3312
    %v3377 = vadd.f32 %v2987, %v3313
    %v3378 = vadd.f32 %v2988, %v3314
    %v3379 = vadd.f32 %v2989, %v3315
    %v3380 = vadd.f32 %v2990, %v3316
    %v3381 = vadd.f32 %v2991, %v3317
    %v3382 = vadd.f32 %v2992, %v3318
    %v3383 = vadd.f32 %v2993, %v3319
    %v3384 = vadd.f32 %v2994, %v3320
    %v3385 = vadd.f32 %v2995, %v3321
    %v3386 = vadd.f32 %v2996, %v3322
    %v3387 = vadd.f32 %v2997, %v3323
    %v3388 = vadd.f32 %v2998, %v3324
    %v3389 = vadd.f32 %v2999, %v3325
    %v3390 = vadd.f32 %v3000, %v3326
    %v3391 = vadd.f32 %v3001, %v3327
    %v3392 = vld [vmem:[%s7] sm:$0x1]
    %v3394 = vlaneseq
    %v3395 = vshrl.u32 %v3394, 7
    %v3396 = vsub.s32 0, %v3395
    %v3397 = vrot.slane %v3392, %v3396
    %v3399 = vadd.f32 %v3328, %v3397
    %v3400 = vadd.f32 %v3329, %v3397
    %v3401 = vadd.f32 %v3330, %v3397
    %v3402 = vadd.f32 %v3331, %v3397
    %v3403 = vadd.f32 %v3332, %v3397
    %v3404 = vadd.f32 %v3333, %v3397
    %v3405 = vadd.f32 %v3334, %v3397
    %v3406 = vadd.f32 %v3335, %v3397
    %v3407 = vadd.f32 %v3336, %v3397
    %v3408 = vadd.f32 %v3337, %v3397
    %v3409 = vadd.f32 %v3338, %v3397
    %v3410 = vadd.f32 %v3339, %v3397
    %v3411 = vadd.f32 %v3340, %v3397
    %v3412 = vadd.f32 %v3341, %v3397
    %v3413 = vadd.f32 %v3342, %v3397
    %v3414 = vadd.f32 %v3343, %v3397
    %v3415 = vadd.f32 %v3344, %v3397
    %v3416 = vadd.f32 %v3345, %v3397
    %v3417 = vadd.f32 %v3346, %v3397
    %v3418 = vadd.f32 %v3347, %v3397
    %v3419 = vadd.f32 %v3348, %v3397
    %v3420 = vadd.f32 %v3349, %v3397
    %v3421 = vadd.f32 %v3350, %v3397
    %v3422 = vadd.f32 %v3351, %v3397
    %v3423 = vadd.f32 %v3352, %v3397
    %v3424 = vadd.f32 %v3353, %v3397
    %v3425 = vadd.f32 %v3354, %v3397
    %v3426 = vadd.f32 %v3355, %v3397
    %v3427 = vadd.f32 %v3356, %v3397
    %v3428 = vadd.f32 %v3357, %v3397
    %v3429 = vadd.f32 %v3358, %v3397
    %v3430 = vadd.f32 %v3359, %v3397
    %v3431 = vadd.f32 %v3360, %v3397
    %v3432 = vadd.f32 %v3361, %v3397
    %v3433 = vadd.f32 %v3362, %v3397
    %v3434 = vadd.f32 %v3363, %v3397
    %v3435 = vadd.f32 %v3364, %v3397
    %v3436 = vadd.f32 %v3365, %v3397
    %v3437 = vadd.f32 %v3366, %v3397
    %v3438 = vadd.f32 %v3367, %v3397
    %v3439 = vadd.f32 %v3368, %v3397
    %v3440 = vadd.f32 %v3369, %v3397
    %v3441 = vadd.f32 %v3370, %v3397
    %v3442 = vadd.f32 %v3371, %v3397
    %v3443 = vadd.f32 %v3372, %v3397
    %v3444 = vadd.f32 %v3373, %v3397
    %v3445 = vadd.f32 %v3374, %v3397
    %v3446 = vadd.f32 %v3375, %v3397
    %v3447 = vadd.f32 %v3376, %v3397
    %v3448 = vadd.f32 %v3377, %v3397
    %v3449 = vadd.f32 %v3378, %v3397
    %v3450 = vadd.f32 %v3379, %v3397
    %v3451 = vadd.f32 %v3380, %v3397
    %v3452 = vadd.f32 %v3381, %v3397
    %v3453 = vadd.f32 %v3382, %v3397
    %v3454 = vadd.f32 %v3383, %v3397
    %v3455 = vadd.f32 %v3384, %v3397
    %v3456 = vadd.f32 %v3385, %v3397
    %v3457 = vadd.f32 %v3386, %v3397
    %v3458 = vadd.f32 %v3387, %v3397
    %v3459 = vadd.f32 %v3388, %v3397
    %v3460 = vadd.f32 %v3389, %v3397
    %v3461 = vadd.f32 %v3390, %v3397
    %v3462 = vadd.f32 %v3391, %v3397
    %vm3463 = vcmask 58368
    %v3464 = vsel %vm3463, %v3399, 0.0
    %v3465 = vsel %vm3463, %v3400, 0.0
    %v3466 = vadd.f32 %v3464, %v3465
    %v3467 = vsel %vm3463, %v3401, 0.0
    %v3468 = vadd.f32 %v3466, %v3467
    %v3469 = vsel %vm3463, %v3402, 0.0
    %v3470 = vadd.f32 %v3468, %v3469
    %v3471 = vsel %vm3463, %v3403, 0.0
    %v3472 = vadd.f32 %v3470, %v3471
    %v3473 = vsel %vm3463, %v3404, 0.0
    %v3474 = vadd.f32 %v3472, %v3473
    %v3475 = vsel %vm3463, %v3405, 0.0
    %v3476 = vadd.f32 %v3474, %v3475
    %v3477 = vsel %vm3463, %v3406, 0.0
    %v3478 = vadd.f32 %v3476, %v3477
    %v3479 = vsel %vm3463, %v3407, 0.0
    %v3480 = vadd.f32 %v3478, %v3479
    %v3481 = vsel %vm3463, %v3408, 0.0
    %v3482 = vadd.f32 %v3480, %v3481
    %v3483 = vsel %vm3463, %v3409, 0.0
    %v3484 = vadd.f32 %v3482, %v3483
    %v3485 = vsel %vm3463, %v3410, 0.0
    %v3486 = vadd.f32 %v3484, %v3485
    %v3487 = vsel %vm3463, %v3411, 0.0
    %v3488 = vadd.f32 %v3486, %v3487
    %v3489 = vsel %vm3463, %v3412, 0.0
    %v3490 = vadd.f32 %v3488, %v3489
    %v3491 = vsel %vm3463, %v3413, 0.0
    %v3492 = vadd.f32 %v3490, %v3491
    %v3493 = vsel %vm3463, %v3414, 0.0
    %v3494 = vadd.f32 %v3492, %v3493
    %v3495 = vsel %vm3463, %v3415, 0.0
    %v3496 = vadd.f32 %v3494, %v3495
    %v3497 = vsel %vm3463, %v3416, 0.0
    %v3498 = vadd.f32 %v3496, %v3497
    %v3499 = vsel %vm3463, %v3417, 0.0
    %v3500 = vadd.f32 %v3498, %v3499
    %v3501 = vsel %vm3463, %v3418, 0.0
    %v3502 = vadd.f32 %v3500, %v3501
    %v3503 = vsel %vm3463, %v3419, 0.0
    %v3504 = vadd.f32 %v3502, %v3503
    %v3505 = vsel %vm3463, %v3420, 0.0
    %v3506 = vadd.f32 %v3504, %v3505
    %v3507 = vsel %vm3463, %v3421, 0.0
    %v3508 = vadd.f32 %v3506, %v3507
    %v3509 = vsel %vm3463, %v3422, 0.0
    %v3510 = vadd.f32 %v3508, %v3509
    %v3511 = vsel %vm3463, %v3423, 0.0
    %v3512 = vadd.f32 %v3510, %v3511
    %v3513 = vsel %vm3463, %v3424, 0.0
    %v3514 = vadd.f32 %v3512, %v3513
    %v3515 = vsel %vm3463, %v3425, 0.0
    %v3516 = vadd.f32 %v3514, %v3515
    %v3517 = vsel %vm3463, %v3426, 0.0
    %v3518 = vadd.f32 %v3516, %v3517
    %v3519 = vsel %vm3463, %v3427, 0.0
    %v3520 = vadd.f32 %v3518, %v3519
    %v3521 = vsel %vm3463, %v3428, 0.0
    %v3522 = vadd.f32 %v3520, %v3521
    %v3523 = vsel %vm3463, %v3429, 0.0
    %v3524 = vadd.f32 %v3522, %v3523
    %v3525 = vsel %vm3463, %v3430, 0.0
    %v3526 = vadd.f32 %v3524, %v3525
    %v3527 = vsel %vm3463, %v3431, 0.0
    %v3528 = vadd.f32 %v3526, %v3527
    %v3529 = vsel %vm3463, %v3432, 0.0
    %v3530 = vadd.f32 %v3528, %v3529
    %v3531 = vsel %vm3463, %v3433, 0.0
    %v3532 = vadd.f32 %v3530, %v3531
    %v3533 = vsel %vm3463, %v3434, 0.0
    %v3534 = vadd.f32 %v3532, %v3533
    %v3535 = vsel %vm3463, %v3435, 0.0
    %v3536 = vadd.f32 %v3534, %v3535
    %v3537 = vsel %vm3463, %v3436, 0.0
    %v3538 = vadd.f32 %v3536, %v3537
    %v3539 = vsel %vm3463, %v3437, 0.0
    %v3540 = vadd.f32 %v3538, %v3539
    %v3541 = vsel %vm3463, %v3438, 0.0
    %v3542 = vadd.f32 %v3540, %v3541
    %v3543 = vsel %vm3463, %v3439, 0.0
    %v3544 = vadd.f32 %v3542, %v3543
    %v3545 = vsel %vm3463, %v3440, 0.0
    %v3546 = vadd.f32 %v3544, %v3545
    %v3547 = vsel %vm3463, %v3441, 0.0
    %v3548 = vadd.f32 %v3546, %v3547
    %v3549 = vsel %vm3463, %v3442, 0.0
    %v3550 = vadd.f32 %v3548, %v3549
    %v3551 = vsel %vm3463, %v3443, 0.0
    %v3552 = vadd.f32 %v3550, %v3551
    %v3553 = vsel %vm3463, %v3444, 0.0
    %v3554 = vadd.f32 %v3552, %v3553
    %v3555 = vsel %vm3463, %v3445, 0.0
    %v3556 = vadd.f32 %v3554, %v3555
    %v3557 = vsel %vm3463, %v3446, 0.0
    %v3558 = vadd.f32 %v3556, %v3557
    %v3559 = vsel %vm3463, %v3447, 0.0
    %v3560 = vadd.f32 %v3558, %v3559
    %v3561 = vsel %vm3463, %v3448, 0.0
    %v3562 = vadd.f32 %v3560, %v3561
    %v3563 = vsel %vm3463, %v3449, 0.0
    %v3564 = vadd.f32 %v3562, %v3563
    %v3565 = vsel %vm3463, %v3450, 0.0
    %v3566 = vadd.f32 %v3564, %v3565
    %v3567 = vsel %vm3463, %v3451, 0.0
    %v3568 = vadd.f32 %v3566, %v3567
    %v3569 = vsel %vm3463, %v3452, 0.0
    %v3570 = vadd.f32 %v3568, %v3569
    %v3571 = vsel %vm3463, %v3453, 0.0
    %v3572 = vadd.f32 %v3570, %v3571
    %v3573 = vsel %vm3463, %v3454, 0.0
    %v3574 = vadd.f32 %v3572, %v3573
    %v3575 = vsel %vm3463, %v3455, 0.0
    %v3576 = vadd.f32 %v3574, %v3575
    %v3577 = vsel %vm3463, %v3456, 0.0
    %v3578 = vadd.f32 %v3576, %v3577
    %v3579 = vsel %vm3463, %v3457, 0.0
    %v3580 = vadd.f32 %v3578, %v3579
    %v3581 = vsel %vm3463, %v3458, 0.0
    %v3582 = vadd.f32 %v3580, %v3581
    %v3583 = vsel %vm3463, %v3459, 0.0
    %v3584 = vadd.f32 %v3582, %v3583
    %v3585 = vsel %vm3463, %v3460, 0.0
    %v3586 = vadd.f32 %v3584, %v3585
    %v3587 = vsel %vm3463, %v3461, 0.0
    %v3588 = vadd.f32 %v3586, %v3587
    %v3589 = vsel %vm3463, %v3462, 0.0
    %v3590 = vadd.f32 %v3588, %v3589
    %v3591 = vrot.slane %v3590, 4
    %v3592 = vadd.f32 %v3590, %v3591
    %v3593 = vrot.slane %v3592, 2
    %v3594 = vadd.f32 %v3592, %v3593
    %v3595 = vrot.slane %v3594, 1
    %v3596 = vadd.f32 %v3594, %v3595
    %v3597 = vrcp.pop 128.0
    %v3598 = vmul.f32 %v3596, %v3597
    %v3599 = vsub.f32 %v3399, %v3598
    %v3600 = vsub.f32 %v3400, %v3598
    %v3601 = vsub.f32 %v3401, %v3598
    %v3602 = vsub.f32 %v3402, %v3598
    %v3603 = vsub.f32 %v3403, %v3598
    %v3604 = vsub.f32 %v3404, %v3598
    %v3605 = vsub.f32 %v3405, %v3598
    %v3606 = vsub.f32 %v3406, %v3598
    %v3607 = vsub.f32 %v3407, %v3598
    %v3608 = vsub.f32 %v3408, %v3598
    %v3609 = vsub.f32 %v3409, %v3598
    %v3610 = vsub.f32 %v3410, %v3598
    %v3611 = vsub.f32 %v3411, %v3598
    %v3612 = vsub.f32 %v3412, %v3598
    %v3613 = vsub.f32 %v3413, %v3598
    %v3614 = vsub.f32 %v3414, %v3598
    %v3615 = vsub.f32 %v3415, %v3598
    %v3616 = vsub.f32 %v3416, %v3598
    %v3617 = vsub.f32 %v3417, %v3598
    %v3618 = vsub.f32 %v3418, %v3598
    %v3619 = vsub.f32 %v3419, %v3598
    %v3620 = vsub.f32 %v3420, %v3598
    %v3621 = vsub.f32 %v3421, %v3598
    %v3622 = vsub.f32 %v3422, %v3598
    %v3623 = vsub.f32 %v3423, %v3598
    %v3624 = vsub.f32 %v3424, %v3598
    %v3625 = vsub.f32 %v3425, %v3598
    %v3626 = vsub.f32 %v3426, %v3598
    %v3627 = vsub.f32 %v3427, %v3598
    %v3628 = vsub.f32 %v3428, %v3598
    %v3629 = vsub.f32 %v3429, %v3598
    %v3630 = vsub.f32 %v3430, %v3598
    %v3631 = vsub.f32 %v3431, %v3598
    %v3632 = vsub.f32 %v3432, %v3598
    %v3633 = vsub.f32 %v3433, %v3598
    %v3634 = vsub.f32 %v3434, %v3598
    %v3635 = vsub.f32 %v3435, %v3598
    %v3636 = vsub.f32 %v3436, %v3598
    %v3637 = vsub.f32 %v3437, %v3598
    %v3638 = vsub.f32 %v3438, %v3598
    %v3639 = vsub.f32 %v3439, %v3598
    %v3640 = vsub.f32 %v3440, %v3598
    %v3641 = vsub.f32 %v3441, %v3598
    %v3642 = vsub.f32 %v3442, %v3598
    %v3643 = vsub.f32 %v3443, %v3598
    %v3644 = vsub.f32 %v3444, %v3598
    %v3645 = vsub.f32 %v3445, %v3598
    %v3646 = vsub.f32 %v3446, %v3598
    %v3647 = vsub.f32 %v3447, %v3598
    %v3648 = vsub.f32 %v3448, %v3598
    %v3649 = vsub.f32 %v3449, %v3598
    %v3650 = vsub.f32 %v3450, %v3598
    %v3651 = vsub.f32 %v3451, %v3598
    %v3652 = vsub.f32 %v3452, %v3598
    %v3653 = vsub.f32 %v3453, %v3598
    %v3654 = vsub.f32 %v3454, %v3598
    %v3655 = vsub.f32 %v3455, %v3598
    %v3656 = vsub.f32 %v3456, %v3598
    %v3657 = vsub.f32 %v3457, %v3598
    %v3658 = vsub.f32 %v3458, %v3598
    %v3659 = vsub.f32 %v3459, %v3598
    %v3660 = vsub.f32 %v3460, %v3598
    %v3661 = vsub.f32 %v3461, %v3598
    %v3662 = vsub.f32 %v3462, %v3598
    %v3663 = vmul.f32 %v3599, %v3599
    %v3664 = vmul.f32 %v3600, %v3600
    %v3665 = vmul.f32 %v3601, %v3601
    %v3666 = vmul.f32 %v3602, %v3602
    %v3667 = vmul.f32 %v3603, %v3603
    %v3668 = vmul.f32 %v3604, %v3604
    %v3669 = vmul.f32 %v3605, %v3605
    %v3670 = vmul.f32 %v3606, %v3606
    %v3671 = vmul.f32 %v3607, %v3607
    %v3672 = vmul.f32 %v3608, %v3608
    %v3673 = vmul.f32 %v3609, %v3609
    %v3674 = vmul.f32 %v3610, %v3610
    %v3675 = vmul.f32 %v3611, %v3611
    %v3676 = vmul.f32 %v3612, %v3612
    %v3677 = vmul.f32 %v3613, %v3613
    %v3678 = vmul.f32 %v3614, %v3614
    %v3679 = vmul.f32 %v3615, %v3615
    %v3680 = vmul.f32 %v3616, %v3616
    %v3681 = vmul.f32 %v3617, %v3617
    %v3682 = vmul.f32 %v3618, %v3618
    %v3683 = vmul.f32 %v3619, %v3619
    %v3684 = vmul.f32 %v3620, %v3620
    %v3685 = vmul.f32 %v3621, %v3621
    %v3686 = vmul.f32 %v3622, %v3622
    %v3687 = vmul.f32 %v3623, %v3623
    %v3688 = vmul.f32 %v3624, %v3624
    %v3689 = vmul.f32 %v3625, %v3625
    %v3690 = vmul.f32 %v3626, %v3626
    %v3691 = vmul.f32 %v3627, %v3627
    %v3692 = vmul.f32 %v3628, %v3628
    %v3693 = vmul.f32 %v3629, %v3629
    %v3694 = vmul.f32 %v3630, %v3630
    %v3695 = vmul.f32 %v3631, %v3631
    %v3696 = vmul.f32 %v3632, %v3632
    %v3697 = vmul.f32 %v3633, %v3633
    %v3698 = vmul.f32 %v3634, %v3634
    %v3699 = vmul.f32 %v3635, %v3635
    %v3700 = vmul.f32 %v3636, %v3636
    %v3701 = vmul.f32 %v3637, %v3637
    %v3702 = vmul.f32 %v3638, %v3638
    %v3703 = vmul.f32 %v3639, %v3639
    %v3704 = vmul.f32 %v3640, %v3640
    %v3705 = vmul.f32 %v3641, %v3641
    %v3706 = vmul.f32 %v3642, %v3642
    %v3707 = vmul.f32 %v3643, %v3643
    %v3708 = vmul.f32 %v3644, %v3644
    %v3709 = vmul.f32 %v3645, %v3645
    %v3710 = vmul.f32 %v3646, %v3646
    %v3711 = vmul.f32 %v3647, %v3647
    %v3712 = vmul.f32 %v3648, %v3648
    %v3713 = vmul.f32 %v3649, %v3649
    %v3714 = vmul.f32 %v3650, %v3650
    %v3715 = vmul.f32 %v3651, %v3651
    %v3716 = vmul.f32 %v3652, %v3652
    %v3717 = vmul.f32 %v3653, %v3653
    %v3718 = vmul.f32 %v3654, %v3654
    %v3719 = vmul.f32 %v3655, %v3655
    %v3720 = vmul.f32 %v3656, %v3656
    %v3721 = vmul.f32 %v3657, %v3657
    %v3722 = vmul.f32 %v3658, %v3658
    %v3723 = vmul.f32 %v3659, %v3659
    %v3724 = vmul.f32 %v3660, %v3660
    %v3725 = vmul.f32 %v3661, %v3661
    %v3726 = vmul.f32 %v3662, %v3662
    %v3727 = vsel %vm3463, %v3663, 0.0
    %v3728 = vsel %vm3463, %v3664, 0.0
    %v3729 = vadd.f32 %v3727, %v3728
    %v3730 = vsel %vm3463, %v3665, 0.0
    %v3731 = vadd.f32 %v3729, %v3730
    %v3732 = vsel %vm3463, %v3666, 0.0
    %v3733 = vadd.f32 %v3731, %v3732
    %v3734 = vsel %vm3463, %v3667, 0.0
    %v3735 = vadd.f32 %v3733, %v3734
    %v3736 = vsel %vm3463, %v3668, 0.0
    %v3737 = vadd.f32 %v3735, %v3736
    %v3738 = vsel %vm3463, %v3669, 0.0
    %v3739 = vadd.f32 %v3737, %v3738
    %v3740 = vsel %vm3463, %v3670, 0.0
    %v3741 = vadd.f32 %v3739, %v3740
    %v3742 = vsel %vm3463, %v3671, 0.0
    %v3743 = vadd.f32 %v3741, %v3742
    %v3744 = vsel %vm3463, %v3672, 0.0
    %v3745 = vadd.f32 %v3743, %v3744
    %v3746 = vsel %vm3463, %v3673, 0.0
    %v3747 = vadd.f32 %v3745, %v3746
    %v3748 = vsel %vm3463, %v3674, 0.0
    %v3749 = vadd.f32 %v3747, %v3748
    %v3750 = vsel %vm3463, %v3675, 0.0
    %v3751 = vadd.f32 %v3749, %v3750
    %v3752 = vsel %vm3463, %v3676, 0.0
    %v3753 = vadd.f32 %v3751, %v3752
    %v3754 = vsel %vm3463, %v3677, 0.0
    %v3755 = vadd.f32 %v3753, %v3754
    %v3756 = vsel %vm3463, %v3678, 0.0
    %v3757 = vadd.f32 %v3755, %v3756
    %v3758 = vsel %vm3463, %v3679, 0.0
    %v3759 = vadd.f32 %v3757, %v3758
    %v3760 = vsel %vm3463, %v3680, 0.0
    %v3761 = vadd.f32 %v3759, %v3760
    %v3762 = vsel %vm3463, %v3681, 0.0
    %v3763 = vadd.f32 %v3761, %v3762
    %v3764 = vsel %vm3463, %v3682, 0.0
    %v3765 = vadd.f32 %v3763, %v3764
    %v3766 = vsel %vm3463, %v3683, 0.0
    %v3767 = vadd.f32 %v3765, %v3766
    %v3768 = vsel %vm3463, %v3684, 0.0
    %v3769 = vadd.f32 %v3767, %v3768
    %v3770 = vsel %vm3463, %v3685, 0.0
    %v3771 = vadd.f32 %v3769, %v3770
    %v3772 = vsel %vm3463, %v3686, 0.0
    %v3773 = vadd.f32 %v3771, %v3772
    %v3774 = vsel %vm3463, %v3687, 0.0
    %v3775 = vadd.f32 %v3773, %v3774
    %v3776 = vsel %vm3463, %v3688, 0.0
    %v3777 = vadd.f32 %v3775, %v3776
    %v3778 = vsel %vm3463, %v3689, 0.0
    %v3779 = vadd.f32 %v3777, %v3778
    %v3780 = vsel %vm3463, %v3690, 0.0
    %v3781 = vadd.f32 %v3779, %v3780
    %v3782 = vsel %vm3463, %v3691, 0.0
    %v3783 = vadd.f32 %v3781, %v3782
    %v3784 = vsel %vm3463, %v3692, 0.0
    %v3785 = vadd.f32 %v3783, %v3784
    %v3786 = vsel %vm3463, %v3693, 0.0
    %v3787 = vadd.f32 %v3785, %v3786
    %v3788 = vsel %vm3463, %v3694, 0.0
    %v3789 = vadd.f32 %v3787, %v3788
    %v3790 = vsel %vm3463, %v3695, 0.0
    %v3791 = vadd.f32 %v3789, %v3790
    %v3792 = vsel %vm3463, %v3696, 0.0
    %v3793 = vadd.f32 %v3791, %v3792
    %v3794 = vsel %vm3463, %v3697, 0.0
    %v3795 = vadd.f32 %v3793, %v3794
    %v3796 = vsel %vm3463, %v3698, 0.0
    %v3797 = vadd.f32 %v3795, %v3796
    %v3798 = vsel %vm3463, %v3699, 0.0
    %v3799 = vadd.f32 %v3797, %v3798
    %v3800 = vsel %vm3463, %v3700, 0.0
    %v3801 = vadd.f32 %v3799, %v3800
    %v3802 = vsel %vm3463, %v3701, 0.0
    %v3803 = vadd.f32 %v3801, %v3802
    %v3804 = vsel %vm3463, %v3702, 0.0
    %v3805 = vadd.f32 %v3803, %v3804
    %v3806 = vsel %vm3463, %v3703, 0.0
    %v3807 = vadd.f32 %v3805, %v3806
    %v3808 = vsel %vm3463, %v3704, 0.0
    %v3809 = vadd.f32 %v3807, %v3808
    %v3810 = vsel %vm3463, %v3705, 0.0
    %v3811 = vadd.f32 %v3809, %v3810
    %v3812 = vsel %vm3463, %v3706, 0.0
    %v3813 = vadd.f32 %v3811, %v3812
    %v3814 = vsel %vm3463, %v3707, 0.0
    %v3815 = vadd.f32 %v3813, %v3814
    %v3816 = vsel %vm3463, %v3708, 0.0
    %v3817 = vadd.f32 %v3815, %v3816
    %v3818 = vsel %vm3463, %v3709, 0.0
    %v3819 = vadd.f32 %v3817, %v3818
    %v3820 = vsel %vm3463, %v3710, 0.0
    %v3821 = vadd.f32 %v3819, %v3820
    %v3822 = vsel %vm3463, %v3711, 0.0
    %v3823 = vadd.f32 %v3821, %v3822
    %v3824 = vsel %vm3463, %v3712, 0.0
    %v3825 = vadd.f32 %v3823, %v3824
    %v3826 = vsel %vm3463, %v3713, 0.0
    %v3827 = vadd.f32 %v3825, %v3826
    %v3828 = vsel %vm3463, %v3714, 0.0
    %v3829 = vadd.f32 %v3827, %v3828
    %v3830 = vsel %vm3463, %v3715, 0.0
    %v3831 = vadd.f32 %v3829, %v3830
    %v3832 = vsel %vm3463, %v3716, 0.0
    %v3833 = vadd.f32 %v3831, %v3832
    %v3834 = vsel %vm3463, %v3717, 0.0
    %v3835 = vadd.f32 %v3833, %v3834
    %v3836 = vsel %vm3463, %v3718, 0.0
    %v3837 = vadd.f32 %v3835, %v3836
    %v3838 = vsel %vm3463, %v3719, 0.0
    %v3839 = vadd.f32 %v3837, %v3838
    %v3840 = vsel %vm3463, %v3720, 0.0
    %v3841 = vadd.f32 %v3839, %v3840
    %v3842 = vsel %vm3463, %v3721, 0.0
    %v3843 = vadd.f32 %v3841, %v3842
    %v3844 = vsel %vm3463, %v3722, 0.0
    %v3845 = vadd.f32 %v3843, %v3844
    %v3846 = vsel %vm3463, %v3723, 0.0
    %v3847 = vadd.f32 %v3845, %v3846
    %v3848 = vsel %vm3463, %v3724, 0.0
    %v3849 = vadd.f32 %v3847, %v3848
    %v3850 = vsel %vm3463, %v3725, 0.0
    %v3851 = vadd.f32 %v3849, %v3850
    %v3852 = vsel %vm3463, %v3726, 0.0
    %v3853 = vadd.f32 %v3851, %v3852
    %v3854 = vrot.slane %v3853, 4
    %v3855 = vadd.f32 %v3853, %v3854
    %v3856 = vrot.slane %v3855, 2
    %v3857 = vadd.f32 %v3855, %v3856
    %v3858 = vrot.slane %v3857, 1
    %v3859 = vadd.f32 %v3857, %v3858
    %v3860 = vmul.f32 %v3859, %v3597
    %v3861 = vadd.f32 %v3860, 1e-05
    %v3862 = vrsqrt.pop %v3861
    %v3863 = vmul.f32 %v3599, %v3862
    %v3864 = vmul.f32 %v3600, %v3862
    %v3865 = vmul.f32 %v3601, %v3862
    %v3866 = vmul.f32 %v3602, %v3862
    %v3867 = vmul.f32 %v3603, %v3862
    %v3868 = vmul.f32 %v3604, %v3862
    %v3869 = vmul.f32 %v3605, %v3862
    %v3870 = vmul.f32 %v3606, %v3862
    %v3871 = vmul.f32 %v3607, %v3862
    %v3872 = vmul.f32 %v3608, %v3862
    %v3873 = vmul.f32 %v3609, %v3862
    %v3874 = vmul.f32 %v3610, %v3862
    %v3875 = vmul.f32 %v3611, %v3862
    %v3876 = vmul.f32 %v3612, %v3862
    %v3877 = vmul.f32 %v3613, %v3862
    %v3878 = vmul.f32 %v3614, %v3862
    %v3879 = vmul.f32 %v3615, %v3862
    %v3880 = vmul.f32 %v3616, %v3862
    %v3881 = vmul.f32 %v3617, %v3862
    %v3882 = vmul.f32 %v3618, %v3862
    %v3883 = vmul.f32 %v3619, %v3862
    %v3884 = vmul.f32 %v3620, %v3862
    %v3885 = vmul.f32 %v3621, %v3862
    %v3886 = vmul.f32 %v3622, %v3862
    %v3887 = vmul.f32 %v3623, %v3862
    %v3888 = vmul.f32 %v3624, %v3862
    %v3889 = vmul.f32 %v3625, %v3862
    %v3890 = vmul.f32 %v3626, %v3862
    %v3891 = vmul.f32 %v3627, %v3862
    %v3892 = vmul.f32 %v3628, %v3862
    %v3893 = vmul.f32 %v3629, %v3862
    %v3894 = vmul.f32 %v3630, %v3862
    %v3895 = vmul.f32 %v3631, %v3862
    %v3896 = vmul.f32 %v3632, %v3862
    %v3897 = vmul.f32 %v3633, %v3862
    %v3898 = vmul.f32 %v3634, %v3862
    %v3899 = vmul.f32 %v3635, %v3862
    %v3900 = vmul.f32 %v3636, %v3862
    %v3901 = vmul.f32 %v3637, %v3862
    %v3902 = vmul.f32 %v3638, %v3862
    %v3903 = vmul.f32 %v3639, %v3862
    %v3904 = vmul.f32 %v3640, %v3862
    %v3905 = vmul.f32 %v3641, %v3862
    %v3906 = vmul.f32 %v3642, %v3862
    %v3907 = vmul.f32 %v3643, %v3862
    %v3908 = vmul.f32 %v3644, %v3862
    %v3909 = vmul.f32 %v3645, %v3862
    %v3910 = vmul.f32 %v3646, %v3862
    %v3911 = vmul.f32 %v3647, %v3862
    %v3912 = vmul.f32 %v3648, %v3862
    %v3913 = vmul.f32 %v3649, %v3862
    %v3914 = vmul.f32 %v3650, %v3862
    %v3915 = vmul.f32 %v3651, %v3862
    %v3916 = vmul.f32 %v3652, %v3862
    %v3917 = vmul.f32 %v3653, %v3862
    %v3918 = vmul.f32 %v3654, %v3862
    %v3919 = vmul.f32 %v3655, %v3862
    %v3920 = vmul.f32 %v3656, %v3862
    %v3921 = vmul.f32 %v3657, %v3862
    %v3922 = vmul.f32 %v3658, %v3862
    %v3923 = vmul.f32 %v3659, %v3862
    %v3924 = vmul.f32 %v3660, %v3862
    %v3925 = vmul.f32 %v3661, %v3862
    %v3926 = vmul.f32 %v3662, %v3862
    %v3927 = vld [vmem:[%s8] sm:$0x1]
    %v3929 = vlaneseq
    %v3930 = vshrl.u32 %v3929, 7
    %v3931 = vsub.s32 0, %v3930
    %v3932 = vrot.slane %v3927, %v3931
    %v3934 = vmul.f32 %v3863, %v3932
    %v3935 = vmul.f32 %v3864, %v3932
    %v3936 = vmul.f32 %v3865, %v3932
    %v3937 = vmul.f32 %v3866, %v3932
    %v3938 = vmul.f32 %v3867, %v3932
    %v3939 = vmul.f32 %v3868, %v3932
    %v3940 = vmul.f32 %v3869, %v3932
    %v3941 = vmul.f32 %v3870, %v3932
    %v3942 = vmul.f32 %v3871, %v3932
    %v3943 = vmul.f32 %v3872, %v3932
    %v3944 = vmul.f32 %v3873, %v3932
    %v3945 = vmul.f32 %v3874, %v3932
    %v3946 = vmul.f32 %v3875, %v3932
    %v3947 = vmul.f32 %v3876, %v3932
    %v3948 = vmul.f32 %v3877, %v3932
    %v3949 = vmul.f32 %v3878, %v3932
    %v3950 = vmul.f32 %v3879, %v3932
    %v3951 = vmul.f32 %v3880, %v3932
    %v3952 = vmul.f32 %v3881, %v3932
    %v3953 = vmul.f32 %v3882, %v3932
    %v3954 = vmul.f32 %v3883, %v3932
    %v3955 = vmul.f32 %v3884, %v3932
    %v3956 = vmul.f32 %v3885, %v3932
    %v3957 = vmul.f32 %v3886, %v3932
    %v3958 = vmul.f32 %v3887, %v3932
    %v3959 = vmul.f32 %v3888, %v3932
    %v3960 = vmul.f32 %v3889, %v3932
    %v3961 = vmul.f32 %v3890, %v3932
    %v3962 = vmul.f32 %v3891, %v3932
    %v3963 = vmul.f32 %v3892, %v3932
    %v3964 = vmul.f32 %v3893, %v3932
    %v3965 = vmul.f32 %v3894, %v3932
    %v3966 = vmul.f32 %v3895, %v3932
    %v3967 = vmul.f32 %v3896, %v3932
    %v3968 = vmul.f32 %v3897, %v3932
    %v3969 = vmul.f32 %v3898, %v3932
    %v3970 = vmul.f32 %v3899, %v3932
    %v3971 = vmul.f32 %v3900, %v3932
    %v3972 = vmul.f32 %v3901, %v3932
    %v3973 = vmul.f32 %v3902, %v3932
    %v3974 = vmul.f32 %v3903, %v3932
    %v3975 = vmul.f32 %v3904, %v3932
    %v3976 = vmul.f32 %v3905, %v3932
    %v3977 = vmul.f32 %v3906, %v3932
    %v3978 = vmul.f32 %v3907, %v3932
    %v3979 = vmul.f32 %v3908, %v3932
    %v3980 = vmul.f32 %v3909, %v3932
    %v3981 = vmul.f32 %v3910, %v3932
    %v3982 = vmul.f32 %v3911, %v3932
    %v3983 = vmul.f32 %v3912, %v3932
    %v3984 = vmul.f32 %v3913, %v3932
    %v3985 = vmul.f32 %v3914, %v3932
    %v3986 = vmul.f32 %v3915, %v3932
    %v3987 = vmul.f32 %v3916, %v3932
    %v3988 = vmul.f32 %v3917, %v3932
    %v3989 = vmul.f32 %v3918, %v3932
    %v3990 = vmul.f32 %v3919, %v3932
    %v3991 = vmul.f32 %v3920, %v3932
    %v3992 = vmul.f32 %v3921, %v3932
    %v3993 = vmul.f32 %v3922, %v3932
    %v3994 = vmul.f32 %v3923, %v3932
    %v3995 = vmul.f32 %v3924, %v3932
    %v3996 = vmul.f32 %v3925, %v3932
    %v3997 = vmul.f32 %v3926, %v3932
    %v3998 = vld [vmem:[%s9] sm:$0x1]
    %v4000 = vlaneseq
    %v4001 = vshrl.u32 %v4000, 7
    %v4002 = vsub.s32 0, %v4001
    %v4003 = vrot.slane %v3998, %v4002
    %v4005 = vadd.f32 %v3934, %v4003
    %v4006 = vadd.f32 %v3935, %v4003
    %v4007 = vadd.f32 %v3936, %v4003
    %v4008 = vadd.f32 %v3937, %v4003
    %v4009 = vadd.f32 %v3938, %v4003
    %v4010 = vadd.f32 %v3939, %v4003
    %v4011 = vadd.f32 %v3940, %v4003
    %v4012 = vadd.f32 %v3941, %v4003
    %v4013 = vadd.f32 %v3942, %v4003
    %v4014 = vadd.f32 %v3943, %v4003
    %v4015 = vadd.f32 %v3944, %v4003
    %v4016 = vadd.f32 %v3945, %v4003
    %v4017 = vadd.f32 %v3946, %v4003
    %v4018 = vadd.f32 %v3947, %v4003
    %v4019 = vadd.f32 %v3948, %v4003
    %v4020 = vadd.f32 %v3949, %v4003
    %v4021 = vadd.f32 %v3950, %v4003
    %v4022 = vadd.f32 %v3951, %v4003
    %v4023 = vadd.f32 %v3952, %v4003
    %v4024 = vadd.f32 %v3953, %v4003
    %v4025 = vadd.f32 %v3954, %v4003
    %v4026 = vadd.f32 %v3955, %v4003
    %v4027 = vadd.f32 %v3956, %v4003
    %v4028 = vadd.f32 %v3957, %v4003
    %v4029 = vadd.f32 %v3958, %v4003
    %v4030 = vadd.f32 %v3959, %v4003
    %v4031 = vadd.f32 %v3960, %v4003
    %v4032 = vadd.f32 %v3961, %v4003
    %v4033 = vadd.f32 %v3962, %v4003
    %v4034 = vadd.f32 %v3963, %v4003
    %v4035 = vadd.f32 %v3964, %v4003
    %v4036 = vadd.f32 %v3965, %v4003
    %v4037 = vadd.f32 %v3966, %v4003
    %v4038 = vadd.f32 %v3967, %v4003
    %v4039 = vadd.f32 %v3968, %v4003
    %v4040 = vadd.f32 %v3969, %v4003
    %v4041 = vadd.f32 %v3970, %v4003
    %v4042 = vadd.f32 %v3971, %v4003
    %v4043 = vadd.f32 %v3972, %v4003
    %v4044 = vadd.f32 %v3973, %v4003
    %v4045 = vadd.f32 %v3974, %v4003
    %v4046 = vadd.f32 %v3975, %v4003
    %v4047 = vadd.f32 %v3976, %v4003
    %v4048 = vadd.f32 %v3977, %v4003
    %v4049 = vadd.f32 %v3978, %v4003
    %v4050 = vadd.f32 %v3979, %v4003
    %v4051 = vadd.f32 %v3980, %v4003
    %v4052 = vadd.f32 %v3981, %v4003
    %v4053 = vadd.f32 %v3982, %v4003
    %v4054 = vadd.f32 %v3983, %v4003
    %v4055 = vadd.f32 %v3984, %v4003
    %v4056 = vadd.f32 %v3985, %v4003
    %v4057 = vadd.f32 %v3986, %v4003
    %v4058 = vadd.f32 %v3987, %v4003
    %v4059 = vadd.f32 %v3988, %v4003
    %v4060 = vadd.f32 %v3989, %v4003
    %v4061 = vadd.f32 %v3990, %v4003
    %v4062 = vadd.f32 %v3991, %v4003
    %v4063 = vadd.f32 %v3992, %v4003
    %v4064 = vadd.f32 %v3993, %v4003
    %v4065 = vadd.f32 %v3994, %v4003
    %v4066 = vadd.f32 %v3995, %v4003
    %v4067 = vadd.f32 %v3996, %v4003
    %v4068 = vadd.f32 %v3997, %v4003
    %4069 = vst.msk [vmem:[#allocation2] sm:$0x3] %vm3463, %v4005
    %4070 = vst.msk [vmem:[#allocation2 + $0x2] sm:$0x3] %vm3463, %v4006
    %4071 = vst.msk [vmem:[#allocation2 + $0x4] sm:$0x3] %vm3463, %v4007
    %4072 = vst.msk [vmem:[#allocation2 + $0x6] sm:$0x3] %vm3463, %v4008
    %4073 = vst.msk [vmem:[#allocation2 + $0x8] sm:$0x3] %vm3463, %v4009
    %4074 = vst.msk [vmem:[#allocation2 + $0xa] sm:$0x3] %vm3463, %v4010
    %4075 = vst.msk [vmem:[#allocation2 + $0xc] sm:$0x3] %vm3463, %v4011
    %4076 = vst.msk [vmem:[#allocation2 + $0xe] sm:$0x3] %vm3463, %v4012
    %4077 = vst.msk [vmem:[#allocation2 + $0x10] sm:$0x3] %vm3463, %v4013
    %4078 = vst.msk [vmem:[#allocation2 + $0x12] sm:$0x3] %vm3463, %v4014
    %4079 = vst.msk [vmem:[#allocation2 + $0x14] sm:$0x3] %vm3463, %v4015
    %4080 = vst.msk [vmem:[#allocation2 + $0x16] sm:$0x3] %vm3463, %v4016
    %4081 = vst.msk [vmem:[#allocation2 + $0x18] sm:$0x3] %vm3463, %v4017
    %4082 = vst.msk [vmem:[#allocation2 + $0x1a] sm:$0x3] %vm3463, %v4018
    %4083 = vst.msk [vmem:[#allocation2 + $0x1c] sm:$0x3] %vm3463, %v4019
    %4084 = vst.msk [vmem:[#allocation2 + $0x1e] sm:$0x3] %vm3463, %v4020
    %4085 = vst.msk [vmem:[#allocation2 + $0x20] sm:$0x3] %vm3463, %v4021
    %4086 = vst.msk [vmem:[#allocation2 + $0x22] sm:$0x3] %vm3463, %v4022
    %4087 = vst.msk [vmem:[#allocation2 + $0x24] sm:$0x3] %vm3463, %v4023
    %4088 = vst.msk [vmem:[#allocation2 + $0x26] sm:$0x3] %vm3463, %v4024
    %4089 = vst.msk [vmem:[#allocation2 + $0x28] sm:$0x3] %vm3463, %v4025
    %4090 = vst.msk [vmem:[#allocation2 + $0x2a] sm:$0x3] %vm3463, %v4026
    %4091 = vst.msk [vmem:[#allocation2 + $0x2c] sm:$0x3] %vm3463, %v4027
    %4092 = vst.msk [vmem:[#allocation2 + $0x2e] sm:$0x3] %vm3463, %v4028
    %4093 = vst.msk [vmem:[#allocation2 + $0x30] sm:$0x3] %vm3463, %v4029
    %4094 = vst.msk [vmem:[#allocation2 + $0x32] sm:$0x3] %vm3463, %v4030
    %4095 = vst.msk [vmem:[#allocation2 + $0x34] sm:$0x3] %vm3463, %v4031
    %4096 = vst.msk [vmem:[#allocation2 + $0x36] sm:$0x3] %vm3463, %v4032
    %4097 = vst.msk [vmem:[#allocation2 + $0x38] sm:$0x3] %vm3463, %v4033
    %4098 = vst.msk [vmem:[#allocation2 + $0x3a] sm:$0x3] %vm3463, %v4034
    %4099 = vst.msk [vmem:[#allocation2 + $0x3c] sm:$0x3] %vm3463, %v4035
    %4100 = vst.msk [vmem:[#allocation2 + $0x3e] sm:$0x3] %vm3463, %v4036
    %4101 = vst.msk [vmem:[#allocation2 + $0x40] sm:$0x3] %vm3463, %v4037
    %4102 = vst.msk [vmem:[#allocation2 + $0x42] sm:$0x3] %vm3463, %v4038
    %4103 = vst.msk [vmem:[#allocation2 + $0x44] sm:$0x3] %vm3463, %v4039
    %4104 = vst.msk [vmem:[#allocation2 + $0x46] sm:$0x3] %vm3463, %v4040
    %4105 = vst.msk [vmem:[#allocation2 + $0x48] sm:$0x3] %vm3463, %v4041
    %4106 = vst.msk [vmem:[#allocation2 + $0x4a] sm:$0x3] %vm3463, %v4042
    %4107 = vst.msk [vmem:[#allocation2 + $0x4c] sm:$0x3] %vm3463, %v4043
    %4108 = vst.msk [vmem:[#allocation2 + $0x4e] sm:$0x3] %vm3463, %v4044
    %4109 = vst.msk [vmem:[#allocation2 + $0x50] sm:$0x3] %vm3463, %v4045
    %4110 = vst.msk [vmem:[#allocation2 + $0x52] sm:$0x3] %vm3463, %v4046
    %4111 = vst.msk [vmem:[#allocation2 + $0x54] sm:$0x3] %vm3463, %v4047
    %4112 = vst.msk [vmem:[#allocation2 + $0x56] sm:$0x3] %vm3463, %v4048
    %4113 = vst.msk [vmem:[#allocation2 + $0x58] sm:$0x3] %vm3463, %v4049
    %4114 = vst.msk [vmem:[#allocation2 + $0x5a] sm:$0x3] %vm3463, %v4050
    %4115 = vst.msk [vmem:[#allocation2 + $0x5c] sm:$0x3] %vm3463, %v4051
    %4116 = vst.msk [vmem:[#allocation2 + $0x5e] sm:$0x3] %vm3463, %v4052
    %4117 = vst.msk [vmem:[#allocation2 + $0x60] sm:$0x3] %vm3463, %v4053
    %4118 = vst.msk [vmem:[#allocation2 + $0x62] sm:$0x3] %vm3463, %v4054
    %4119 = vst.msk [vmem:[#allocation2 + $0x64] sm:$0x3] %vm3463, %v4055
    %4120 = vst.msk [vmem:[#allocation2 + $0x66] sm:$0x3] %vm3463, %v4056
    %4121 = vst.msk [vmem:[#allocation2 + $0x68] sm:$0x3] %vm3463, %v4057
    %4122 = vst.msk [vmem:[#allocation2 + $0x6a] sm:$0x3] %vm3463, %v4058
    %4123 = vst.msk [vmem:[#allocation2 + $0x6c] sm:$0x3] %vm3463, %v4059
    %4124 = vst.msk [vmem:[#allocation2 + $0x6e] sm:$0x3] %vm3463, %v4060
    %4125 = vst.msk [vmem:[#allocation2 + $0x70] sm:$0x3] %vm3463, %v4061
    %4126 = vst.msk [vmem:[#allocation2 + $0x72] sm:$0x3] %vm3463, %v4062
    %4127 = vst.msk [vmem:[#allocation2 + $0x74] sm:$0x3] %vm3463, %v4063
    %4128 = vst.msk [vmem:[#allocation2 + $0x76] sm:$0x3] %vm3463, %v4064
    %4129 = vst.msk [vmem:[#allocation2 + $0x78] sm:$0x3] %vm3463, %v4065
    %4130 = vst.msk [vmem:[#allocation2 + $0x7a] sm:$0x3] %vm3463, %v4066
    %4131 = vst.msk [vmem:[#allocation2 + $0x7c] sm:$0x3] %vm3463, %v4067
    %4132 = vst.msk [vmem:[#allocation2 + $0x7e] sm:$0x3] %vm3463, %v4068
    // Predicated region
    $region42: #{tpu_custom_call.1} parent=1 // pred_check
      _
    $region43: #{tpu_custom_call.1} parent=1 // pred_check_branch
      %4134 = sbr.rel (0) target = $region45
    $region44: #{tpu_custom_call.1} parent=1 // pred_region
      %s4136 = ssub.s32 2048, 2048
      %4137 = vsyncadd [#allocation3], %s4136
      %s4138 = sshll.u32 [#allocation2], 4
      %s4139 = int_to_ptr.vmem [resolvable:$true] %s4138
      %4144 = dma.vmem_to_hbm [thread:$0]  %s4139, 2048, %s10, [#allocation3], 32, 32, 2
    $region45: #{tpu_custom_call.1} parent=1 // pred_fallthru
      _
    // Predicated region
    $region46: #{tpu_custom_call.1} parent=1 // pred_check
      _
    $region47: #{tpu_custom_call.1} parent=1 // pred_check_branch
      %4146 = sbr.rel (0) target = $region49
    $region48: #{tpu_custom_call.1} parent=1 // pred_region
      %4147 = dma.done [#allocation3], 2048
    $region49: #{tpu_custom_call.1} parent=1 // pred_fallthru
      _
    %4148 = vsyncpa [#allocation3], 1

</llo_original>
